<compile_context>
chip_gen: v5e
topology: v5e:2x2
jax: 0.10.0
libtpu: 0.0.40
codegen_flags: <defaults>
</compile_context>

<pallas_src>
import numpy as np
import jax
import jax.numpy as jnp
from jax import lax
from jax.experimental import pallas as pl
from jax.experimental.pallas import tpu as pltpu


# ---------------------------------------------------------------------------
# geometry helpers
# ---------------------------------------------------------------------------

def _dims(obs_shape):
    c, h, w = obs_shape
    oh1, ow1 = h - 2, w - 2                                # conv1: 3x3, stride 1
    oh2, ow2 = (oh1 - 3) // 2 + 1, (ow1 - 3) // 2 + 1      # conv2: 3x3, stride 2
    return c, h, w, oh1, ow1, oh2, ow2


def _round_up(x, m):
    return ((x + m - 1) // m) * m


# ---------------------------------------------------------------------------
# PyTorch-layout parameters (conv: OIHW, linear: (out, in))
# ---------------------------------------------------------------------------

def _xavier_uniform(key, shape, fan_in, fan_out):
    limit = float(np.sqrt(6.0 / (fan_in + fan_out)))
    return jax.random.uniform(key, shape, jnp.float32, -limit, limit)


def init_params(key, obs_shape, action_space):
    c_in, _, _, _, _, oh2, ow2 = _dims(obs_shape)
    lin_in = 16 * oh2 * ow2
    ks = jax.random.split(key, 10)
    u = lambda k, s: jax.random.uniform(k, s, jnp.float32, -0.1, 0.1)
    return {
        "conv1_w": _xavier_uniform(ks[0], (16, c_in, 3, 3), c_in * 9, 16 * 9),
        "conv1_b": u(ks[1], (16,)),
        "conv2_w": _xavier_uniform(ks[2], (16, 16, 3, 3), 16 * 9, 16 * 9),
        "conv2_b": u(ks[3], (16,)),
        "lin1_w": _xavier_uniform(ks[4], (256, lin_in), lin_in, 256),
        "lin1_b": u(ks[5], (256,)),
        "critic_w": _xavier_uniform(ks[6], (1, 256), 256, 1),
        "critic_b": u(ks[7], (1,)),
        "actor_w": _xavier_uniform(ks[8], (action_space, 256), 256, action_space),
        "actor_b": u(ks[9], (action_space,)),
    }


# ---------------------------------------------------------------------------
# build: pack parameters ONCE and return a jitted fused forward
# ---------------------------------------------------------------------------

def build_i2a_forward(params, obs_shape, action_space, batch, fuse_conv1=True):
    C, H, W, OH1, OW1, OH2, OW2 = _dims(obs_shape)
    B = batch
    CO1, CO2, HIDDEN = 16, 16, 256
    A = action_space
    NH = 1 + A
    L1 = _round_up(OW1 * CO1, 128)          # conv1 activation lanes (224 -> 256)
    L2 = _round_up(OW2 * CO2, 128)          # conv2 activation lanes ( 96 -> 128)
    NHP = _round_up(NH, 8)                  # padded head rows
    BCH = B * C * H                         # rows of the NCHW-flattened input
    R1P = _round_up(B * OH1, 8)             # padded rows per conv1 selection tap
    R2P = _round_up(B * OH2, 8)             # padded rows per conv2 selection tap
    NT1 = 3 * C                             # conv1 taps = kernel rows x in-ch
    WN = max(L2, BCH)                       # lane width of the narrow pack
    WW = max(L1, HIDDEN)                    # lane width of the wide pack

    p = {k: np.asarray(jax.device_get(v), np.float32) for k, v in params.items()}

    # --- structured conv1 weight: rows (tap=(i,ci), w_in), lanes (ow1, co) ---
    k1 = np.zeros((NT1 * W, WW), np.float32)
    for i in range(3):
        for ci in range(C):
            t = i * C + ci
            for ow in range(OW1):
                for j in range(3):
                    k1[t * W + ow + j, ow * CO1:(ow + 1) * CO1] = p["conv1_w"][:, ci, i, j]

    # --- structured conv2 weight: rows (i2, h1-lane), lanes (ow2, co) --------
    k2 = np.zeros((3 * L1, WN), np.float32)
    for i in range(3):
        for ow in range(OW2):
            for j in range(3):
                win = 2 * ow + j
                for cm in range(CO1):
                    k2[i * L1 + win * CO1 + cm, ow * CO2:(ow + 1) * CO2] = p["conv2_w"][:, cm, i, j]

    # --- linear1 with the PyTorch NCHW .view() ordering folded in -----------
    wl = np.zeros((OH2 * L2, WW), np.float32)
    for k in range(OH2):
        for ow in range(OW2):
            for cm in range(CO2):
                wl[k * L2 + ow * CO2 + cm, :HIDDEN] = p["lin1_w"][:, cm * OH2 * OW2 + k * OW2 + ow]

    # --- fused critic|actor head, stored transposed (rows = outputs) --------
    wht = np.zeros((NHP, WW), np.float32)
    wht[0, :HIDDEN] = p["critic_w"][0]
    wht[1:NH, :HIDDEN] = p["actor_w"]

    # --- all biases in one 4-row slab ----------------------------------------
    biases = np.zeros((4, WW), np.float32)
    biases[0, :OW1 * CO1] = np.tile(p["conv1_b"], OW1)
    biases[1, :OW2 * CO2] = np.tile(p["conv2_b"], OW2)
    biases[2, :HIDDEN] = p["lin1_b"]
    biases[3, 0] = p["critic_b"][0]
    biases[3, 1:NH] = p["actor_b"]

    # --- shape-only selection matrices (also fold NCHW->NHWC permutation) ---
    s1 = np.zeros((NT1, R1P, WN), np.float32)
    for i in range(3):
        for ci in range(C):
            t = i * C + ci
            for b in range(B):
                for oh in range(OH1):
                    s1[t, b * OH1 + oh, b * C * H + ci * H + oh + i] = 1.0
    s2 = np.zeros((3, R2P, WN), np.float32)                # h2 rows: oh2-major
    for i in range(3):
        for b in range(B):
            for oh in range(OH2):
                s2[i, oh * B + b, b * OH1 + 2 * oh + i] = 1.0

    # --- pack everything into two DMA-friendly buffers ----------------------
    pack_n = np.concatenate(
        [k2, s1.reshape(NT1 * R1P, WN), s2.reshape(3 * R2P, WN)], axis=0)
    OFF_K2, OFF_S1 = 0, 3 * L1
    OFF_S2 = OFF_S1 + NT1 * R1P

    pack_w = np.concatenate([k1, wl, wht, biases], axis=0)
    OFF_K1, OFF_WL = 0, NT1 * W
    OFF_WHT = OFF_WL + OH2 * L2
    OFF_BIAS = OFF_WHT + NHP
    pad = (-pack_w.shape[0]) % 8
    if pad:
        pack_w = np.concatenate([pack_w, np.zeros((pad, WW), np.float32)], axis=0)

    # ------------------------------ kernel ----------------------------------
    def kernel(x_ref, pn_ref, pw_ref, critic_ref, actor_ref):
        f32 = jnp.float32
        x = x_ref[...]                                     # (B*C*H, W)

        # conv1 + ReLU: selection matmuls gather the im2col lanes (and do the
        # NCHW->lane permutation); one 192-deep contraction applies conv1.
        parts = [
            jnp.dot(pn_ref[OFF_S1 + t * R1P:OFF_S1 + t * R1P + B * OH1, 0:BCH],
                    x, preferred_element_type=f32)
            for t in range(NT1)
        ]
        if fuse_conv1:
            g1 = jnp.concatenate(parts, axis=1)            # (B*OH1, NT1*W)
            h1 = jnp.dot(g1, pw_ref[OFF_K1:OFF_K1 + NT1 * W, 0:L1],
                         preferred_element_type=f32)
        else:
            # fallback: per-tap matmuls with a tree reduction (no lane concat)
            terms = [
                jnp.dot(parts[t],
                        pw_ref[OFF_K1 + t * W:OFF_K1 + (t + 1) * W, 0:L1],
                        preferred_element_type=f32)
                for t in range(NT1)
            ]
            while len(terms) > 1:
                nxt = [terms[idx] + terms[idx + 1]
                       for idx in range(0, len(terms) - 1, 2)]
                if len(terms) % 2:
                    nxt.append(terms[-1])
                terms = nxt
            h1 = terms[0]
        h1 = jnp.maximum(h1 + pw_ref[OFF_BIAS:OFF_BIAS + 1, 0:L1], 0.0)

        # conv2 (stride 2) + ReLU: 3 row-tap gathers, one 768-deep contraction.
        parts = [
            jnp.dot(pn_ref[OFF_S2 + i * R2P:OFF_S2 + i * R2P + B * OH2, 0:B * OH1],
                    h1, preferred_element_type=f32)
            for i in range(3)
        ]
        g2 = jnp.concatenate(parts, axis=1)                # (B*OH2, 3*L1)
        h2 = jnp.dot(g2, pn_ref[OFF_K2:OFF_K2 + 3 * L1, 0:L2],
                     preferred_element_type=f32)
        h2 = jnp.maximum(h2 + pw_ref[OFF_BIAS + 1:OFF_BIAS + 2, 0:L2], 0.0)

        # linear1 + ReLU: h2 rows are oh2-major, so each tap is a static row
        # slice (no selection matmuls); single 768-deep contraction.
        hcat = jnp.concatenate([h2[k * B:(k + 1) * B, :] for k in range(OH2)],
                               axis=1)                     # (B, OH2*L2)
        hid = jnp.dot(hcat, pw_ref[OFF_WL:OFF_WL + OH2 * L2, 0:HIDDEN],
                      preferred_element_type=f32)
        hid = jnp.maximum(hid + pw_ref[OFF_BIAS + 2:OFF_BIAS + 3, 0:HIDDEN], 0.0)

        # fused critic|actor head -> two kernel outputs (no wrapper slices).
        head = lax.dot_general(hid, pw_ref[OFF_WHT:OFF_WHT + NHP, 0:HIDDEN],
                               (((1,), (1,)), ((), ())),
                               preferred_element_type=f32)
        head = head + pw_ref[OFF_BIAS + 3:OFF_BIAS + 4, 0:NHP]
        critic_ref[...] = head[:, 0:1]
        actor_ref[...] = head[:, 1:NH]

    vmem = pl.BlockSpec(memory_space=pltpu.MemorySpace.VMEM)
    pc = pl.pallas_call(
        kernel,
        out_shape=(jax.ShapeDtypeStruct((B, 1), jnp.float32),
                   jax.ShapeDtypeStruct((B, A), jnp.float32)),
        in_specs=[vmem, vmem, vmem],
        out_specs=(vmem, vmem),
    )

    def forward(x_nchw, pack_narrow, pack_wide):
        # NCHW -> (B*C*H, W) is a layout-preserving (free) reshape; there is no
        # transpose on the hot path.
        x2d = jnp.reshape(x_nchw.astype(jnp.float32), (BCH, W))
        return pc(x2d, pack_narrow, pack_wide)

    return jax.jit(forward), jnp.asarray(pack_n), jnp.asarray(pack_w)


# ---------------------------------------------------------------------------
# pure-XLA reference (PyTorch semantics) for the numerical check
# ---------------------------------------------------------------------------

def reference_forward(params, x_nchw):
    dn = ("NCHW", "OIHW", "NCHW")
    hp = lax.Precision.HIGHEST
    y = lax.conv_general_dilated(x_nchw, params["conv1_w"], (1, 1), "VALID",
                                 dimension_numbers=dn, precision=hp)
    y = jax.nn.relu(y + params["conv1_b"][None, :, None, None])
    y = lax.conv_general_dilated(y, params["conv2_w"], (2, 2), "VALID",
                                 dimension_numbers=dn, precision=hp)
    y = jax.nn.relu(y + params["conv2_b"][None, :, None, None])
    flat = y.reshape(y.shape[0], -1)                       # PyTorch NCHW .view()
    hid = jax.nn.relu(jnp.dot(flat, params["lin1_w"].T, precision=hp)
                      + params["lin1_b"])
    critic = jnp.dot(hid, params["critic_w"].T, precision=hp) + params["critic_b"]
    actor = jnp.dot(hid, params["actor_w"].T, precision=hp) + params["actor_b"]
    return critic, actor


# ---------------------------------------------------------------------------
# main
# ---------------------------------------------------------------------------

if __name__ == "__main__":
    obs_shape = (4, 16, 16)        # (C, H, W)
    action_space = 6
    batch = 2

    key = jax.random.PRNGKey(0)
    k_param, k_input = jax.random.split(key)
    params = init_params(k_param, obs_shape, action_space)
    x = jax.random.normal(k_input, (batch,) + obs_shape, jnp.float32)

    def run(fuse):
        fwd, pack_n, pack_w = build_i2a_forward(params, obs_shape, action_space,
                                                batch, fuse_conv1=fuse)
        c, a = fwd(x, pack_n, pack_w)
        jax.block_until_ready((c, a))
        return c, a

    try:
        critic, actor = run(True)
    except Exception:
        # Safety net: if the unaligned lane-concat path is rejected by this
        # Mosaic build, fall back to per-tap accumulation (same packed params).
        critic, actor = run(False)

    assert critic.shape == (batch, 1)
    assert actor.shape == (batch, action_space)

    critic_ref, actor_ref = jax.jit(reference_forward)(params, x)
    c_np, a_np = np.asarray(critic), np.asarray(actor)
    cr_np, ar_np = np.asarray(critic_ref), np.asarray(actor_ref)
    assert np.all(np.isfinite(c_np)) and np.all(np.isfinite(a_np))
    assert np.allclose(c_np, cr_np, rtol=1e-4, atol=1e-5), \
        f"critic max abs err {np.max(np.abs(c_np - cr_np))}"
    assert np.allclose(a_np, ar_np, rtol=1e-4, atol=1e-5), \
        f"actor max abs err {np.max(np.abs(a_np - ar_np))}"

    print("KERNEL_OK")
</pallas_src>

<mosaic_0001>
module attributes {stable_mosaic.version = 11 : i64} {
  func.func @kernel(%arg0: memref<128x16xf32, #tpu.memory_space<vmem>>, %arg1: memref<1200x128xf32, #tpu.memory_space<vmem>>, %arg2: memref<976x256xf32, #tpu.memory_space<vmem>>, %arg3: memref<2x1xf32, #tpu.memory_space<vmem>>, %arg4: memref<2x6xf32, #tpu.memory_space<vmem>>) attributes {dimension_semantics = [], scalar_prefetch = 0 : i64, scratch_operands = 0 : i64, tpu.core_type = #tpu.core_type<tc>} {
    %c0 = arith.constant 0 : index
    %c0_0 = arith.constant 0 : index
    %0 = vector.load %arg0[%c0, %c0_0] : memref<128x16xf32, #tpu.memory_space<vmem>>, vector<128x16xf32>
    %c768 = arith.constant 768 : index
    %c0_1 = arith.constant 0 : index
    %1 = vector.load %arg1[%c768, %c0_1] : memref<1200x128xf32, #tpu.memory_space<vmem>>, vector<28x128xf32>
    %cst = arith.constant dense<0.000000e+00> : vector<28x16xf32>
    %2 = tpu.matmul %1, %0, %cst {dimension_numbers = #tpu.dot_dimension_numbers<[1], [0], [0], [1], [0, 0, 1, 1], [], []>} : vector<28x128xf32>, vector<128x16xf32>, vector<28x16xf32> -> vector<28x16xf32>
    %c800 = arith.constant 800 : index
    %c0_2 = arith.constant 0 : index
    %3 = vector.load %arg1[%c800, %c0_2] : memref<1200x128xf32, #tpu.memory_space<vmem>>, vector<28x128xf32>
    %cst_3 = arith.constant dense<0.000000e+00> : vector<28x16xf32>
    %4 = tpu.matmul %3, %0, %cst_3 {dimension_numbers = #tpu.dot_dimension_numbers<[1], [0], [0], [1], [0, 0, 1, 1], [], []>} : vector<28x128xf32>, vector<128x16xf32>, vector<28x16xf32> -> vector<28x16xf32>
    %c832 = arith.constant 832 : index
    %c0_4 = arith.constant 0 : index
    %5 = vector.load %arg1[%c832, %c0_4] : memref<1200x128xf32, #tpu.memory_space<vmem>>, vector<28x128xf32>
    %cst_5 = arith.constant dense<0.000000e+00> : vector<28x16xf32>
    %6 = tpu.matmul %5, %0, %cst_5 {dimension_numbers = #tpu.dot_dimension_numbers<[1], [0], [0], [1], [0, 0, 1, 1], [], []>} : vector<28x128xf32>, vector<128x16xf32>, vector<28x16xf32> -> vector<28x16xf32>
    %c864 = arith.constant 864 : index
    %c0_6 = arith.constant 0 : index
    %7 = vector.load %arg1[%c864, %c0_6] : memref<1200x128xf32, #tpu.memory_space<vmem>>, vector<28x128xf32>
    %cst_7 = arith.constant dense<0.000000e+00> : vector<28x16xf32>
    %8 = tpu.matmul %7, %0, %cst_7 {dimension_numbers = #tpu.dot_dimension_numbers<[1], [0], [0], [1], [0, 0, 1, 1], [], []>} : vector<28x128xf32>, vector<128x16xf32>, vector<28x16xf32> -> vector<28x16xf32>
    %c896 = arith.constant 896 : index
    %c0_8 = arith.constant 0 : index
    %9 = vector.load %arg1[%c896, %c0_8] : memref<1200x128xf32, #tpu.memory_space<vmem>>, vector<28x128xf32>
    %cst_9 = arith.constant dense<0.000000e+00> : vector<28x16xf32>
    %10 = tpu.matmul %9, %0, %cst_9 {dimension_numbers = #tpu.dot_dimension_numbers<[1], [0], [0], [1], [0, 0, 1, 1], [], []>} : vector<28x128xf32>, vector<128x16xf32>, vector<28x16xf32> -> vector<28x16xf32>
    %c928 = arith.constant 928 : index
    %c0_10 = arith.constant 0 : index
    %11 = vector.load %arg1[%c928, %c0_10] : memref<1200x128xf32, #tpu.memory_space<vmem>>, vector<28x128xf32>
    %cst_11 = arith.constant dense<0.000000e+00> : vector<28x16xf32>
    %12 = tpu.matmul %11, %0, %cst_11 {dimension_numbers = #tpu.dot_dimension_numbers<[1], [0], [0], [1], [0, 0, 1, 1], [], []>} : vector<28x128xf32>, vector<128x16xf32>, vector<28x16xf32> -> vector<28x16xf32>
    %c960 = arith.constant 960 : index
    %c0_12 = arith.constant 0 : index
    %13 = vector.load %arg1[%c960, %c0_12] : memref<1200x128xf32, #tpu.memory_space<vmem>>, vector<28x128xf32>
    %cst_13 = arith.constant dense<0.000000e+00> : vector<28x16xf32>
    %14 = tpu.matmul %13, %0, %cst_13 {dimension_numbers = #tpu.dot_dimension_numbers<[1], [0], [0], [1], [0, 0, 1, 1], [], []>} : vector<28x128xf32>, vector<128x16xf32>, vector<28x16xf32> -> vector<28x16xf32>
    %c992 = arith.constant 992 : index
    %c0_14 = arith.constant 0 : index
    %15 = vector.load %arg1[%c992, %c0_14] : memref<1200x128xf32, #tpu.memory_space<vmem>>, vector<28x128xf32>
    %cst_15 = arith.constant dense<0.000000e+00> : vector<28x16xf32>
    %16 = tpu.matmul %15, %0, %cst_15 {dimension_numbers = #tpu.dot_dimension_numbers<[1], [0], [0], [1], [0, 0, 1, 1], [], []>} : vector<28x128xf32>, vector<128x16xf32>, vector<28x16xf32> -> vector<28x16xf32>
    %c1024 = arith.constant 1024 : index
    %c0_16 = arith.constant 0 : index
    %17 = vector.load %arg1[%c1024, %c0_16] : memref<1200x128xf32, #tpu.memory_space<vmem>>, vector<28x128xf32>
    %cst_17 = arith.constant dense<0.000000e+00> : vector<28x16xf32>
    %18 = tpu.matmul %17, %0, %cst_17 {dimension_numbers = #tpu.dot_dimension_numbers<[1], [0], [0], [1], [0, 0, 1, 1], [], []>} : vector<28x128xf32>, vector<128x16xf32>, vector<28x16xf32> -> vector<28x16xf32>
    %c1056 = arith.constant 1056 : index
    %c0_18 = arith.constant 0 : index
    %19 = vector.load %arg1[%c1056, %c0_18] : memref<1200x128xf32, #tpu.memory_space<vmem>>, vector<28x128xf32>
    %cst_19 = arith.constant dense<0.000000e+00> : vector<28x16xf32>
    %20 = tpu.matmul %19, %0, %cst_19 {dimension_numbers = #tpu.dot_dimension_numbers<[1], [0], [0], [1], [0, 0, 1, 1], [], []>} : vector<28x128xf32>, vector<128x16xf32>, vector<28x16xf32> -> vector<28x16xf32>
    %c1088 = arith.constant 1088 : index
    %c0_20 = arith.constant 0 : index
    %21 = vector.load %arg1[%c1088, %c0_20] : memref<1200x128xf32, #tpu.memory_space<vmem>>, vector<28x128xf32>
    %cst_21 = arith.constant dense<0.000000e+00> : vector<28x16xf32>
    %22 = tpu.matmul %21, %0, %cst_21 {dimension_numbers = #tpu.dot_dimension_numbers<[1], [0], [0], [1], [0, 0, 1, 1], [], []>} : vector<28x128xf32>, vector<128x16xf32>, vector<28x16xf32> -> vector<28x16xf32>
    %c1120 = arith.constant 1120 : index
    %c0_22 = arith.constant 0 : index
    %23 = vector.load %arg1[%c1120, %c0_22] : memref<1200x128xf32, #tpu.memory_space<vmem>>, vector<28x128xf32>
    %cst_23 = arith.constant dense<0.000000e+00> : vector<28x16xf32>
    %24 = tpu.matmul %23, %0, %cst_23 {dimension_numbers = #tpu.dot_dimension_numbers<[1], [0], [0], [1], [0, 0, 1, 1], [], []>} : vector<28x128xf32>, vector<128x16xf32>, vector<28x16xf32> -> vector<28x16xf32>
    %25 = tpu.concatenate %2, %4, %6, %8, %10, %12, %14, %16, %18, %20, %22, %24 in 1 : vector<28x16xf32>, vector<28x16xf32>, vector<28x16xf32>, vector<28x16xf32>, vector<28x16xf32>, vector<28x16xf32>, vector<28x16xf32>, vector<28x16xf32>, vector<28x16xf32>, vector<28x16xf32>, vector<28x16xf32>, vector<28x16xf32> -> vector<28x192xf32>
    %c0_24 = arith.constant 0 : index
    %c0_25 = arith.constant 0 : index
    %26 = vector.load %arg2[%c0_24, %c0_25] : memref<976x256xf32, #tpu.memory_space<vmem>>, vector<192x256xf32>
    %cst_26 = arith.constant dense<0.000000e+00> : vector<28x256xf32>
    %27 = tpu.matmul %25, %26, %cst_26 {dimension_numbers = #tpu.dot_dimension_numbers<[1], [0], [0], [1], [0, 0, 1, 1], [], []>} : vector<28x192xf32>, vector<192x256xf32>, vector<28x256xf32> -> vector<28x256xf32>
    %c968 = arith.constant 968 : index
    %c0_27 = arith.constant 0 : index
    %28 = vector.load %arg2[%c968, %c0_27] : memref<976x256xf32, #tpu.memory_space<vmem>>, vector<1x256xf32>
    %29 = vector.broadcast %28 : vector<1x256xf32> to vector<28x256xf32>
    %30 = arith.addf %27, %29 : vector<28x256xf32>
    %cst_28 = arith.constant 0.000000e+00 : f32
    %31 = vector.broadcast %cst_28 : f32 to vector<28x256xf32>
    %32 = arith.maximumf %30, %31 : vector<28x256xf32>
    %c1152 = arith.constant 1152 : index
    %c0_29 = arith.constant 0 : index
    %33 = vector.load %arg1[%c1152, %c0_29] : memref<1200x128xf32, #tpu.memory_space<vmem>>, vector<12x28xf32>
    %cst_30 = arith.constant dense<0.000000e+00> : vector<12x256xf32>
    %34 = tpu.matmul %33, %32, %cst_30 {dimension_numbers = #tpu.dot_dimension_numbers<[1], [0], [0], [1], [0, 0, 1, 1], [], []>} : vector<12x28xf32>, vector<28x256xf32>, vector<12x256xf32> -> vector<12x256xf32>
    %c1168 = arith.constant 1168 : index
    %c0_31 = arith.constant 0 : index
    %35 = vector.load %arg1[%c1168, %c0_31] : memref<1200x128xf32, #tpu.memory_space<vmem>>, vector<12x28xf32>
    %cst_32 = arith.constant dense<0.000000e+00> : vector<12x256xf32>
    %36 = tpu.matmul %35, %32, %cst_32 {dimension_numbers = #tpu.dot_dimension_numbers<[1], [0], [0], [1], [0, 0, 1, 1], [], []>} : vector<12x28xf32>, vector<28x256xf32>, vector<12x256xf32> -> vector<12x256xf32>
    %c1184 = arith.constant 1184 : index
    %c0_33 = arith.constant 0 : index
    %37 = vector.load %arg1[%c1184, %c0_33] : memref<1200x128xf32, #tpu.memory_space<vmem>>, vector<12x28xf32>
    %cst_34 = arith.constant dense<0.000000e+00> : vector<12x256xf32>
    %38 = tpu.matmul %37, %32, %cst_34 {dimension_numbers = #tpu.dot_dimension_numbers<[1], [0], [0], [1], [0, 0, 1, 1], [], []>} : vector<12x28xf32>, vector<28x256xf32>, vector<12x256xf32> -> vector<12x256xf32>
    %39 = tpu.concatenate %34, %36, %38 in 1 : vector<12x256xf32>, vector<12x256xf32>, vector<12x256xf32> -> vector<12x768xf32>
    %c0_35 = arith.constant 0 : index
    %c0_36 = arith.constant 0 : index
    %40 = vector.load %arg1[%c0_35, %c0_36] : memref<1200x128xf32, #tpu.memory_space<vmem>>, vector<768x128xf32>
    %cst_37 = arith.constant dense<0.000000e+00> : vector<12x128xf32>
    %41 = tpu.matmul %39, %40, %cst_37 {dimension_numbers = #tpu.dot_dimension_numbers<[1], [0], [0], [1], [0, 0, 1, 1], [], []>} : vector<12x768xf32>, vector<768x128xf32>, vector<12x128xf32> -> vector<12x128xf32>
    %c969 = arith.constant 969 : index
    %c0_38 = arith.constant 0 : index
    %42 = vector.load %arg2[%c969, %c0_38] : memref<976x256xf32, #tpu.memory_space<vmem>>, vector<1x128xf32>
    %43 = vector.broadcast %42 : vector<1x128xf32> to vector<12x128xf32>
    %44 = arith.addf %41, %43 : vector<12x128xf32>
    %cst_39 = arith.constant 0.000000e+00 : f32
    %45 = vector.broadcast %cst_39 : f32 to vector<12x128xf32>
    %46 = arith.maximumf %44, %45 : vector<12x128xf32>
    %47 = vector.extract_strided_slice %46 {offsets = [0, 0], sizes = [2, 128], strides = [1, 1]} : vector<12x128xf32> to vector<2x128xf32>
    %48 = vector.extract_strided_slice %46 {offsets = [2, 0], sizes = [2, 128], strides = [1, 1]} : vector<12x128xf32> to vector<2x128xf32>
    %49 = vector.extract_strided_slice %46 {offsets = [4, 0], sizes = [2, 128], strides = [1, 1]} : vector<12x128xf32> to vector<2x128xf32>
    %50 = vector.extract_strided_slice %46 {offsets = [6, 0], sizes = [2, 128], strides = [1, 1]} : vector<12x128xf32> to vector<2x128xf32>
    %51 = vector.extract_strided_slice %46 {offsets = [8, 0], sizes = [2, 128], strides = [1, 1]} : vector<12x128xf32> to vector<2x128xf32>
    %52 = vector.extract_strided_slice %46 {offsets = [10, 0], sizes = [2, 128], strides = [1, 1]} : vector<12x128xf32> to vector<2x128xf32>
    %53 = tpu.concatenate %47, %48, %49, %50, %51, %52 in 1 : vector<2x128xf32>, vector<2x128xf32>, vector<2x128xf32>, vector<2x128xf32>, vector<2x128xf32>, vector<2x128xf32> -> vector<2x768xf32>
    %c192 = arith.constant 192 : index
    %c0_40 = arith.constant 0 : index
    %54 = vector.load %arg2[%c192, %c0_40] : memref<976x256xf32, #tpu.memory_space<vmem>>, vector<768x256xf32>
    %cst_41 = arith.constant dense<0.000000e+00> : vector<2x256xf32>
    %55 = tpu.matmul %53, %54, %cst_41 {dimension_numbers = #tpu.dot_dimension_numbers<[1], [0], [0], [1], [0, 0, 1, 1], [], []>} : vector<2x768xf32>, vector<768x256xf32>, vector<2x256xf32> -> vector<2x256xf32>
    %c970 = arith.constant 970 : index
    %c0_42 = arith.constant 0 : index
    %56 = vector.load %arg2[%c970, %c0_42] : memref<976x256xf32, #tpu.memory_space<vmem>>, vector<1x256xf32>
    %57 = vector.broadcast %56 : vector<1x256xf32> to vector<2x256xf32>
    %58 = arith.addf %55, %57 : vector<2x256xf32>
    %cst_43 = arith.constant 0.000000e+00 : f32
    %59 = vector.broadcast %cst_43 : f32 to vector<2x256xf32>
    %60 = arith.maximumf %58, %59 : vector<2x256xf32>
    %c960_44 = arith.constant 960 : index
    %c0_45 = arith.constant 0 : index
    %61 = vector.load %arg2[%c960_44, %c0_45] : memref<976x256xf32, #tpu.memory_space<vmem>>, vector<8x256xf32>
    %cst_46 = arith.constant dense<0.000000e+00> : vector<2x8xf32>
    %62 = tpu.matmul %60, %61, %cst_46 {dimension_numbers = #tpu.dot_dimension_numbers<[1], [1], [0], [0], [0, 0, 1, 0], [], []>} : vector<2x256xf32>, vector<8x256xf32>, vector<2x8xf32> -> vector<2x8xf32>
    %c971 = arith.constant 971 : index
    %c0_47 = arith.constant 0 : index
    %63 = vector.load %arg2[%c971, %c0_47] : memref<976x256xf32, #tpu.memory_space<vmem>>, vector<1x8xf32>
    %64 = vector.broadcast %63 : vector<1x8xf32> to vector<2x8xf32>
    %65 = arith.addf %62, %64 : vector<2x8xf32>
    %66 = vector.extract_strided_slice %65 {offsets = [0, 0], sizes = [2, 1], strides = [1, 1]} : vector<2x8xf32> to vector<2x1xf32>
    %c0_48 = arith.constant 0 : index
    %c0_49 = arith.constant 0 : index
    %67 = vector.load %arg3[%c0_48, %c0_49] : memref<2x1xf32, #tpu.memory_space<vmem>>, vector<2x1xf32>
    tpu.vector_store %arg3[%c0_48, %c0_49], %66 {strides = array<i32>} : memref<2x1xf32, #tpu.memory_space<vmem>>, vector<2x1xf32>,
    %68 = vector.extract_strided_slice %65 {offsets = [0, 1], sizes = [2, 6], strides = [1, 1]} : vector<2x8xf32> to vector<2x6xf32>
    %c0_50 = arith.constant 0 : index
    %c0_51 = arith.constant 0 : index
    %69 = vector.load %arg4[%c0_50, %c0_51] : memref<2x6xf32, #tpu.memory_space<vmem>>, vector<2x6xf32>
    tpu.vector_store %arg4[%c0_50, %c0_51], %68 {strides = array<i32>} : memref<2x6xf32, #tpu.memory_space<vmem>>, vector<2x6xf32>,
    return
  }
}

module attributes {stable_mosaic.version = 11 : i64} {
  func.func @kernel(%arg0: memref<128x16xf32, #tpu.memory_space<vmem>>, %arg1: memref<1200x128xf32, #tpu.memory_space<vmem>>, %arg2: memref<976x256xf32, #tpu.memory_space<vmem>>, %arg3: memref<2x1xf32, #tpu.memory_space<vmem>>, %arg4: memref<2x6xf32, #tpu.memory_space<vmem>>) attributes {dimension_semantics = [], scalar_prefetch = 0 : i64, scratch_operands = 0 : i64, tpu.core_type = #tpu.core_type<tc>} {
    %c0 = arith.constant 0 : index
    %c0_0 = arith.constant 0 : index
    %0 = vector.load %arg0[%c0, %c0_0] : memref<128x16xf32, #tpu.memory_space<vmem>>, vector<128x16xf32>
    %c768 = arith.constant 768 : index
    %c0_1 = arith.constant 0 : index
    %1 = vector.load %arg1[%c768, %c0_1] : memref<1200x128xf32, #tpu.memory_space<vmem>>, vector<28x128xf32>
    %cst = arith.constant dense<0.000000e+00> : vector<28x16xf32>
    %2 = tpu.matmul %1, %0, %cst {dimension_numbers = #tpu.dot_dimension_numbers<[1], [0], [0], [1], [0, 0, 1, 1], [], []>} : vector<28x128xf32>, vector<128x16xf32>, vector<28x16xf32> -> vector<28x16xf32>
    %c800 = arith.constant 800 : index
    %c0_2 = arith.constant 0 : index
    %3 = vector.load %arg1[%c800, %c0_2] : memref<1200x128xf32, #tpu.memory_space<vmem>>, vector<28x128xf32>
    %cst_3 = arith.constant dense<0.000000e+00> : vector<28x16xf32>
    %4 = tpu.matmul %3, %0, %cst_3 {dimension_numbers = #tpu.dot_dimension_numbers<[1], [0], [0], [1], [0, 0, 1, 1], [], []>} : vector<28x128xf32>, vector<128x16xf32>, vector<28x16xf32> -> vector<28x16xf32>
    %c832 = arith.constant 832 : index
    %c0_4 = arith.constant 0 : index
    %5 = vector.load %arg1[%c832, %c0_4] : memref<1200x128xf32, #tpu.memory_space<vmem>>, vector<28x128xf32>
    %cst_5 = arith.constant dense<0.000000e+00> : vector<28x16xf32>
    %6 = tpu.matmul %5, %0, %cst_5 {dimension_numbers = #tpu.dot_dimension_numbers<[1], [0], [0], [1], [0, 0, 1, 1], [], []>} : vector<28x128xf32>, vector<128x16xf32>, vector<28x16xf32> -> vector<28x16xf32>
    %c864 = arith.constant 864 : index
    %c0_6 = arith.constant 0 : index
    %7 = vector.load %arg1[%c864, %c0_6] : memref<1200x128xf32, #tpu.memory_space<vmem>>, vector<28x128xf32>
    %cst_7 = arith.constant dense<0.000000e+00> : vector<28x16xf32>
    %8 = tpu.matmul %7, %0, %cst_7 {dimension_numbers = #tpu.dot_dimension_numbers<[1], [0], [0], [1], [0, 0, 1, 1], [], []>} : vector<28x128xf32>, vector<128x16xf32>, vector<28x16xf32> -> vector<28x16xf32>
    %c896 = arith.constant 896 : index
    %c0_8 = arith.constant 0 : index
    %9 = vector.load %arg1[%c896, %c0_8] : memref<1200x128xf32, #tpu.memory_space<vmem>>, vector<28x128xf32>
    %cst_9 = arith.constant dense<0.000000e+00> : vector<28x16xf32>
    %10 = tpu.matmul %9, %0, %cst_9 {dimension_numbers = #tpu.dot_dimension_numbers<[1], [0], [0], [1], [0, 0, 1, 1], [], []>} : vector<28x128xf32>, vector<128x16xf32>, vector<28x16xf32> -> vector<28x16xf32>
    %c928 = arith.constant 928 : index
    %c0_10 = arith.constant 0 : index
    %11 = vector.load %arg1[%c928, %c0_10] : memref<1200x128xf32, #tpu.memory_space<vmem>>, vector<28x128xf32>
    %cst_11 = arith.constant dense<0.000000e+00> : vector<28x16xf32>
    %12 = tpu.matmul %11, %0, %cst_11 {dimension_numbers = #tpu.dot_dimension_numbers<[1], [0], [0], [1], [0, 0, 1, 1], [], []>} : vector<28x128xf32>, vector<128x16xf32>, vector<28x16xf32> -> vector<28x16xf32>
    %c960 = arith.constant 960 : index
    %c0_12 = arith.constant 0 : index
    %13 = vector.load %arg1[%c960, %c0_12] : memref<1200x128xf32, #tpu.memory_space<vmem>>, vector<28x128xf32>
    %cst_13 = arith.constant dense<0.000000e+00> : vector<28x16xf32>
    %14 = tpu.matmul %13, %0, %cst_13 {dimension_numbers = #tpu.dot_dimension_numbers<[1], [0], [0], [1], [0, 0, 1, 1], [], []>} : vector<28x128xf32>, vector<128x16xf32>, vector<28x16xf32> -> vector<28x16xf32>
    %c992 = arith.constant 992 : index
    %c0_14 = arith.constant 0 : index
    %15 = vector.load %arg1[%c992, %c0_14] : memref<1200x128xf32, #tpu.memory_space<vmem>>, vector<28x128xf32>
    %cst_15 = arith.constant dense<0.000000e+00> : vector<28x16xf32>
    %16 = tpu.matmul %15, %0, %cst_15 {dimension_numbers = #tpu.dot_dimension_numbers<[1], [0], [0], [1], [0, 0, 1, 1], [], []>} : vector<28x128xf32>, vector<128x16xf32>, vector<28x16xf32> -> vector<28x16xf32>
    %c1024 = arith.constant 1024 : index
    %c0_16 = arith.constant 0 : index
    %17 = vector.load %arg1[%c1024, %c0_16] : memref<1200x128xf32, #tpu.memory_space<vmem>>, vector<28x128xf32>
    %cst_17 = arith.constant dense<0.000000e+00> : vector<28x16xf32>
    %18 = tpu.matmul %17, %0, %cst_17 {dimension_numbers = #tpu.dot_dimension_numbers<[1], [0], [0], [1], [0, 0, 1, 1], [], []>} : vector<28x128xf32>, vector<128x16xf32>, vector<28x16xf32> -> vector<28x16xf32>
    %c1056 = arith.constant 1056 : index
    %c0_18 = arith.constant 0 : index
    %19 = vector.load %arg1[%c1056, %c0_18] : memref<1200x128xf32, #tpu.memory_space<vmem>>, vector<28x128xf32>
    %cst_19 = arith.constant dense<0.000000e+00> : vector<28x16xf32>
    %20 = tpu.matmul %19, %0, %cst_19 {dimension_numbers = #tpu.dot_dimension_numbers<[1], [0], [0], [1], [0, 0, 1, 1], [], []>} : vector<28x128xf32>, vector<128x16xf32>, vector<28x16xf32> -> vector<28x16xf32>
    %c1088 = arith.constant 1088 : index
    %c0_20 = arith.constant 0 : index
    %21 = vector.load %arg1[%c1088, %c0_20] : memref<1200x128xf32, #tpu.memory_space<vmem>>, vector<28x128xf32>
    %cst_21 = arith.constant dense<0.000000e+00> : vector<28x16xf32>
    %22 = tpu.matmul %21, %0, %cst_21 {dimension_numbers = #tpu.dot_dimension_numbers<[1], [0], [0], [1], [0, 0, 1, 1], [], []>} : vector<28x128xf32>, vector<128x16xf32>, vector<28x16xf32> -> vector<28x16xf32>
    %c1120 = arith.constant 1120 : index
    %c0_22 = arith.constant 0 : index
    %23 = vector.load %arg1[%c1120, %c0_22] : memref<1200x128xf32, #tpu.memory_space<vmem>>, vector<28x128xf32>
    %cst_23 = arith.constant dense<0.000000e+00> : vector<28x16xf32>
    %24 = tpu.matmul %23, %0, %cst_23 {dimension_numbers = #tpu.dot_dimension_numbers<[1], [0], [0], [1], [0, 0, 1, 1], [], []>} : vector<28x128xf32>, vector<128x16xf32>, vector<28x16xf32> -> vector<28x16xf32>
    %c0_24 = arith.constant 0 : index
    %c0_25 = arith.constant 0 : index
    %25 = vector.load %arg2[%c0_24, %c0_25] : memref<976x256xf32, #tpu.memory_space<vmem>>, vector<16x256xf32>
    %cst_26 = arith.constant dense<0.000000e+00> : vector<28x256xf32>
    %26 = tpu.matmul %2, %25, %cst_26 {dimension_numbers = #tpu.dot_dimension_numbers<[1], [0], [0], [1], [0, 0, 1, 1], [], []>} : vector<28x16xf32>, vector<16x256xf32>, vector<28x256xf32> -> vector<28x256xf32>
    %c16 = arith.constant 16 : index
    %c0_27 = arith.constant 0 : index
    %27 = vector.load %arg2[%c16, %c0_27] : memref<976x256xf32, #tpu.memory_space<vmem>>, vector<16x256xf32>
    %cst_28 = arith.constant dense<0.000000e+00> : vector<28x256xf32>
    %28 = tpu.matmul %4, %27, %cst_28 {dimension_numbers = #tpu.dot_dimension_numbers<[1], [0], [0], [1], [0, 0, 1, 1], [], []>} : vector<28x16xf32>, vector<16x256xf32>, vector<28x256xf32> -> vector<28x256xf32>
    %c32 = arith.constant 32 : index
    %c0_29 = arith.constant 0 : index
    %29 = vector.load %arg2[%c32, %c0_29] : memref<976x256xf32, #tpu.memory_space<vmem>>, vector<16x256xf32>
    %cst_30 = arith.constant dense<0.000000e+00> : vector<28x256xf32>
    %30 = tpu.matmul %6, %29, %cst_30 {dimension_numbers = #tpu.dot_dimension_numbers<[1], [0], [0], [1], [0, 0, 1, 1], [], []>} : vector<28x16xf32>, vector<16x256xf32>, vector<28x256xf32> -> vector<28x256xf32>
    %c48 = arith.constant 48 : index
    %c0_31 = arith.constant 0 : index
    %31 = vector.load %arg2[%c48, %c0_31] : memref<976x256xf32, #tpu.memory_space<vmem>>, vector<16x256xf32>
    %cst_32 = arith.constant dense<0.000000e+00> : vector<28x256xf32>
    %32 = tpu.matmul %8, %31, %cst_32 {dimension_numbers = #tpu.dot_dimension_numbers<[1], [0], [0], [1], [0, 0, 1, 1], [], []>} : vector<28x16xf32>, vector<16x256xf32>, vector<28x256xf32> -> vector<28x256xf32>
    %c64 = arith.constant 64 : index
    %c0_33 = arith.constant 0 : index
    %33 = vector.load %arg2[%c64, %c0_33] : memref<976x256xf32, #tpu.memory_space<vmem>>, vector<16x256xf32>
    %cst_34 = arith.constant dense<0.000000e+00> : vector<28x256xf32>
    %34 = tpu.matmul %10, %33, %cst_34 {dimension_numbers = #tpu.dot_dimension_numbers<[1], [0], [0], [1], [0, 0, 1, 1], [], []>} : vector<28x16xf32>, vector<16x256xf32>, vector<28x256xf32> -> vector<28x256xf32>
    %c80 = arith.constant 80 : index
    %c0_35 = arith.constant 0 : index
    %35 = vector.load %arg2[%c80, %c0_35] : memref<976x256xf32, #tpu.memory_space<vmem>>, vector<16x256xf32>
    %cst_36 = arith.constant dense<0.000000e+00> : vector<28x256xf32>
    %36 = tpu.matmul %12, %35, %cst_36 {dimension_numbers = #tpu.dot_dimension_numbers<[1], [0], [0], [1], [0, 0, 1, 1], [], []>} : vector<28x16xf32>, vector<16x256xf32>, vector<28x256xf32> -> vector<28x256xf32>
    %c96 = arith.constant 96 : index
    %c0_37 = arith.constant 0 : index
    %37 = vector.load %arg2[%c96, %c0_37] : memref<976x256xf32, #tpu.memory_space<vmem>>, vector<16x256xf32>
    %cst_38 = arith.constant dense<0.000000e+00> : vector<28x256xf32>
    %38 = tpu.matmul %14, %37, %cst_38 {dimension_numbers = #tpu.dot_dimension_numbers<[1], [0], [0], [1], [0, 0, 1, 1], [], []>} : vector<28x16xf32>, vector<16x256xf32>, vector<28x256xf32> -> vector<28x256xf32>
    %c112 = arith.constant 112 : index
    %c0_39 = arith.constant 0 : index
    %39 = vector.load %arg2[%c112, %c0_39] : memref<976x256xf32, #tpu.memory_space<vmem>>, vector<16x256xf32>
    %cst_40 = arith.constant dense<0.000000e+00> : vector<28x256xf32>
    %40 = tpu.matmul %16, %39, %cst_40 {dimension_numbers = #tpu.dot_dimension_numbers<[1], [0], [0], [1], [0, 0, 1, 1], [], []>} : vector<28x16xf32>, vector<16x256xf32>, vector<28x256xf32> -> vector<28x256xf32>
    %c128 = arith.constant 128 : index
    %c0_41 = arith.constant 0 : index
    %41 = vector.load %arg2[%c128, %c0_41] : memref<976x256xf32, #tpu.memory_space<vmem>>, vector<16x256xf32>
    %cst_42 = arith.constant dense<0.000000e+00> : vector<28x256xf32>
    %42 = tpu.matmul %18, %41, %cst_42 {dimension_numbers = #tpu.dot_dimension_numbers<[1], [0], [0], [1], [0, 0, 1, 1], [], []>} : vector<28x16xf32>, vector<16x256xf32>, vector<28x256xf32> -> vector<28x256xf32>
    %c144 = arith.constant 144 : index
    %c0_43 = arith.constant 0 : index
    %43 = vector.load %arg2[%c144, %c0_43] : memref<976x256xf32, #tpu.memory_space<vmem>>, vector<16x256xf32>
    %cst_44 = arith.constant dense<0.000000e+00> : vector<28x256xf32>
    %44 = tpu.matmul %20, %43, %cst_44 {dimension_numbers = #tpu.dot_dimension_numbers<[1], [0], [0], [1], [0, 0, 1, 1], [], []>} : vector<28x16xf32>, vector<16x256xf32>, vector<28x256xf32> -> vector<28x256xf32>
    %c160 = arith.constant 160 : index
    %c0_45 = arith.constant 0 : index
    %45 = vector.load %arg2[%c160, %c0_45] : memref<976x256xf32, #tpu.memory_space<vmem>>, vector<16x256xf32>
    %cst_46 = arith.constant dense<0.000000e+00> : vector<28x256xf32>
    %46 = tpu.matmul %22, %45, %cst_46 {dimension_numbers = #tpu.dot_dimension_numbers<[1], [0], [0], [1], [0, 0, 1, 1], [], []>} : vector<28x16xf32>, vector<16x256xf32>, vector<28x256xf32> -> vector<28x256xf32>
    %c176 = arith.constant 176 : index
    %c0_47 = arith.constant 0 : index
    %47 = vector.load %arg2[%c176, %c0_47] : memref<976x256xf32, #tpu.memory_space<vmem>>, vector<16x256xf32>
    %cst_48 = arith.constant dense<0.000000e+00> : vector<28x256xf32>
    %48 = tpu.matmul %24, %47, %cst_48 {dimension_numbers = #tpu.dot_dimension_numbers<[1], [0], [0], [1], [0, 0, 1, 1], [], []>} : vector<28x16xf32>, vector<16x256xf32>, vector<28x256xf32> -> vector<28x256xf32>
    %49 = arith.addf %26, %28 : vector<28x256xf32>
    %50 = arith.addf %30, %32 : vector<28x256xf32>
    %51 = arith.addf %34, %36 : vector<28x256xf32>
    %52 = arith.addf %38, %40 : vector<28x256xf32>
    %53 = arith.addf %42, %44 : vector<28x256xf32>
    %54 = arith.addf %46, %48 : vector<28x256xf32>
    %55 = arith.addf %49, %50 : vector<28x256xf32>
    %56 = arith.addf %51, %52 : vector<28x256xf32>
    %57 = arith.addf %53, %54 : vector<28x256xf32>
    %58 = arith.addf %55, %56 : vector<28x256xf32>
    %59 = arith.addf %58, %57 : vector<28x256xf32>
    %c968 = arith.constant 968 : index
    %c0_49 = arith.constant 0 : index
    %60 = vector.load %arg2[%c968, %c0_49] : memref<976x256xf32, #tpu.memory_space<vmem>>, vector<1x256xf32>
    %61 = vector.broadcast %60 : vector<1x256xf32> to vector<28x256xf32>
    %62 = arith.addf %59, %61 : vector<28x256xf32>
    %cst_50 = arith.constant 0.000000e+00 : f32
    %63 = vector.broadcast %cst_50 : f32 to vector<28x256xf32>
    %64 = arith.maximumf %62, %63 : vector<28x256xf32>
    %c1152 = arith.constant 1152 : index
    %c0_51 = arith.constant 0 : index
    %65 = vector.load %arg1[%c1152, %c0_51] : memref<1200x128xf32, #tpu.memory_space<vmem>>, vector<12x28xf32>
    %cst_52 = arith.constant dense<0.000000e+00> : vector<12x256xf32>
    %66 = tpu.matmul %65, %64, %cst_52 {dimension_numbers = #tpu.dot_dimension_numbers<[1], [0], [0], [1], [0, 0, 1, 1], [], []>} : vector<12x28xf32>, vector<28x256xf32>, vector<12x256xf32> -> vector<12x256xf32>
    %c1168 = arith.constant 1168 : index
    %c0_53 = arith.constant 0 : index
    %67 = vector.load %arg1[%c1168, %c0_53] : memref<1200x128xf32, #tpu.memory_space<vmem>>, vector<12x28xf32>
    %cst_54 = arith.constant dense<0.000000e+00> : vector<12x256xf32>
    %68 = tpu.matmul %67, %64, %cst_54 {dimension_numbers = #tpu.dot_dimension_numbers<[1], [0], [0], [1], [0, 0, 1, 1], [], []>} : vector<12x28xf32>, vector<28x256xf32>, vector<12x256xf32> -> vector<12x256xf32>
    %c1184 = arith.constant 1184 : index
    %c0_55 = arith.constant 0 : index
    %69 = vector.load %arg1[%c1184, %c0_55] : memref<1200x128xf32, #tpu.memory_space<vmem>>, vector<12x28xf32>
    %cst_56 = arith.constant dense<0.000000e+00> : vector<12x256xf32>
    %70 = tpu.matmul %69, %64, %cst_56 {dimension_numbers = #tpu.dot_dimension_numbers<[1], [0], [0], [1], [0, 0, 1, 1], [], []>} : vector<12x28xf32>, vector<28x256xf32>, vector<12x256xf32> -> vector<12x256xf32>
    %71 = tpu.concatenate %66, %68, %70 in 1 : vector<12x256xf32>, vector<12x256xf32>, vector<12x256xf32> -> vector<12x768xf32>
    %c0_57 = arith.constant 0 : index
    %c0_58 = arith.constant 0 : index
    %72 = vector.load %arg1[%c0_57, %c0_58] : memref<1200x128xf32, #tpu.memory_space<vmem>>, vector<768x128xf32>
    %cst_59 = arith.constant dense<0.000000e+00> : vector<12x128xf32>
    %73 = tpu.matmul %71, %72, %cst_59 {dimension_numbers = #tpu.dot_dimension_numbers<[1], [0], [0], [1], [0, 0, 1, 1], [], []>} : vector<12x768xf32>, vector<768x128xf32>, vector<12x128xf32> -> vector<12x128xf32>
    %c969 = arith.constant 969 : index
    %c0_60 = arith.constant 0 : index
    %74 = vector.load %arg2[%c969, %c0_60] : memref<976x256xf32, #tpu.memory_space<vmem>>, vector<1x128xf32>
    %75 = vector.broadcast %74 : vector<1x128xf32> to vector<12x128xf32>
    %76 = arith.addf %73, %75 : vector<12x128xf32>
    %cst_61 = arith.constant 0.000000e+00 : f32
    %77 = vector.broadcast %cst_61 : f32 to vector<12x128xf32>
    %78 = arith.maximumf %76, %77 : vector<12x128xf32>
    %79 = vector.extract_strided_slice %78 {offsets = [0, 0], sizes = [2, 128], strides = [1, 1]} : vector<12x128xf32> to vector<2x128xf32>
    %80 = vector.extract_strided_slice %78 {offsets = [2, 0], sizes = [2, 128], strides = [1, 1]} : vector<12x128xf32> to vector<2x128xf32>
    %81 = vector.extract_strided_slice %78 {offsets = [4, 0], sizes = [2, 128], strides = [1, 1]} : vector<12x128xf32> to vector<2x128xf32>
    %82 = vector.extract_strided_slice %78 {offsets = [6, 0], sizes = [2, 128], strides = [1, 1]} : vector<12x128xf32> to vector<2x128xf32>
    %83 = vector.extract_strided_slice %78 {offsets = [8, 0], sizes = [2, 128], strides = [1, 1]} : vector<12x128xf32> to vector<2x128xf32>
    %84 = vector.extract_strided_slice %78 {offsets = [10, 0], sizes = [2, 128], strides = [1, 1]} : vector<12x128xf32> to vector<2x128xf32>
    %85 = tpu.concatenate %79, %80, %81, %82, %83, %84 in 1 : vector<2x128xf32>, vector<2x128xf32>, vector<2x128xf32>, vector<2x128xf32>, vector<2x128xf32>, vector<2x128xf32> -> vector<2x768xf32>
    %c192 = arith.constant 192 : index
    %c0_62 = arith.constant 0 : index
    %86 = vector.load %arg2[%c192, %c0_62] : memref<976x256xf32, #tpu.memory_space<vmem>>, vector<768x256xf32>
    %cst_63 = arith.constant dense<0.000000e+00> : vector<2x256xf32>
    %87 = tpu.matmul %85, %86, %cst_63 {dimension_numbers = #tpu.dot_dimension_numbers<[1], [0], [0], [1], [0, 0, 1, 1], [], []>} : vector<2x768xf32>, vector<768x256xf32>, vector<2x256xf32> -> vector<2x256xf32>
    %c970 = arith.constant 970 : index
    %c0_64 = arith.constant 0 : index
    %88 = vector.load %arg2[%c970, %c0_64] : memref<976x256xf32, #tpu.memory_space<vmem>>, vector<1x256xf32>
    %89 = vector.broadcast %88 : vector<1x256xf32> to vector<2x256xf32>
    %90 = arith.addf %87, %89 : vector<2x256xf32>
    %cst_65 = arith.constant 0.000000e+00 : f32
    %91 = vector.broadcast %cst_65 : f32 to vector<2x256xf32>
    %92 = arith.maximumf %90, %91 : vector<2x256xf32>
    %c960_66 = arith.constant 960 : index
    %c0_67 = arith.constant 0 : index
    %93 = vector.load %arg2[%c960_66, %c0_67] : memref<976x256xf32, #tpu.memory_space<vmem>>, vector<8x256xf32>
    %cst_68 = arith.constant dense<0.000000e+00> : vector<2x8xf32>
    %94 = tpu.matmul %92, %93, %cst_68 {dimension_numbers = #tpu.dot_dimension_numbers<[1], [1], [0], [0], [0, 0, 1, 0], [], []>} : vector<2x256xf32>, vector<8x256xf32>, vector<2x8xf32> -> vector<2x8xf32>
    %c971 = arith.constant 971 : index
    %c0_69 = arith.constant 0 : index
    %95 = vector.load %arg2[%c971, %c0_69] : memref<976x256xf32, #tpu.memory_space<vmem>>, vector<1x8xf32>
    %96 = vector.broadcast %95 : vector<1x8xf32> to vector<2x8xf32>
    %97 = arith.addf %94, %96 : vector<2x8xf32>
    %98 = vector.extract_strided_slice %97 {offsets = [0, 0], sizes = [2, 1], strides = [1, 1]} : vector<2x8xf32> to vector<2x1xf32>
    %c0_70 = arith.constant 0 : index
    %c0_71 = arith.constant 0 : index
    %99 = vector.load %arg3[%c0_70, %c0_71] : memref<2x1xf32, #tpu.memory_space<vmem>>, vector<2x1xf32>
    tpu.vector_store %arg3[%c0_70, %c0_71], %98 {strides = array<i32>} : memref<2x1xf32, #tpu.memory_space<vmem>>, vector<2x1xf32>,
    %100 = vector.extract_strided_slice %97 {offsets = [0, 1], sizes = [2, 6], strides = [1, 1]} : vector<2x8xf32> to vector<2x6xf32>
    %c0_72 = arith.constant 0 : index
    %c0_73 = arith.constant 0 : index
    %101 = vector.load %arg4[%c0_72, %c0_73] : memref<2x6xf32, #tpu.memory_space<vmem>>, vector<2x6xf32>
    tpu.vector_store %arg4[%c0_72, %c0_73], %100 {strides = array<i32>} : memref<2x6xf32, #tpu.memory_space<vmem>>, vector<2x6xf32>,
    return
  }
}

</mosaic_0001>

<llo_original>
// kernel: forward.1
$region0: #{forward.1}
  #allocation0 [shape = 'u32[]', space=smem, size = 0x4, offset = 0x4, fixed_abs, tag = 'smem constant byte address 0x4 - core index']
  #allocation1 [shape = 'u32[72,128]{1,0:T(1,128)}', space=vmem, size = 0x9000, scoped, tag = 'internal scratch']
  %s0 = inlined_call_operand.hbm [shape: f32[128,16], index: 0, kind: input, shape index: {}]
  %s1 = inlined_call_operand.hbm [shape: f32[1200,128], index: 1, kind: input, shape index: {}]
  %s2 = inlined_call_operand.hbm [shape: f32[976,256], index: 2, kind: input, shape index: {}]
  %s3 = inlined_call_operand.vmem [shape: f32[2,1], index: 3, kind: output, shape index: {0}]
  %s4 = inlined_call_operand.hbm [shape: f32[2,6], index: 4, kind: output, shape index: {1}]
  %5 = xla_tuple %s3, %s4
  %s6 = sld [smem:[#allocation0]]
  $region42: #{forward.1} parent=0
    _
  %s8 = ssub.s32 1, %s6
  %s9 = scalar_select 0, %s8, %s6
  $region1: #{forward.1} parent=0
    #allocation2 [shape = 'u8[65536]{0}', space=vmem, size = 0x10000, scoped, tag = 'input window, operand 0, single buffered']
    #allocation3 [shape = 's32[1]{0}', space=sflag, size = 0x4, scoped, tag = 'scoped memory for forward.1']
    #allocation4 [shape = 's32[1]{0}', space=sflag, size = 0x4, scoped, tag = 'scoped memory for forward.1']
    #allocation5 [shape = 'u8[614400]{0}', space=vmem, size = 0x96000, scoped, tag = 'input window, operand 1, single buffered']
    #allocation6 [shape = 's32[1]{0}', space=sflag, size = 0x4, scoped, tag = 'scoped memory for forward.1']
    #allocation7 [shape = 'u8[999424]{0}', space=vmem, size = 0xf4000, scoped, tag = 'input window, operand 2, single buffered']
    #allocation8 [shape = 'u8[1024]{0}', space=vmem, size = 0x400, scoped, tag = 'output window, operand 1, single buffered']
    %10 = vsyncpa [#allocation3], 0
    %11 = vsyncpa [#allocation6], 0
    %12 = vsyncpa [#allocation4], 0
    // Predicated region
    $region2: #{forward.1} parent=1 // pred_check
      _
    $region3: #{forward.1} parent=1 // pred_check_branch
      %14 = sbr.rel (0) target = $region5
    $region4: #{forward.1} parent=1 // pred_region
      %16 = vsyncadd [#allocation3], 0
      %s17 = sshll.u32 %s0, 4
      %s18 = int_to_ptr.hbm [resolvable:$true] %s17
      %s19 = sshll.u32 [#allocation2], 4
      %s20 = int_to_ptr.vmem [resolvable:$true] %s19
      %25 = dma.hbm_to_vmem [thread:$0]  %s18, 2048, %s20, [#allocation3], 128, 128, 8
    $region5: #{forward.1} parent=1 // pred_fallthru
      _
    // Predicated region
    $region6: #{forward.1} parent=1 // pred_check
      _
    $region7: #{forward.1} parent=1 // pred_check_branch
      %27 = sbr.rel (0) target = $region9
    $region8: #{forward.1} parent=1 // pred_region
      %29 = vsyncadd [#allocation6], 0
      %s30 = sshll.u32 %s1, 4
      %s31 = int_to_ptr.hbm [resolvable:$true] %s30
      %s32 = sshll.u32 [#allocation5], 4
      %s33 = int_to_ptr.vmem [resolvable:$true] %s32
      %38 = dma.hbm_to_vmem [thread:$0]  %s31, 19200, %s33, [#allocation6], 128, 128, 8
    $region9: #{forward.1} parent=1 // pred_fallthru
      _
    // Predicated region
    $region10: #{forward.1} parent=1 // pred_check
      _
    $region11: #{forward.1} parent=1 // pred_check_branch
      %40 = sbr.rel (0) target = $region13
    $region12: #{forward.1} parent=1 // pred_region
      %42 = vsyncadd [#allocation6], 0
      %s43 = sshll.u32 %s2, 4
      %s44 = int_to_ptr.hbm [resolvable:$true] %s43
      %s45 = sshll.u32 [#allocation7], 4
      %s46 = int_to_ptr.vmem [resolvable:$true] %s45
      %51 = dma.hbm_to_vmem [thread:$0]  %s44, 31232, %s46, [#allocation6], 256, 256, 16
    $region13: #{forward.1} parent=1 // pred_fallthru
      _
    // Predicated region
    $region14: #{forward.1} parent=1 // pred_check
      _
    $region15: #{forward.1} parent=1 // pred_check_branch
      %53 = sbr.rel (0) target = $region17
    $region16: #{forward.1} parent=1 // pred_region
      %55 = dma.done [#allocation3], 2048
    $region17: #{forward.1} parent=1 // pred_fallthru
      _
    // Predicated region
    $region18: #{forward.1} parent=1 // pred_check
      _
    $region19: #{forward.1} parent=1 // pred_check_branch
      %57 = sbr.rel (0) target = $region21
    $region20: #{forward.1} parent=1 // pred_region
      %59 = dma.done [#allocation6], 19200
    $region21: #{forward.1} parent=1 // pred_fallthru
      _
    // Predicated region
    $region22: #{forward.1} parent=1 // pred_check
      _
    $region23: #{forward.1} parent=1 // pred_check_branch
      %61 = sbr.rel (0) target = $region25
    $region24: #{forward.1} parent=1 // pred_region
      %63 = dma.done [#allocation6], 31232
    $region25: #{forward.1} parent=1 // pred_fallthru
      _
    %v64 = vld [vmem:[#allocation2] sm:$0xff]
    %v65 = vld [vmem:[#allocation2 + $0x8] sm:$0xff]
    %v66 = vld [vmem:[#allocation2 + $0x10] sm:$0xff]
    %v67 = vld [vmem:[#allocation2 + $0x18] sm:$0xff]
    %v68 = vld [vmem:[#allocation2 + $0x20] sm:$0xff]
    %v69 = vld [vmem:[#allocation2 + $0x28] sm:$0xff]
    %v70 = vld [vmem:[#allocation2 + $0x30] sm:$0xff]
    %v71 = vld [vmem:[#allocation2 + $0x38] sm:$0xff]
    %v72 = vld [vmem:[#allocation2 + $0x40] sm:$0xff]
    %v73 = vld [vmem:[#allocation2 + $0x48] sm:$0xff]
    %v74 = vld [vmem:[#allocation2 + $0x50] sm:$0xff]
    %v75 = vld [vmem:[#allocation2 + $0x58] sm:$0xff]
    %v76 = vld [vmem:[#allocation2 + $0x60] sm:$0xff]
    %v77 = vld [vmem:[#allocation2 + $0x68] sm:$0xff]
    %v78 = vld [vmem:[#allocation2 + $0x70] sm:$0xff]
    %v79 = vld [vmem:[#allocation2 + $0x78] sm:$0xff]
    %v80 = vld [vmem:[#allocation5 + $0x300] sm:$0xff]
    %v81 = vld [vmem:[#allocation5 + $0x308] sm:$0xff]
    %v82 = vld [vmem:[#allocation5 + $0x310] sm:$0xff]
    %v83 = vld [vmem:[#allocation5 + $0x318] sm:$0xf]
    %84 = vmatpush.msra.mxu0 %v79
    %85 = vmatpush.msra.mxu0 %v78
    %86 = vmatpush.msra.mxu0 %v77
    %87 = vmatpush.msra.mxu0 %v76
    %88 = vmatpush.msra.mxu0 %v75
    %89 = vmatpush.msra.mxu0 %v74
    %90 = vmatpush.msra.mxu0 %v73
    %91 = vmatpush.msra.mxu0 %v72
    %92 = vmatpush.msra.mxu0 %v71
    %93 = vmatpush.msra.mxu0 %v70
    %94 = vmatpush.msra.mxu0 %v69
    %95 = vmatpush.msra.mxu0 %v68
    %96 = vmatpush.msra.mxu0 %v67
    %97 = vmatpush.msra.mxu0 %v66
    %98 = vmatpush.msra.mxu0 %v65
    %99 = vmatpush.msra.mxu0 %v64
    %100 = vmatmul.f32.gmra.mxu0 %v80
    %v101 = vpop.f32.mrf.mxu0
    %v102 = vadd.f32 0.0, %v101
    %103 = vmatmul.f32.gmra.mxu0 %v81
    %v104 = vpop.f32.mrf.mxu0
    %v105 = vadd.f32 0.0, %v104
    %106 = vmatmul.f32.gmra.mxu0 %v82
    %v107 = vpop.f32.mrf.mxu0
    %v108 = vadd.f32 0.0, %v107
    %109 = vmatmul.f32.gmra.mxu0 %v83
    %v110 = vpop.f32.mrf.mxu0
    %v111 = vadd.f32 0.0, %v110
    %112 = vdwg.mxu0
    %v113 = vld [vmem:[#allocation5 + $0x320] sm:$0xff]
    %v114 = vld [vmem:[#allocation5 + $0x328] sm:$0xff]
    %v115 = vld [vmem:[#allocation5 + $0x330] sm:$0xff]
    %v116 = vld [vmem:[#allocation5 + $0x338] sm:$0xf]
    %117 = vmatpush.msra.mxu0 %v79
    %118 = vmatpush.msra.mxu0 %v78
    %119 = vmatpush.msra.mxu0 %v77
    %120 = vmatpush.msra.mxu0 %v76
    %121 = vmatpush.msra.mxu0 %v75
    %122 = vmatpush.msra.mxu0 %v74
    %123 = vmatpush.msra.mxu0 %v73
    %124 = vmatpush.msra.mxu0 %v72
    %125 = vmatpush.msra.mxu0 %v71
    %126 = vmatpush.msra.mxu0 %v70
    %127 = vmatpush.msra.mxu0 %v69
    %128 = vmatpush.msra.mxu0 %v68
    %129 = vmatpush.msra.mxu0 %v67
    %130 = vmatpush.msra.mxu0 %v66
    %131 = vmatpush.msra.mxu0 %v65
    %132 = vmatpush.msra.mxu0 %v64
    %133 = vmatmul.f32.gmra.mxu0 %v113
    %v134 = vpop.f32.mrf.mxu0
    %v135 = vadd.f32 0.0, %v134
    %136 = vmatmul.f32.gmra.mxu0 %v114
    %v137 = vpop.f32.mrf.mxu0
    %v138 = vadd.f32 0.0, %v137
    %139 = vmatmul.f32.gmra.mxu0 %v115
    %v140 = vpop.f32.mrf.mxu0
    %v141 = vadd.f32 0.0, %v140
    %142 = vmatmul.f32.gmra.mxu0 %v116
    %v143 = vpop.f32.mrf.mxu0
    %v144 = vadd.f32 0.0, %v143
    %145 = vdwg.mxu0
    %v146 = vld [vmem:[#allocation5 + $0x340] sm:$0xff]
    %v147 = vld [vmem:[#allocation5 + $0x348] sm:$0xff]
    %v148 = vld [vmem:[#allocation5 + $0x350] sm:$0xff]
    %v149 = vld [vmem:[#allocation5 + $0x358] sm:$0xf]
    %150 = vmatpush.msra.mxu0 %v79
    %151 = vmatpush.msra.mxu0 %v78
    %152 = vmatpush.msra.mxu0 %v77
    %153 = vmatpush.msra.mxu0 %v76
    %154 = vmatpush.msra.mxu0 %v75
    %155 = vmatpush.msra.mxu0 %v74
    %156 = vmatpush.msra.mxu0 %v73
    %157 = vmatpush.msra.mxu0 %v72
    %158 = vmatpush.msra.mxu0 %v71
    %159 = vmatpush.msra.mxu0 %v70
    %160 = vmatpush.msra.mxu0 %v69
    %161 = vmatpush.msra.mxu0 %v68
    %162 = vmatpush.msra.mxu0 %v67
    %163 = vmatpush.msra.mxu0 %v66
    %164 = vmatpush.msra.mxu0 %v65
    %165 = vmatpush.msra.mxu0 %v64
    %166 = vmatmul.f32.gmra.mxu0 %v146
    %v167 = vpop.f32.mrf.mxu0
    %v168 = vadd.f32 0.0, %v167
    %169 = vmatmul.f32.gmra.mxu0 %v147
    %v170 = vpop.f32.mrf.mxu0
    %v171 = vadd.f32 0.0, %v170
    %172 = vmatmul.f32.gmra.mxu0 %v148
    %v173 = vpop.f32.mrf.mxu0
    %v174 = vadd.f32 0.0, %v173
    %175 = vmatmul.f32.gmra.mxu0 %v149
    %v176 = vpop.f32.mrf.mxu0
    %v177 = vadd.f32 0.0, %v176
    %178 = vdwg.mxu0
    %v179 = vld [vmem:[#allocation5 + $0x360] sm:$0xff]
    %v180 = vld [vmem:[#allocation5 + $0x368] sm:$0xff]
    %v181 = vld [vmem:[#allocation5 + $0x370] sm:$0xff]
    %v182 = vld [vmem:[#allocation5 + $0x378] sm:$0xf]
    %183 = vmatpush.msra.mxu0 %v79
    %184 = vmatpush.msra.mxu0 %v78
    %185 = vmatpush.msra.mxu0 %v77
    %186 = vmatpush.msra.mxu0 %v76
    %187 = vmatpush.msra.mxu0 %v75
    %188 = vmatpush.msra.mxu0 %v74
    %189 = vmatpush.msra.mxu0 %v73
    %190 = vmatpush.msra.mxu0 %v72
    %191 = vmatpush.msra.mxu0 %v71
    %192 = vmatpush.msra.mxu0 %v70
    %193 = vmatpush.msra.mxu0 %v69
    %194 = vmatpush.msra.mxu0 %v68
    %195 = vmatpush.msra.mxu0 %v67
    %196 = vmatpush.msra.mxu0 %v66
    %197 = vmatpush.msra.mxu0 %v65
    %198 = vmatpush.msra.mxu0 %v64
    %199 = vmatmul.f32.gmra.mxu0 %v179
    %v200 = vpop.f32.mrf.mxu0
    %v201 = vadd.f32 0.0, %v200
    %202 = vmatmul.f32.gmra.mxu0 %v180
    %v203 = vpop.f32.mrf.mxu0
    %v204 = vadd.f32 0.0, %v203
    %205 = vmatmul.f32.gmra.mxu0 %v181
    %v206 = vpop.f32.mrf.mxu0
    %v207 = vadd.f32 0.0, %v206
    %208 = vmatmul.f32.gmra.mxu0 %v182
    %v209 = vpop.f32.mrf.mxu0
    %v210 = vadd.f32 0.0, %v209
    %211 = vdwg.mxu0
    %v212 = vld [vmem:[#allocation5 + $0x380] sm:$0xff]
    %v213 = vld [vmem:[#allocation5 + $0x388] sm:$0xff]
    %v214 = vld [vmem:[#allocation5 + $0x390] sm:$0xff]
    %v215 = vld [vmem:[#allocation5 + $0x398] sm:$0xf]
    %216 = vmatpush.msra.mxu0 %v79
    %217 = vmatpush.msra.mxu0 %v78
    %218 = vmatpush.msra.mxu0 %v77
    %219 = vmatpush.msra.mxu0 %v76
    %220 = vmatpush.msra.mxu0 %v75
    %221 = vmatpush.msra.mxu0 %v74
    %222 = vmatpush.msra.mxu0 %v73
    %223 = vmatpush.msra.mxu0 %v72
    %224 = vmatpush.msra.mxu0 %v71
    %225 = vmatpush.msra.mxu0 %v70
    %226 = vmatpush.msra.mxu0 %v69
    %227 = vmatpush.msra.mxu0 %v68
    %228 = vmatpush.msra.mxu0 %v67
    %229 = vmatpush.msra.mxu0 %v66
    %230 = vmatpush.msra.mxu0 %v65
    %231 = vmatpush.msra.mxu0 %v64
    %232 = vmatmul.f32.gmra.mxu0 %v212
    %v233 = vpop.f32.mrf.mxu0
    %v234 = vadd.f32 0.0, %v233
    %235 = vmatmul.f32.gmra.mxu0 %v213
    %v236 = vpop.f32.mrf.mxu0
    %v237 = vadd.f32 0.0, %v236
    %238 = vmatmul.f32.gmra.mxu0 %v214
    %v239 = vpop.f32.mrf.mxu0
    %v240 = vadd.f32 0.0, %v239
    %241 = vmatmul.f32.gmra.mxu0 %v215
    %v242 = vpop.f32.mrf.mxu0
    %v243 = vadd.f32 0.0, %v242
    %244 = vdwg.mxu0
    %v245 = vld [vmem:[#allocation5 + $0x3a0] sm:$0xff]
    %v246 = vld [vmem:[#allocation5 + $0x3a8] sm:$0xff]
    %v247 = vld [vmem:[#allocation5 + $0x3b0] sm:$0xff]
    %v248 = vld [vmem:[#allocation5 + $0x3b8] sm:$0xf]
    %249 = vmatpush.msra.mxu0 %v79
    %250 = vmatpush.msra.mxu0 %v78
    %251 = vmatpush.msra.mxu0 %v77
    %252 = vmatpush.msra.mxu0 %v76
    %253 = vmatpush.msra.mxu0 %v75
    %254 = vmatpush.msra.mxu0 %v74
    %255 = vmatpush.msra.mxu0 %v73
    %256 = vmatpush.msra.mxu0 %v72
    %257 = vmatpush.msra.mxu0 %v71
    %258 = vmatpush.msra.mxu0 %v70
    %259 = vmatpush.msra.mxu0 %v69
    %260 = vmatpush.msra.mxu0 %v68
    %261 = vmatpush.msra.mxu0 %v67
    %262 = vmatpush.msra.mxu0 %v66
    %263 = vmatpush.msra.mxu0 %v65
    %264 = vmatpush.msra.mxu0 %v64
    %265 = vmatmul.f32.gmra.mxu0 %v245
    %v266 = vpop.f32.mrf.mxu0
    %v267 = vadd.f32 0.0, %v266
    %268 = vmatmul.f32.gmra.mxu0 %v246
    %v269 = vpop.f32.mrf.mxu0
    %v270 = vadd.f32 0.0, %v269
    %271 = vmatmul.f32.gmra.mxu0 %v247
    %v272 = vpop.f32.mrf.mxu0
    %v273 = vadd.f32 0.0, %v272
    %274 = vmatmul.f32.gmra.mxu0 %v248
    %v275 = vpop.f32.mrf.mxu0
    %v276 = vadd.f32 0.0, %v275
    %277 = vdwg.mxu0
    %v278 = vld [vmem:[#allocation5 + $0x3c0] sm:$0xff]
    %v279 = vld [vmem:[#allocation5 + $0x3c8] sm:$0xff]
    %v280 = vld [vmem:[#allocation5 + $0x3d0] sm:$0xff]
    %v281 = vld [vmem:[#allocation5 + $0x3d8] sm:$0xf]
    %282 = vmatpush.msra.mxu0 %v79
    %283 = vmatpush.msra.mxu0 %v78
    %284 = vmatpush.msra.mxu0 %v77
    %285 = vmatpush.msra.mxu0 %v76
    %286 = vmatpush.msra.mxu0 %v75
    %287 = vmatpush.msra.mxu0 %v74
    %288 = vmatpush.msra.mxu0 %v73
    %289 = vmatpush.msra.mxu0 %v72
    %290 = vmatpush.msra.mxu0 %v71
    %291 = vmatpush.msra.mxu0 %v70
    %292 = vmatpush.msra.mxu0 %v69
    %293 = vmatpush.msra.mxu0 %v68
    %294 = vmatpush.msra.mxu0 %v67
    %295 = vmatpush.msra.mxu0 %v66
    %296 = vmatpush.msra.mxu0 %v65
    %297 = vmatpush.msra.mxu0 %v64
    %298 = vmatmul.f32.gmra.mxu0 %v278
    %v299 = vpop.f32.mrf.mxu0
    %v300 = vadd.f32 0.0, %v299
    %301 = vmatmul.f32.gmra.mxu0 %v279
    %v302 = vpop.f32.mrf.mxu0
    %v303 = vadd.f32 0.0, %v302
    %304 = vmatmul.f32.gmra.mxu0 %v280
    %v305 = vpop.f32.mrf.mxu0
    %v306 = vadd.f32 0.0, %v305
    %307 = vmatmul.f32.gmra.mxu0 %v281
    %v308 = vpop.f32.mrf.mxu0
    %v309 = vadd.f32 0.0, %v308
    %310 = vdwg.mxu0
    %v311 = vld [vmem:[#allocation5 + $0x3e0] sm:$0xff]
    %v312 = vld [vmem:[#allocation5 + $0x3e8] sm:$0xff]
    %v313 = vld [vmem:[#allocation5 + $0x3f0] sm:$0xff]
    %v314 = vld [vmem:[#allocation5 + $0x3f8] sm:$0xf]
    %315 = vmatpush.msra.mxu0 %v79
    %316 = vmatpush.msra.mxu0 %v78
    %317 = vmatpush.msra.mxu0 %v77
    %318 = vmatpush.msra.mxu0 %v76
    %319 = vmatpush.msra.mxu0 %v75
    %320 = vmatpush.msra.mxu0 %v74
    %321 = vmatpush.msra.mxu0 %v73
    %322 = vmatpush.msra.mxu0 %v72
    %323 = vmatpush.msra.mxu0 %v71
    %324 = vmatpush.msra.mxu0 %v70
    %325 = vmatpush.msra.mxu0 %v69
    %326 = vmatpush.msra.mxu0 %v68
    %327 = vmatpush.msra.mxu0 %v67
    %328 = vmatpush.msra.mxu0 %v66
    %329 = vmatpush.msra.mxu0 %v65
    %330 = vmatpush.msra.mxu0 %v64
    %331 = vmatmul.f32.gmra.mxu0 %v311
    %v332 = vpop.f32.mrf.mxu0
    %v333 = vadd.f32 0.0, %v332
    %334 = vmatmul.f32.gmra.mxu0 %v312
    %v335 = vpop.f32.mrf.mxu0
    %v336 = vadd.f32 0.0, %v335
    %337 = vmatmul.f32.gmra.mxu0 %v313
    %v338 = vpop.f32.mrf.mxu0
    %v339 = vadd.f32 0.0, %v338
    %340 = vmatmul.f32.gmra.mxu0 %v314
    %v341 = vpop.f32.mrf.mxu0
    %v342 = vadd.f32 0.0, %v341
    %343 = vdwg.mxu0
    %v344 = vld [vmem:[#allocation5 + $0x400] sm:$0xff]
    %v345 = vld [vmem:[#allocation5 + $0x408] sm:$0xff]
    %v346 = vld [vmem:[#allocation5 + $0x410] sm:$0xff]
    %v347 = vld [vmem:[#allocation5 + $0x418] sm:$0xf]
    %348 = vmatpush.msra.mxu0 %v79
    %349 = vmatpush.msra.mxu0 %v78
    %350 = vmatpush.msra.mxu0 %v77
    %351 = vmatpush.msra.mxu0 %v76
    %352 = vmatpush.msra.mxu0 %v75
    %353 = vmatpush.msra.mxu0 %v74
    %354 = vmatpush.msra.mxu0 %v73
    %355 = vmatpush.msra.mxu0 %v72
    %356 = vmatpush.msra.mxu0 %v71
    %357 = vmatpush.msra.mxu0 %v70
    %358 = vmatpush.msra.mxu0 %v69
    %359 = vmatpush.msra.mxu0 %v68
    %360 = vmatpush.msra.mxu0 %v67
    %361 = vmatpush.msra.mxu0 %v66
    %362 = vmatpush.msra.mxu0 %v65
    %363 = vmatpush.msra.mxu0 %v64
    %364 = vmatmul.f32.gmra.mxu0 %v344
    %v365 = vpop.f32.mrf.mxu0
    %v366 = vadd.f32 0.0, %v365
    %367 = vmatmul.f32.gmra.mxu0 %v345
    %v368 = vpop.f32.mrf.mxu0
    %v369 = vadd.f32 0.0, %v368
    %370 = vmatmul.f32.gmra.mxu0 %v346
    %v371 = vpop.f32.mrf.mxu0
    %v372 = vadd.f32 0.0, %v371
    %373 = vmatmul.f32.gmra.mxu0 %v347
    %v374 = vpop.f32.mrf.mxu0
    %v375 = vadd.f32 0.0, %v374
    %376 = vdwg.mxu0
    %v377 = vld [vmem:[#allocation5 + $0x420] sm:$0xff]
    %v378 = vld [vmem:[#allocation5 + $0x428] sm:$0xff]
    %v379 = vld [vmem:[#allocation5 + $0x430] sm:$0xff]
    %v380 = vld [vmem:[#allocation5 + $0x438] sm:$0xf]
    %381 = vmatpush.msra.mxu0 %v79
    %382 = vmatpush.msra.mxu0 %v78
    %383 = vmatpush.msra.mxu0 %v77
    %384 = vmatpush.msra.mxu0 %v76
    %385 = vmatpush.msra.mxu0 %v75
    %386 = vmatpush.msra.mxu0 %v74
    %387 = vmatpush.msra.mxu0 %v73
    %388 = vmatpush.msra.mxu0 %v72
    %389 = vmatpush.msra.mxu0 %v71
    %390 = vmatpush.msra.mxu0 %v70
    %391 = vmatpush.msra.mxu0 %v69
    %392 = vmatpush.msra.mxu0 %v68
    %393 = vmatpush.msra.mxu0 %v67
    %394 = vmatpush.msra.mxu0 %v66
    %395 = vmatpush.msra.mxu0 %v65
    %396 = vmatpush.msra.mxu0 %v64
    %397 = vmatmul.f32.gmra.mxu0 %v377
    %v398 = vpop.f32.mrf.mxu0
    %v399 = vadd.f32 0.0, %v398
    %400 = vmatmul.f32.gmra.mxu0 %v378
    %v401 = vpop.f32.mrf.mxu0
    %v402 = vadd.f32 0.0, %v401
    %403 = vmatmul.f32.gmra.mxu0 %v379
    %v404 = vpop.f32.mrf.mxu0
    %v405 = vadd.f32 0.0, %v404
    %406 = vmatmul.f32.gmra.mxu0 %v380
    %v407 = vpop.f32.mrf.mxu0
    %v408 = vadd.f32 0.0, %v407
    %409 = vdwg.mxu0
    %v410 = vld [vmem:[#allocation5 + $0x440] sm:$0xff]
    %v411 = vld [vmem:[#allocation5 + $0x448] sm:$0xff]
    %v412 = vld [vmem:[#allocation5 + $0x450] sm:$0xff]
    %v413 = vld [vmem:[#allocation5 + $0x458] sm:$0xf]
    %414 = vmatpush.msra.mxu0 %v79
    %415 = vmatpush.msra.mxu0 %v78
    %416 = vmatpush.msra.mxu0 %v77
    %417 = vmatpush.msra.mxu0 %v76
    %418 = vmatpush.msra.mxu0 %v75
    %419 = vmatpush.msra.mxu0 %v74
    %420 = vmatpush.msra.mxu0 %v73
    %421 = vmatpush.msra.mxu0 %v72
    %422 = vmatpush.msra.mxu0 %v71
    %423 = vmatpush.msra.mxu0 %v70
    %424 = vmatpush.msra.mxu0 %v69
    %425 = vmatpush.msra.mxu0 %v68
    %426 = vmatpush.msra.mxu0 %v67
    %427 = vmatpush.msra.mxu0 %v66
    %428 = vmatpush.msra.mxu0 %v65
    %429 = vmatpush.msra.mxu0 %v64
    %430 = vmatmul.f32.gmra.mxu0 %v410
    %v431 = vpop.f32.mrf.mxu0
    %v432 = vadd.f32 0.0, %v431
    %433 = vmatmul.f32.gmra.mxu0 %v411
    %v434 = vpop.f32.mrf.mxu0
    %v435 = vadd.f32 0.0, %v434
    %436 = vmatmul.f32.gmra.mxu0 %v412
    %v437 = vpop.f32.mrf.mxu0
    %v438 = vadd.f32 0.0, %v437
    %439 = vmatmul.f32.gmra.mxu0 %v413
    %v440 = vpop.f32.mrf.mxu0
    %v441 = vadd.f32 0.0, %v440
    %442 = vdwg.mxu0
    %v443 = vld [vmem:[#allocation5 + $0x460] sm:$0xff]
    %v444 = vld [vmem:[#allocation5 + $0x468] sm:$0xff]
    %v445 = vld [vmem:[#allocation5 + $0x470] sm:$0xff]
    %v446 = vld [vmem:[#allocation5 + $0x478] sm:$0xf]
    %447 = vmatpush.msra.mxu0 %v79
    %448 = vmatpush.msra.mxu0 %v78
    %449 = vmatpush.msra.mxu0 %v77
    %450 = vmatpush.msra.mxu0 %v76
    %451 = vmatpush.msra.mxu0 %v75
    %452 = vmatpush.msra.mxu0 %v74
    %453 = vmatpush.msra.mxu0 %v73
    %454 = vmatpush.msra.mxu0 %v72
    %455 = vmatpush.msra.mxu0 %v71
    %456 = vmatpush.msra.mxu0 %v70
    %457 = vmatpush.msra.mxu0 %v69
    %458 = vmatpush.msra.mxu0 %v68
    %459 = vmatpush.msra.mxu0 %v67
    %460 = vmatpush.msra.mxu0 %v66
    %461 = vmatpush.msra.mxu0 %v65
    %462 = vmatpush.msra.mxu0 %v64
    %463 = vmatmul.f32.gmra.mxu0 %v443
    %v464 = vpop.f32.mrf.mxu0
    %v465 = vadd.f32 0.0, %v464
    %466 = vmatmul.f32.gmra.mxu0 %v444
    %v467 = vpop.f32.mrf.mxu0
    %v468 = vadd.f32 0.0, %v467
    %469 = vmatmul.f32.gmra.mxu0 %v445
    %v470 = vpop.f32.mrf.mxu0
    %v471 = vadd.f32 0.0, %v470
    %472 = vmatmul.f32.gmra.mxu0 %v446
    %v473 = vpop.f32.mrf.mxu0
    %v474 = vadd.f32 0.0, %v473
    %475 = vdwg.mxu0
    %480 = vrot.lane.b32.xlu0 %v135, 16
    %v481 = vpop.permute.xlu0 %480
    %482 = vrot.lane.b32.xlu0 %v138, 16
    %v483 = vpop.permute.xlu0 %482
    %484 = vrot.lane.b32.xlu0 %v141, 16
    %v485 = vpop.permute.xlu0 %484
    %486 = vrot.lane.b32.xlu0 %v144, 16
    %v487 = vpop.permute.xlu0 %486
    %496 = vrot.lane.b32.xlu0 %v168, 32
    %v497 = vpop.permute.xlu0 %496
    %498 = vrot.lane.b32.xlu0 %v171, 32
    %v499 = vpop.permute.xlu0 %498
    %500 = vrot.lane.b32.xlu0 %v174, 32
    %v501 = vpop.permute.xlu0 %500
    %502 = vrot.lane.b32.xlu0 %v177, 32
    %v503 = vpop.permute.xlu0 %502
    %512 = vrot.lane.b32.xlu0 %v201, 48
    %v513 = vpop.permute.xlu0 %512
    %514 = vrot.lane.b32.xlu0 %v204, 48
    %v515 = vpop.permute.xlu0 %514
    %516 = vrot.lane.b32.xlu0 %v207, 48
    %v517 = vpop.permute.xlu0 %516
    %518 = vrot.lane.b32.xlu0 %v210, 48
    %v519 = vpop.permute.xlu0 %518
    %528 = vrot.lane.b32.xlu0 %v234, 64
    %v529 = vpop.permute.xlu0 %528
    %530 = vrot.lane.b32.xlu0 %v237, 64
    %v531 = vpop.permute.xlu0 %530
    %532 = vrot.lane.b32.xlu0 %v240, 64
    %v533 = vpop.permute.xlu0 %532
    %534 = vrot.lane.b32.xlu0 %v243, 64
    %v535 = vpop.permute.xlu0 %534
    %544 = vrot.lane.b32.xlu0 %v267, 80
    %v545 = vpop.permute.xlu0 %544
    %546 = vrot.lane.b32.xlu0 %v270, 80
    %v547 = vpop.permute.xlu0 %546
    %548 = vrot.lane.b32.xlu0 %v273, 80
    %v549 = vpop.permute.xlu0 %548
    %550 = vrot.lane.b32.xlu0 %v276, 80
    %v551 = vpop.permute.xlu0 %550
    %560 = vrot.lane.b32.xlu0 %v300, 96
    %v561 = vpop.permute.xlu0 %560
    %562 = vrot.lane.b32.xlu0 %v303, 96
    %v563 = vpop.permute.xlu0 %562
    %564 = vrot.lane.b32.xlu0 %v306, 96
    %v565 = vpop.permute.xlu0 %564
    %566 = vrot.lane.b32.xlu0 %v309, 96
    %v567 = vpop.permute.xlu0 %566
    %576 = vrot.lane.b32.xlu0 %v333, 112
    %v577 = vpop.permute.xlu0 %576
    %578 = vrot.lane.b32.xlu0 %v336, 112
    %v579 = vpop.permute.xlu0 %578
    %580 = vrot.lane.b32.xlu0 %v339, 112
    %v581 = vpop.permute.xlu0 %580
    %582 = vrot.lane.b32.xlu0 %v342, 112
    %v583 = vpop.permute.xlu0 %582
    %592 = vrot.lane.b32.xlu0 %v399, 16
    %v593 = vpop.permute.xlu0 %592
    %594 = vrot.lane.b32.xlu0 %v402, 16
    %v595 = vpop.permute.xlu0 %594
    %596 = vrot.lane.b32.xlu0 %v405, 16
    %v597 = vpop.permute.xlu0 %596
    %598 = vrot.lane.b32.xlu0 %v408, 16
    %v599 = vpop.permute.xlu0 %598
    %608 = vrot.lane.b32.xlu0 %v432, 32
    %v609 = vpop.permute.xlu0 %608
    %610 = vrot.lane.b32.xlu0 %v435, 32
    %v611 = vpop.permute.xlu0 %610
    %612 = vrot.lane.b32.xlu0 %v438, 32
    %v613 = vpop.permute.xlu0 %612
    %614 = vrot.lane.b32.xlu0 %v441, 32
    %v615 = vpop.permute.xlu0 %614
    %624 = vrot.lane.b32.xlu0 %v465, 48
    %v625 = vpop.permute.xlu0 %624
    %626 = vrot.lane.b32.xlu0 %v468, 48
    %v627 = vpop.permute.xlu0 %626
    %628 = vrot.lane.b32.xlu0 %v471, 48
    %v629 = vpop.permute.xlu0 %628
    %630 = vrot.lane.b32.xlu0 %v474, 48
    %v631 = vpop.permute.xlu0 %630
    %vm636 = vcmask 130048
    %v637 = vsel %vm636, %v102, %v481
    %v638 = vsel %vm636, %v105, %v483
    %v639 = vsel %vm636, %v108, %v485
    %v640 = vsel %vm636, %v111, %v487
    %vm641 = vcmask 261120
    %v642 = vsel %vm641, %v637, %v497
    %v643 = vsel %vm641, %v638, %v499
    %v644 = vsel %vm641, %v639, %v501
    %v645 = vsel %vm641, %v640, %v503
    %vm646 = vcmask 392192
    %v647 = vsel %vm646, %v642, %v513
    %v648 = vsel %vm646, %v643, %v515
    %v649 = vsel %vm646, %v644, %v517
    %v650 = vsel %vm646, %v645, %v519
    %vm651 = vcmask 523264
    %v652 = vsel %vm651, %v647, %v529
    %v653 = vsel %vm651, %v648, %v531
    %v654 = vsel %vm651, %v649, %v533
    %v655 = vsel %vm651, %v650, %v535
    %vm656 = vcmask 654336
    %v657 = vsel %vm656, %v652, %v545
    %v658 = vsel %vm656, %v653, %v547
    %v659 = vsel %vm656, %v654, %v549
    %v660 = vsel %vm656, %v655, %v551
    %vm661 = vcmask 785408
    %v662 = vsel %vm661, %v657, %v561
    %v663 = vsel %vm661, %v658, %v563
    %v664 = vsel %vm661, %v659, %v565
    %v665 = vsel %vm661, %v660, %v567
    %vm666 = vcmask 916480
    %v667 = vsel %vm666, %v662, %v577
    %v668 = vsel %vm666, %v663, %v579
    %v669 = vsel %vm666, %v664, %v581
    %v670 = vsel %vm666, %v665, %v583
    %v671 = vsel %vm636, %v366, %v593
    %v672 = vsel %vm636, %v369, %v595
    %v673 = vsel %vm636, %v372, %v597
    %v674 = vsel %vm636, %v375, %v599
    %v675 = vsel %vm641, %v671, %v609
    %v676 = vsel %vm641, %v672, %v611
    %v677 = vsel %vm641, %v673, %v613
    %v678 = vsel %vm641, %v674, %v615
    %v679 = vsel %vm646, %v675, %v625
    %v680 = vsel %vm646, %v676, %v627
    %v681 = vsel %vm646, %v677, %v629
    %v682 = vsel %vm646, %v678, %v631
    %v683 = vld [vmem:[#allocation7] sm:$0xff]
    %v684 = vld [vmem:[#allocation7 + $0x8] sm:$0xff]
    %v685 = vld [vmem:[#allocation7 + $0x10] sm:$0xff]
    %v686 = vld [vmem:[#allocation7 + $0x18] sm:$0xff]
    %v687 = vld [vmem:[#allocation7 + $0x20] sm:$0xff]
    %v688 = vld [vmem:[#allocation7 + $0x28] sm:$0xff]
    %v689 = vld [vmem:[#allocation7 + $0x30] sm:$0xff]
    %v690 = vld [vmem:[#allocation7 + $0x38] sm:$0xff]
    %v691 = vld [vmem:[#allocation7 + $0x40] sm:$0xff]
    %v692 = vld [vmem:[#allocation7 + $0x48] sm:$0xff]
    %v693 = vld [vmem:[#allocation7 + $0x50] sm:$0xff]
    %v694 = vld [vmem:[#allocation7 + $0x58] sm:$0xff]
    %v695 = vld [vmem:[#allocation7 + $0x60] sm:$0xff]
    %v696 = vld [vmem:[#allocation7 + $0x68] sm:$0xff]
    %v697 = vld [vmem:[#allocation7 + $0x70] sm:$0xff]
    %v698 = vld [vmem:[#allocation7 + $0x78] sm:$0xff]
    %v699 = vld [vmem:[#allocation7 + $0x80] sm:$0xff]
    %v700 = vld [vmem:[#allocation7 + $0x88] sm:$0xff]
    %v701 = vld [vmem:[#allocation7 + $0x90] sm:$0xff]
    %v702 = vld [vmem:[#allocation7 + $0x98] sm:$0xff]
    %v703 = vld [vmem:[#allocation7 + $0xa0] sm:$0xff]
    %v704 = vld [vmem:[#allocation7 + $0xa8] sm:$0xff]
    %v705 = vld [vmem:[#allocation7 + $0xb0] sm:$0xff]
    %v706 = vld [vmem:[#allocation7 + $0xb8] sm:$0xff]
    %v707 = vld [vmem:[#allocation7 + $0xc0] sm:$0xff]
    %v708 = vld [vmem:[#allocation7 + $0xc8] sm:$0xff]
    %v709 = vld [vmem:[#allocation7 + $0xd0] sm:$0xff]
    %v710 = vld [vmem:[#allocation7 + $0xd8] sm:$0xff]
    %v711 = vld [vmem:[#allocation7 + $0xe0] sm:$0xff]
    %v712 = vld [vmem:[#allocation7 + $0xe8] sm:$0xff]
    %v713 = vld [vmem:[#allocation7 + $0xf0] sm:$0xff]
    %v714 = vld [vmem:[#allocation7 + $0xf8] sm:$0xff]
    %v715 = vld [vmem:[#allocation7 + $0x100] sm:$0xff]
    %v716 = vld [vmem:[#allocation7 + $0x108] sm:$0xff]
    %v717 = vld [vmem:[#allocation7 + $0x110] sm:$0xff]
    %v718 = vld [vmem:[#allocation7 + $0x118] sm:$0xff]
    %v719 = vld [vmem:[#allocation7 + $0x120] sm:$0xff]
    %v720 = vld [vmem:[#allocation7 + $0x128] sm:$0xff]
    %v721 = vld [vmem:[#allocation7 + $0x130] sm:$0xff]
    %v722 = vld [vmem:[#allocation7 + $0x138] sm:$0xff]
    %v723 = vld [vmem:[#allocation7 + $0x140] sm:$0xff]
    %v724 = vld [vmem:[#allocation7 + $0x148] sm:$0xff]
    %v725 = vld [vmem:[#allocation7 + $0x150] sm:$0xff]
    %v726 = vld [vmem:[#allocation7 + $0x158] sm:$0xff]
    %v727 = vld [vmem:[#allocation7 + $0x160] sm:$0xff]
    %v728 = vld [vmem:[#allocation7 + $0x168] sm:$0xff]
    %v729 = vld [vmem:[#allocation7 + $0x170] sm:$0xff]
    %v730 = vld [vmem:[#allocation7 + $0x178] sm:$0xff]
    %s731 = scalar_lea.vmem [#allocation7], 1936
    %v732 = vld [vmem:[%s731] ss:$8 sm:$0x3]
    %v734 = vperm.slane %v732, 0
    %v735 = vperm.slane %v732, 1
    %v739 = vsel %vm651, %v679, 0
    %v742 = vsel %vm651, %v680, 0
    %v745 = vsel %vm651, %v681, 0
    %v748 = vsel %vm651, %v682, 0
    %750 = vmatpush.msra.mxu0 %v713
    %751 = vmatpush.msra.mxu0 %v711
    %752 = vmatpush.msra.mxu0 %v709
    %753 = vmatpush.msra.mxu0 %v707
    %754 = vmatpush.msra.mxu0 %v705
    %755 = vmatpush.msra.mxu0 %v703
    %756 = vmatpush.msra.mxu0 %v701
    %757 = vmatpush.msra.mxu0 %v699
    %758 = vmatpush.msra.mxu0 %v697
    %759 = vmatpush.msra.mxu0 %v695
    %760 = vmatpush.msra.mxu0 %v693
    %761 = vmatpush.msra.mxu0 %v691
    %762 = vmatpush.msra.mxu0 %v689
    %763 = vmatpush.msra.mxu0 %v687
    %764 = vmatpush.msra.mxu0 %v685
    %765 = vmatpush.msra.mxu0 %v683
    %766 = vmatmul.f32.gmra.mxu0 %v667
    %v767 = vpop.f32.mrf.mxu0
    %v768 = vadd.f32 %v734, %v767
    %769 = vmatmul.f32.gmra.mxu0 %v668
    %v770 = vpop.f32.mrf.mxu0
    %v771 = vadd.f32 %v734, %v770
    %772 = vmatmul.f32.gmra.mxu0 %v669
    %v773 = vpop.f32.mrf.mxu0
    %v774 = vadd.f32 %v734, %v773
    %775 = vmatmul.f32.gmra.mxu0 %v670
    %v776 = vpop.f32.mrf.mxu0
    %v777 = vadd.f32 %v734, %v776
    %778 = vdwg.mxu0
    %779 = vmatpush.msra.mxu0 0.0
    %780 = vmatpush.msra.mxu0 0.0
    %781 = vmatpush.msra.mxu0 0.0
    %782 = vmatpush.msra.mxu0 0.0
    %783 = vmatpush.msra.mxu0 0.0
    %784 = vmatpush.msra.mxu0 0.0
    %785 = vmatpush.msra.mxu0 0.0
    %786 = vmatpush.msra.mxu0 0.0
    %787 = vmatpush.msra.mxu0 %v729
    %788 = vmatpush.msra.mxu0 %v727
    %789 = vmatpush.msra.mxu0 %v725
    %790 = vmatpush.msra.mxu0 %v723
    %791 = vmatpush.msra.mxu0 %v721
    %792 = vmatpush.msra.mxu0 %v719
    %793 = vmatpush.msra.mxu0 %v717
    %794 = vmatpush.msra.mxu0 %v715
    %795 = vmatmul.f32.gmra.mxu0 %v739
    %v796 = vpop.f32.mrf.mxu0
    %v797 = vadd.f32 %v768, %v796
    %798 = vmatmul.f32.gmra.mxu0 %v742
    %v799 = vpop.f32.mrf.mxu0
    %v800 = vadd.f32 %v771, %v799
    %801 = vmatmul.f32.gmra.mxu0 %v745
    %v802 = vpop.f32.mrf.mxu0
    %v803 = vadd.f32 %v774, %v802
    %804 = vmatmul.f32.gmra.mxu0 %v748
    %v805 = vpop.f32.mrf.mxu0
    %v806 = vadd.f32 %v777, %v805
    %807 = vdwg.mxu0
    %808 = vmatpush.msra.mxu0 %v714
    %809 = vmatpush.msra.mxu0 %v712
    %810 = vmatpush.msra.mxu0 %v710
    %811 = vmatpush.msra.mxu0 %v708
    %812 = vmatpush.msra.mxu0 %v706
    %813 = vmatpush.msra.mxu0 %v704
    %814 = vmatpush.msra.mxu0 %v702
    %815 = vmatpush.msra.mxu0 %v700
    %816 = vmatpush.msra.mxu0 %v698
    %817 = vmatpush.msra.mxu0 %v696
    %818 = vmatpush.msra.mxu0 %v694
    %819 = vmatpush.msra.mxu0 %v692
    %820 = vmatpush.msra.mxu0 %v690
    %821 = vmatpush.msra.mxu0 %v688
    %822 = vmatpush.msra.mxu0 %v686
    %823 = vmatpush.msra.mxu0 %v684
    %824 = vmatmul.f32.gmra.mxu0 %v667
    %v825 = vpop.f32.mrf.mxu0
    %v826 = vadd.f32 %v735, %v825
    %827 = vmatmul.f32.gmra.mxu0 %v668
    %v828 = vpop.f32.mrf.mxu0
    %v829 = vadd.f32 %v735, %v828
    %830 = vmatmul.f32.gmra.mxu0 %v669
    %v831 = vpop.f32.mrf.mxu0
    %v832 = vadd.f32 %v735, %v831
    %833 = vmatmul.f32.gmra.mxu0 %v670
    %v834 = vpop.f32.mrf.mxu0
    %v835 = vadd.f32 %v735, %v834
    %836 = vdwg.mxu0
    %837 = vmatpush.msra.mxu0 0.0
    %838 = vmatpush.msra.mxu0 0.0
    %839 = vmatpush.msra.mxu0 0.0
    %840 = vmatpush.msra.mxu0 0.0
    %841 = vmatpush.msra.mxu0 0.0
    %842 = vmatpush.msra.mxu0 0.0
    %843 = vmatpush.msra.mxu0 0.0
    %844 = vmatpush.msra.mxu0 0.0
    %845 = vmatpush.msra.mxu0 %v730
    %846 = vmatpush.msra.mxu0 %v728
    %847 = vmatpush.msra.mxu0 %v726
    %848 = vmatpush.msra.mxu0 %v724
    %849 = vmatpush.msra.mxu0 %v722
    %850 = vmatpush.msra.mxu0 %v720
    %851 = vmatpush.msra.mxu0 %v718
    %852 = vmatpush.msra.mxu0 %v716
    %853 = vmatmul.f32.gmra.mxu0 %v739
    %v854 = vpop.f32.mrf.mxu0
    %v855 = vadd.f32 %v826, %v854
    %856 = vmatmul.f32.gmra.mxu0 %v742
    %v857 = vpop.f32.mrf.mxu0
    %v858 = vadd.f32 %v829, %v857
    %859 = vmatmul.f32.gmra.mxu0 %v745
    %v860 = vpop.f32.mrf.mxu0
    %v861 = vadd.f32 %v832, %v860
    %862 = vmatmul.f32.gmra.mxu0 %v748
    %v863 = vpop.f32.mrf.mxu0
    %v864 = vadd.f32 %v835, %v863
    %865 = vdwg.mxu0
    %v866 = vmax.f32 %v797, 0.0
    %v867 = vmax.f32 %v855, 0.0
    %v868 = vmax.f32 %v800, 0.0
    %v869 = vmax.f32 %v858, 0.0
    %v870 = vmax.f32 %v803, 0.0
    %v871 = vmax.f32 %v861, 0.0
    %v872 = vmax.f32 %v806, 0.0
    %v873 = vmax.f32 %v864, 0.0
    %v874 = vld [vmem:[#allocation5 + $0x480] sm:$0xff]
    %v875 = vld [vmem:[#allocation5 + $0x488] sm:$0xf]
    %vm876 = vcmask 228352
    %v878 = vsel %vm876, %v874, 0
    %v881 = vsel %vm876, %v875, 0
    %vm883 = vcmask 1043456
    %v885 = vsel %vm883, %v872, 0
    %v888 = vsel %vm883, %v873, 0
    %890 = vmatpush.msra.mxu0 0.0
    %891 = vmatpush.msra.mxu0 0.0
    %892 = vmatpush.msra.mxu0 0.0
    %893 = vmatpush.msra.mxu0 0.0
    %894 = vmatpush.msra.mxu0 0.0
    %895 = vmatpush.msra.mxu0 0.0
    %896 = vmatpush.msra.mxu0 0.0
    %897 = vmatpush.msra.mxu0 0.0
    %898 = vmatpush.msra.mxu0 0.0
    %899 = vmatpush.msra.mxu0 0.0
    %900 = vmatpush.msra.mxu0 0.0
    %901 = vmatpush.msra.mxu0 0.0
    %902 = vmatpush.msra.mxu0 %v885
    %903 = vmatpush.msra.mxu0 %v870
    %904 = vmatpush.msra.mxu0 %v868
    %905 = vmatpush.msra.mxu0 %v866
    %906 = vmatmul.f32.gmra.mxu0 %v878
    %v907 = vpop.f32.mrf.mxu0
    %v908 = vadd.f32 0.0, %v907
    %909 = vmatmul.f32.gmra.mxu0 %v881
    %v910 = vpop.f32.mrf.mxu0
    %v911 = vadd.f32 0.0, %v910
    %912 = vdwg.mxu0
    %913 = vmatpush.msra.mxu0 0.0
    %914 = vmatpush.msra.mxu0 0.0
    %915 = vmatpush.msra.mxu0 0.0
    %916 = vmatpush.msra.mxu0 0.0
    %917 = vmatpush.msra.mxu0 0.0
    %918 = vmatpush.msra.mxu0 0.0
    %919 = vmatpush.msra.mxu0 0.0
    %920 = vmatpush.msra.mxu0 0.0
    %921 = vmatpush.msra.mxu0 0.0
    %922 = vmatpush.msra.mxu0 0.0
    %923 = vmatpush.msra.mxu0 0.0
    %924 = vmatpush.msra.mxu0 0.0
    %925 = vmatpush.msra.mxu0 %v888
    %926 = vmatpush.msra.mxu0 %v871
    %927 = vmatpush.msra.mxu0 %v869
    %928 = vmatpush.msra.mxu0 %v867
    %929 = vmatmul.f32.gmra.mxu0 %v878
    %v930 = vpop.f32.mrf.mxu0
    %v931 = vadd.f32 0.0, %v930
    %932 = vmatmul.f32.gmra.mxu0 %v881
    %v933 = vpop.f32.mrf.mxu0
    %v934 = vadd.f32 0.0, %v933
    %935 = vdwg.mxu0
    %v936 = vld [vmem:[#allocation5 + $0x490] sm:$0xff]
    %v937 = vld [vmem:[#allocation5 + $0x498] sm:$0xf]
    %v939 = vsel %vm876, %v936, 0
    %v942 = vsel %vm876, %v937, 0
    %944 = vmatpush.msra.mxu0 0.0
    %945 = vmatpush.msra.mxu0 0.0
    %946 = vmatpush.msra.mxu0 0.0
    %947 = vmatpush.msra.mxu0 0.0
    %948 = vmatpush.msra.mxu0 0.0
    %949 = vmatpush.msra.mxu0 0.0
    %950 = vmatpush.msra.mxu0 0.0
    %951 = vmatpush.msra.mxu0 0.0
    %952 = vmatpush.msra.mxu0 0.0
    %953 = vmatpush.msra.mxu0 0.0
    %954 = vmatpush.msra.mxu0 0.0
    %955 = vmatpush.msra.mxu0 0.0
    %956 = vmatpush.msra.mxu0 %v885
    %957 = vmatpush.msra.mxu0 %v870
    %958 = vmatpush.msra.mxu0 %v868
    %959 = vmatpush.msra.mxu0 %v866
    %960 = vmatmul.f32.gmra.mxu0 %v939
    %v961 = vpop.f32.mrf.mxu0
    %v962 = vadd.f32 0.0, %v961
    %963 = vmatmul.f32.gmra.mxu0 %v942
    %v964 = vpop.f32.mrf.mxu0
    %v965 = vadd.f32 0.0, %v964
    %966 = vdwg.mxu0
    %967 = vmatpush.msra.mxu0 0.0
    %968 = vmatpush.msra.mxu0 0.0
    %969 = vmatpush.msra.mxu0 0.0
    %970 = vmatpush.msra.mxu0 0.0
    %971 = vmatpush.msra.mxu0 0.0
    %972 = vmatpush.msra.mxu0 0.0
    %973 = vmatpush.msra.mxu0 0.0
    %974 = vmatpush.msra.mxu0 0.0
    %975 = vmatpush.msra.mxu0 0.0
    %976 = vmatpush.msra.mxu0 0.0
    %977 = vmatpush.msra.mxu0 0.0
    %978 = vmatpush.msra.mxu0 0.0
    %979 = vmatpush.msra.mxu0 %v888
    %980 = vmatpush.msra.mxu0 %v871
    %981 = vmatpush.msra.mxu0 %v869
    %982 = vmatpush.msra.mxu0 %v867
    %983 = vmatmul.f32.gmra.mxu0 %v939
    %v984 = vpop.f32.mrf.mxu0
    %v985 = vadd.f32 0.0, %v984
    %986 = vmatmul.f32.gmra.mxu0 %v942
    %v987 = vpop.f32.mrf.mxu0
    %v988 = vadd.f32 0.0, %v987
    %989 = vdwg.mxu0
    %v990 = vld [vmem:[#allocation5 + $0x4a0] sm:$0xff]
    %v991 = vld [vmem:[#allocation5 + $0x4a8] sm:$0xf]
    %v993 = vsel %vm876, %v990, 0
    %v996 = vsel %vm876, %v991, 0
    %998 = vmatpush.msra.mxu0 0.0
    %999 = vmatpush.msra.mxu0 0.0
    %1000 = vmatpush.msra.mxu0 0.0
    %1001 = vmatpush.msra.mxu0 0.0
    %1002 = vmatpush.msra.mxu0 0.0
    %1003 = vmatpush.msra.mxu0 0.0
    %1004 = vmatpush.msra.mxu0 0.0
    %1005 = vmatpush.msra.mxu0 0.0
    %1006 = vmatpush.msra.mxu0 0.0
    %1007 = vmatpush.msra.mxu0 0.0
    %1008 = vmatpush.msra.mxu0 0.0
    %1009 = vmatpush.msra.mxu0 0.0
    %1010 = vmatpush.msra.mxu0 %v885
    %1011 = vmatpush.msra.mxu0 %v870
    %1012 = vmatpush.msra.mxu0 %v868
    %1013 = vmatpush.msra.mxu0 %v866
    %1014 = vmatmul.f32.gmra.mxu0 %v993
    %v1015 = vpop.f32.mrf.mxu0
    %v1016 = vadd.f32 0.0, %v1015
    %1017 = vmatmul.f32.gmra.mxu0 %v996
    %v1018 = vpop.f32.mrf.mxu0
    %v1019 = vadd.f32 0.0, %v1018
    %1020 = vdwg.mxu0
    %1021 = vmatpush.msra.mxu0 0.0
    %1022 = vmatpush.msra.mxu0 0.0
    %1023 = vmatpush.msra.mxu0 0.0
    %1024 = vmatpush.msra.mxu0 0.0
    %1025 = vmatpush.msra.mxu0 0.0
    %1026 = vmatpush.msra.mxu0 0.0
    %1027 = vmatpush.msra.mxu0 0.0
    %1028 = vmatpush.msra.mxu0 0.0
    %1029 = vmatpush.msra.mxu0 0.0
    %1030 = vmatpush.msra.mxu0 0.0
    %1031 = vmatpush.msra.mxu0 0.0
    %1032 = vmatpush.msra.mxu0 0.0
    %1033 = vmatpush.msra.mxu0 %v888
    %1034 = vmatpush.msra.mxu0 %v871
    %1035 = vmatpush.msra.mxu0 %v869
    %1036 = vmatpush.msra.mxu0 %v867
    %1037 = vmatmul.f32.gmra.mxu0 %v993
    %v1038 = vpop.f32.mrf.mxu0
    %v1039 = vadd.f32 0.0, %v1038
    %1040 = vmatmul.f32.gmra.mxu0 %v996
    %v1041 = vpop.f32.mrf.mxu0
    %v1042 = vadd.f32 0.0, %v1041
    %1043 = vdwg.mxu0
    %v1044 = vld [vmem:[#allocation5] sm:$0xff]
    %v1045 = vld [vmem:[#allocation5 + $0x8] sm:$0xff]
    %v1046 = vld [vmem:[#allocation5 + $0x10] sm:$0xff]
    %v1047 = vld [vmem:[#allocation5 + $0x18] sm:$0xff]
    %v1048 = vld [vmem:[#allocation5 + $0x20] sm:$0xff]
    %v1049 = vld [vmem:[#allocation5 + $0x28] sm:$0xff]
    %v1050 = vld [vmem:[#allocation5 + $0x30] sm:$0xff]
    %v1051 = vld [vmem:[#allocation5 + $0x38] sm:$0xff]
    %v1052 = vld [vmem:[#allocation5 + $0x40] sm:$0xff]
    %v1053 = vld [vmem:[#allocation5 + $0x48] sm:$0xff]
    %v1054 = vld [vmem:[#allocation5 + $0x50] sm:$0xff]
    %v1055 = vld [vmem:[#allocation5 + $0x58] sm:$0xff]
    %v1056 = vld [vmem:[#allocation5 + $0x60] sm:$0xff]
    %v1057 = vld [vmem:[#allocation5 + $0x68] sm:$0xff]
    %v1058 = vld [vmem:[#allocation5 + $0x70] sm:$0xff]
    %v1059 = vld [vmem:[#allocation5 + $0x78] sm:$0xff]
    %v1060 = vld [vmem:[#allocation5 + $0x80] sm:$0xff]
    %v1061 = vld [vmem:[#allocation5 + $0x88] sm:$0xff]
    %v1062 = vld [vmem:[#allocation5 + $0x90] sm:$0xff]
    %v1063 = vld [vmem:[#allocation5 + $0x98] sm:$0xff]
    %v1064 = vld [vmem:[#allocation5 + $0xa0] sm:$0xff]
    %v1065 = vld [vmem:[#allocation5 + $0xa8] sm:$0xff]
    %v1066 = vld [vmem:[#allocation5 + $0xb0] sm:$0xff]
    %v1067 = vld [vmem:[#allocation5 + $0xb8] sm:$0xff]
    %v1068 = vld [vmem:[#allocation5 + $0xc0] sm:$0xff]
    %v1069 = vld [vmem:[#allocation5 + $0xc8] sm:$0xff]
    %v1070 = vld [vmem:[#allocation5 + $0xd0] sm:$0xff]
    %v1071 = vld [vmem:[#allocation5 + $0xd8] sm:$0xff]
    %v1072 = vld [vmem:[#allocation5 + $0xe0] sm:$0xff]
    %v1073 = vld [vmem:[#allocation5 + $0xe8] sm:$0xff]
    %v1074 = vld [vmem:[#allocation5 + $0xf0] sm:$0xff]
    %v1075 = vld [vmem:[#allocation5 + $0xf8] sm:$0xff]
    %v1076 = vld [vmem:[#allocation5 + $0x100] sm:$0xff]
    %v1077 = vld [vmem:[#allocation5 + $0x108] sm:$0xff]
    %v1078 = vld [vmem:[#allocation5 + $0x110] sm:$0xff]
    %v1079 = vld [vmem:[#allocation5 + $0x118] sm:$0xff]
    %v1080 = vld [vmem:[#allocation5 + $0x120] sm:$0xff]
    %v1081 = vld [vmem:[#allocation5 + $0x128] sm:$0xff]
    %v1082 = vld [vmem:[#allocation5 + $0x130] sm:$0xff]
    %v1083 = vld [vmem:[#allocation5 + $0x138] sm:$0xff]
    %v1084 = vld [vmem:[#allocation5 + $0x140] sm:$0xff]
    %v1085 = vld [vmem:[#allocation5 + $0x148] sm:$0xff]
    %v1086 = vld [vmem:[#allocation5 + $0x150] sm:$0xff]
    %v1087 = vld [vmem:[#allocation5 + $0x158] sm:$0xff]
    %v1088 = vld [vmem:[#allocation5 + $0x160] sm:$0xff]
    %v1089 = vld [vmem:[#allocation5 + $0x168] sm:$0xff]
    %v1090 = vld [vmem:[#allocation5 + $0x170] sm:$0xff]
    %v1091 = vld [vmem:[#allocation5 + $0x178] sm:$0xff]
    %v1092 = vld [vmem:[#allocation5 + $0x180] sm:$0xff]
    %v1093 = vld [vmem:[#allocation5 + $0x188] sm:$0xff]
    %v1094 = vld [vmem:[#allocation5 + $0x190] sm:$0xff]
    %v1095 = vld [vmem:[#allocation5 + $0x198] sm:$0xff]
    %v1096 = vld [vmem:[#allocation5 + $0x1a0] sm:$0xff]
    %v1097 = vld [vmem:[#allocation5 + $0x1a8] sm:$0xff]
    %v1098 = vld [vmem:[#allocation5 + $0x1b0] sm:$0xff]
    %v1099 = vld [vmem:[#allocation5 + $0x1b8] sm:$0xff]
    %v1100 = vld [vmem:[#allocation5 + $0x1c0] sm:$0xff]
    %v1101 = vld [vmem:[#allocation5 + $0x1c8] sm:$0xff]
    %v1102 = vld [vmem:[#allocation5 + $0x1d0] sm:$0xff]
    %v1103 = vld [vmem:[#allocation5 + $0x1d8] sm:$0xff]
    %v1104 = vld [vmem:[#allocation5 + $0x1e0] sm:$0xff]
    %v1105 = vld [vmem:[#allocation5 + $0x1e8] sm:$0xff]
    %v1106 = vld [vmem:[#allocation5 + $0x1f0] sm:$0xff]
    %v1107 = vld [vmem:[#allocation5 + $0x1f8] sm:$0xff]
    %v1108 = vld [vmem:[#allocation5 + $0x200] sm:$0xff]
    %v1109 = vld [vmem:[#allocation5 + $0x208] sm:$0xff]
    %v1110 = vld [vmem:[#allocation5 + $0x210] sm:$0xff]
    %v1111 = vld [vmem:[#allocation5 + $0x218] sm:$0xff]
    %v1112 = vld [vmem:[#allocation5 + $0x220] sm:$0xff]
    %v1113 = vld [vmem:[#allocation5 + $0x228] sm:$0xff]
    %v1114 = vld [vmem:[#allocation5 + $0x230] sm:$0xff]
    %v1115 = vld [vmem:[#allocation5 + $0x238] sm:$0xff]
    %v1116 = vld [vmem:[#allocation5 + $0x240] sm:$0xff]
    %v1117 = vld [vmem:[#allocation5 + $0x248] sm:$0xff]
    %v1118 = vld [vmem:[#allocation5 + $0x250] sm:$0xff]
    %v1119 = vld [vmem:[#allocation5 + $0x258] sm:$0xff]
    %v1120 = vld [vmem:[#allocation5 + $0x260] sm:$0xff]
    %v1121 = vld [vmem:[#allocation5 + $0x268] sm:$0xff]
    %v1122 = vld [vmem:[#allocation5 + $0x270] sm:$0xff]
    %v1123 = vld [vmem:[#allocation5 + $0x278] sm:$0xff]
    %v1124 = vld [vmem:[#allocation5 + $0x280] sm:$0xff]
    %v1125 = vld [vmem:[#allocation5 + $0x288] sm:$0xff]
    %v1126 = vld [vmem:[#allocation5 + $0x290] sm:$0xff]
    %v1127 = vld [vmem:[#allocation5 + $0x298] sm:$0xff]
    %v1128 = vld [vmem:[#allocation5 + $0x2a0] sm:$0xff]
    %v1129 = vld [vmem:[#allocation5 + $0x2a8] sm:$0xff]
    %v1130 = vld [vmem:[#allocation5 + $0x2b0] sm:$0xff]
    %v1131 = vld [vmem:[#allocation5 + $0x2b8] sm:$0xff]
    %v1132 = vld [vmem:[#allocation5 + $0x2c0] sm:$0xff]
    %v1133 = vld [vmem:[#allocation5 + $0x2c8] sm:$0xff]
    %v1134 = vld [vmem:[#allocation5 + $0x2d0] sm:$0xff]
    %v1135 = vld [vmem:[#allocation5 + $0x2d8] sm:$0xff]
    %v1136 = vld [vmem:[#allocation5 + $0x2e0] sm:$0xff]
    %v1137 = vld [vmem:[#allocation5 + $0x2e8] sm:$0xff]
    %v1138 = vld [vmem:[#allocation5 + $0x2f0] sm:$0xff]
    %v1139 = vld [vmem:[#allocation5 + $0x2f8] sm:$0xff]
    %v1140 = vld [vmem:[#allocation7 + $0x791] ss:$0 sm:$0xff]
    %1141 = vmatpush.msra.mxu0 %v1059
    %1142 = vmatpush.msra.mxu0 %v1058
    %1143 = vmatpush.msra.mxu0 %v1057
    %1144 = vmatpush.msra.mxu0 %v1056
    %1145 = vmatpush.msra.mxu0 %v1055
    %1146 = vmatpush.msra.mxu0 %v1054
    %1147 = vmatpush.msra.mxu0 %v1053
    %1148 = vmatpush.msra.mxu0 %v1052
    %1149 = vmatpush.msra.mxu0 %v1051
    %1150 = vmatpush.msra.mxu0 %v1050
    %1151 = vmatpush.msra.mxu0 %v1049
    %1152 = vmatpush.msra.mxu0 %v1048
    %1153 = vmatpush.msra.mxu0 %v1047
    %1154 = vmatpush.msra.mxu0 %v1046
    %1155 = vmatpush.msra.mxu0 %v1045
    %1156 = vmatpush.msra.mxu0 %v1044
    %1157 = vmatmul.f32.gmra.mxu0 %v908
    %v1158 = vpop.f32.mrf.mxu0
    %v1159 = vadd.f32 %v1140, %v1158
    %1160 = vmatmul.f32.gmra.mxu0 %v911
    %v1161 = vpop.f32.mrf.mxu0
    %v1162 = vadd.f32 %v1140, %v1161
    %1163 = vdwg.mxu0
    %1164 = vmatpush.msra.mxu0 %v1075
    %1165 = vmatpush.msra.mxu0 %v1074
    %1166 = vmatpush.msra.mxu0 %v1073
    %1167 = vmatpush.msra.mxu0 %v1072
    %1168 = vmatpush.msra.mxu0 %v1071
    %1169 = vmatpush.msra.mxu0 %v1070
    %1170 = vmatpush.msra.mxu0 %v1069
    %1171 = vmatpush.msra.mxu0 %v1068
    %1172 = vmatpush.msra.mxu0 %v1067
    %1173 = vmatpush.msra.mxu0 %v1066
    %1174 = vmatpush.msra.mxu0 %v1065
    %1175 = vmatpush.msra.mxu0 %v1064
    %1176 = vmatpush.msra.mxu0 %v1063
    %1177 = vmatpush.msra.mxu0 %v1062
    %1178 = vmatpush.msra.mxu0 %v1061
    %1179 = vmatpush.msra.mxu0 %v1060
    %1180 = vmatmul.f32.gmra.mxu0 %v931
    %v1181 = vpop.f32.mrf.mxu0
    %v1182 = vadd.f32 %v1159, %v1181
    %1183 = vmatmul.f32.gmra.mxu0 %v934
    %v1184 = vpop.f32.mrf.mxu0
    %v1185 = vadd.f32 %v1162, %v1184
    %1186 = vdwg.mxu0
    %1187 = vmatpush.msra.mxu0 %v1091
    %1188 = vmatpush.msra.mxu0 %v1090
    %1189 = vmatpush.msra.mxu0 %v1089
    %1190 = vmatpush.msra.mxu0 %v1088
    %1191 = vmatpush.msra.mxu0 %v1087
    %1192 = vmatpush.msra.mxu0 %v1086
    %1193 = vmatpush.msra.mxu0 %v1085
    %1194 = vmatpush.msra.mxu0 %v1084
    %1195 = vmatpush.msra.mxu0 %v1083
    %1196 = vmatpush.msra.mxu0 %v1082
    %1197 = vmatpush.msra.mxu0 %v1081
    %1198 = vmatpush.msra.mxu0 %v1080
    %1199 = vmatpush.msra.mxu0 %v1079
    %1200 = vmatpush.msra.mxu0 %v1078
    %1201 = vmatpush.msra.mxu0 %v1077
    %1202 = vmatpush.msra.mxu0 %v1076
    %1203 = vmatmul.f32.gmra.mxu0 %v962
    %v1204 = vpop.f32.mrf.mxu0
    %v1205 = vadd.f32 %v1182, %v1204
    %1206 = vmatmul.f32.gmra.mxu0 %v965
    %v1207 = vpop.f32.mrf.mxu0
    %v1208 = vadd.f32 %v1185, %v1207
    %1209 = vdwg.mxu0
    %1210 = vmatpush.msra.mxu0 %v1107
    %1211 = vmatpush.msra.mxu0 %v1106
    %1212 = vmatpush.msra.mxu0 %v1105
    %1213 = vmatpush.msra.mxu0 %v1104
    %1214 = vmatpush.msra.mxu0 %v1103
    %1215 = vmatpush.msra.mxu0 %v1102
    %1216 = vmatpush.msra.mxu0 %v1101
    %1217 = vmatpush.msra.mxu0 %v1100
    %1218 = vmatpush.msra.mxu0 %v1099
    %1219 = vmatpush.msra.mxu0 %v1098
    %1220 = vmatpush.msra.mxu0 %v1097
    %1221 = vmatpush.msra.mxu0 %v1096
    %1222 = vmatpush.msra.mxu0 %v1095
    %1223 = vmatpush.msra.mxu0 %v1094
    %1224 = vmatpush.msra.mxu0 %v1093
    %1225 = vmatpush.msra.mxu0 %v1092
    %1226 = vmatmul.f32.gmra.mxu0 %v985
    %v1227 = vpop.f32.mrf.mxu0
    %v1228 = vadd.f32 %v1205, %v1227
    %1229 = vmatmul.f32.gmra.mxu0 %v988
    %v1230 = vpop.f32.mrf.mxu0
    %v1231 = vadd.f32 %v1208, %v1230
    %1232 = vdwg.mxu0
    %1233 = vmatpush.msra.mxu0 %v1123
    %1234 = vmatpush.msra.mxu0 %v1122
    %1235 = vmatpush.msra.mxu0 %v1121
    %1236 = vmatpush.msra.mxu0 %v1120
    %1237 = vmatpush.msra.mxu0 %v1119
    %1238 = vmatpush.msra.mxu0 %v1118
    %1239 = vmatpush.msra.mxu0 %v1117
    %1240 = vmatpush.msra.mxu0 %v1116
    %1241 = vmatpush.msra.mxu0 %v1115
    %1242 = vmatpush.msra.mxu0 %v1114
    %1243 = vmatpush.msra.mxu0 %v1113
    %1244 = vmatpush.msra.mxu0 %v1112
    %1245 = vmatpush.msra.mxu0 %v1111
    %1246 = vmatpush.msra.mxu0 %v1110
    %1247 = vmatpush.msra.mxu0 %v1109
    %1248 = vmatpush.msra.mxu0 %v1108
    %1249 = vmatmul.f32.gmra.mxu0 %v1016
    %v1250 = vpop.f32.mrf.mxu0
    %v1251 = vadd.f32 %v1228, %v1250
    %1252 = vmatmul.f32.gmra.mxu0 %v1019
    %v1253 = vpop.f32.mrf.mxu0
    %v1254 = vadd.f32 %v1231, %v1253
    %1255 = vdwg.mxu0
    %1256 = vmatpush.msra.mxu0 %v1139
    %1257 = vmatpush.msra.mxu0 %v1138
    %1258 = vmatpush.msra.mxu0 %v1137
    %1259 = vmatpush.msra.mxu0 %v1136
    %1260 = vmatpush.msra.mxu0 %v1135
    %1261 = vmatpush.msra.mxu0 %v1134
    %1262 = vmatpush.msra.mxu0 %v1133
    %1263 = vmatpush.msra.mxu0 %v1132
    %1264 = vmatpush.msra.mxu0 %v1131
    %1265 = vmatpush.msra.mxu0 %v1130
    %1266 = vmatpush.msra.mxu0 %v1129
    %1267 = vmatpush.msra.mxu0 %v1128
    %1268 = vmatpush.msra.mxu0 %v1127
    %1269 = vmatpush.msra.mxu0 %v1126
    %1270 = vmatpush.msra.mxu0 %v1125
    %1271 = vmatpush.msra.mxu0 %v1124
    %1272 = vmatmul.f32.gmra.mxu0 %v1039
    %v1273 = vpop.f32.mrf.mxu0
    %v1274 = vadd.f32 %v1251, %v1273
    %1275 = vmatmul.f32.gmra.mxu0 %v1042
    %v1276 = vpop.f32.mrf.mxu0
    %v1277 = vadd.f32 %v1254, %v1276
    %1278 = vdwg.mxu0
    %v1279 = vmax.f32 %v1274, 0.0
    %v1280 = vmax.f32 %v1277, 0.0
    %v1282 = vrot.slane %v1279, 2
    %v1284 = vrot.slane %v1279, 4
    %v1286 = vrot.slane %v1279, 6
    %v1289 = vrot.slane %v1280, 2
    %v1291 = vld [vmem:[#allocation7 + $0x180] sm:$0xff]
    %v1292 = vld [vmem:[#allocation7 + $0x188] sm:$0xff]
    %v1293 = vld [vmem:[#allocation7 + $0x190] sm:$0xff]
    %v1294 = vld [vmem:[#allocation7 + $0x198] sm:$0xff]
    %v1295 = vld [vmem:[#allocation7 + $0x1a0] sm:$0xff]
    %v1296 = vld [vmem:[#allocation7 + $0x1a8] sm:$0xff]
    %v1297 = vld [vmem:[#allocation7 + $0x1b0] sm:$0xff]
    %v1298 = vld [vmem:[#allocation7 + $0x1b8] sm:$0xff]
    %v1299 = vld [vmem:[#allocation7 + $0x1c0] sm:$0xff]
    %v1300 = vld [vmem:[#allocation7 + $0x1c8] sm:$0xff]
    %v1301 = vld [vmem:[#allocation7 + $0x1d0] sm:$0xff]
    %v1302 = vld [vmem:[#allocation7 + $0x1d8] sm:$0xff]
    %v1303 = vld [vmem:[#allocation7 + $0x1e0] sm:$0xff]
    %v1304 = vld [vmem:[#allocation7 + $0x1e8] sm:$0xff]
    %v1305 = vld [vmem:[#allocation7 + $0x1f0] sm:$0xff]
    %v1306 = vld [vmem:[#allocation7 + $0x1f8] sm:$0xff]
    %v1307 = vld [vmem:[#allocation7 + $0x200] sm:$0xff]
    %v1308 = vld [vmem:[#allocation7 + $0x208] sm:$0xff]
    %v1309 = vld [vmem:[#allocation7 + $0x210] sm:$0xff]
    %v1310 = vld [vmem:[#allocation7 + $0x218] sm:$0xff]
    %v1311 = vld [vmem:[#allocation7 + $0x220] sm:$0xff]
    %v1312 = vld [vmem:[#allocation7 + $0x228] sm:$0xff]
    %v1313 = vld [vmem:[#allocation7 + $0x230] sm:$0xff]
    %v1314 = vld [vmem:[#allocation7 + $0x238] sm:$0xff]
    %v1315 = vld [vmem:[#allocation7 + $0x240] sm:$0xff]
    %v1316 = vld [vmem:[#allocation7 + $0x248] sm:$0xff]
    %v1317 = vld [vmem:[#allocation7 + $0x250] sm:$0xff]
    %v1318 = vld [vmem:[#allocation7 + $0x258] sm:$0xff]
    %v1319 = vld [vmem:[#allocation7 + $0x260] sm:$0xff]
    %v1320 = vld [vmem:[#allocation7 + $0x268] sm:$0xff]
    %v1321 = vld [vmem:[#allocation7 + $0x270] sm:$0xff]
    %v1322 = vld [vmem:[#allocation7 + $0x278] sm:$0xff]
    %v1323 = vld [vmem:[#allocation7 + $0x280] sm:$0xff]
    %v1324 = vld [vmem:[#allocation7 + $0x288] sm:$0xff]
    %v1325 = vld [vmem:[#allocation7 + $0x290] sm:$0xff]
    %v1326 = vld [vmem:[#allocation7 + $0x298] sm:$0xff]
    %v1327 = vld [vmem:[#allocation7 + $0x2a0] sm:$0xff]
    %v1328 = vld [vmem:[#allocation7 + $0x2a8] sm:$0xff]
    %v1329 = vld [vmem:[#allocation7 + $0x2b0] sm:$0xff]
    %v1330 = vld [vmem:[#allocation7 + $0x2b8] sm:$0xff]
    %v1331 = vld [vmem:[#allocation7 + $0x2c0] sm:$0xff]
    %v1332 = vld [vmem:[#allocation7 + $0x2c8] sm:$0xff]
    %v1333 = vld [vmem:[#allocation7 + $0x2d0] sm:$0xff]
    %v1334 = vld [vmem:[#allocation7 + $0x2d8] sm:$0xff]
    %v1335 = vld [vmem:[#allocation7 + $0x2e0] sm:$0xff]
    %v1336 = vld [vmem:[#allocation7 + $0x2e8] sm:$0xff]
    %v1337 = vld [vmem:[#allocation7 + $0x2f0] sm:$0xff]
    %v1338 = vld [vmem:[#allocation7 + $0x2f8] sm:$0xff]
    %v1339 = vld [vmem:[#allocation7 + $0x300] sm:$0xff]
    %v1340 = vld [vmem:[#allocation7 + $0x308] sm:$0xff]
    %v1341 = vld [vmem:[#allocation7 + $0x310] sm:$0xff]
    %v1342 = vld [vmem:[#allocation7 + $0x318] sm:$0xff]
    %v1343 = vld [vmem:[#allocation7 + $0x320] sm:$0xff]
    %v1344 = vld [vmem:[#allocation7 + $0x328] sm:$0xff]
    %v1345 = vld [vmem:[#allocation7 + $0x330] sm:$0xff]
    %v1346 = vld [vmem:[#allocation7 + $0x338] sm:$0xff]
    %v1347 = vld [vmem:[#allocation7 + $0x340] sm:$0xff]
    %v1348 = vld [vmem:[#allocation7 + $0x348] sm:$0xff]
    %v1349 = vld [vmem:[#allocation7 + $0x350] sm:$0xff]
    %v1350 = vld [vmem:[#allocation7 + $0x358] sm:$0xff]
    %v1351 = vld [vmem:[#allocation7 + $0x360] sm:$0xff]
    %v1352 = vld [vmem:[#allocation7 + $0x368] sm:$0xff]
    %v1353 = vld [vmem:[#allocation7 + $0x370] sm:$0xff]
    %v1354 = vld [vmem:[#allocation7 + $0x378] sm:$0xff]
    %v1355 = vld [vmem:[#allocation7 + $0x380] sm:$0xff]
    %v1356 = vld [vmem:[#allocation7 + $0x388] sm:$0xff]
    %v1357 = vld [vmem:[#allocation7 + $0x390] sm:$0xff]
    %v1358 = vld [vmem:[#allocation7 + $0x398] sm:$0xff]
    %v1359 = vld [vmem:[#allocation7 + $0x3a0] sm:$0xff]
    %v1360 = vld [vmem:[#allocation7 + $0x3a8] sm:$0xff]
    %v1361 = vld [vmem:[#allocation7 + $0x3b0] sm:$0xff]
    %v1362 = vld [vmem:[#allocation7 + $0x3b8] sm:$0xff]
    %v1363 = vld [vmem:[#allocation7 + $0x3c0] sm:$0xff]
    %v1364 = vld [vmem:[#allocation7 + $0x3c8] sm:$0xff]
    %v1365 = vld [vmem:[#allocation7 + $0x3d0] sm:$0xff]
    %v1366 = vld [vmem:[#allocation7 + $0x3d8] sm:$0xff]
    %v1367 = vld [vmem:[#allocation7 + $0x3e0] sm:$0xff]
    %v1368 = vld [vmem:[#allocation7 + $0x3e8] sm:$0xff]
    %v1369 = vld [vmem:[#allocation7 + $0x3f0] sm:$0xff]
    %v1370 = vld [vmem:[#allocation7 + $0x3f8] sm:$0xff]
    %v1371 = vld [vmem:[#allocation7 + $0x400] sm:$0xff]
    %v1372 = vld [vmem:[#allocation7 + $0x408] sm:$0xff]
    %v1373 = vld [vmem:[#allocation7 + $0x410] sm:$0xff]
    %v1374 = vld [vmem:[#allocation7 + $0x418] sm:$0xff]
    %v1375 = vld [vmem:[#allocation7 + $0x420] sm:$0xff]
    %v1376 = vld [vmem:[#allocation7 + $0x428] sm:$0xff]
    %v1377 = vld [vmem:[#allocation7 + $0x430] sm:$0xff]
    %v1378 = vld [vmem:[#allocation7 + $0x438] sm:$0xff]
    %v1379 = vld [vmem:[#allocation7 + $0x440] sm:$0xff]
    %v1380 = vld [vmem:[#allocation7 + $0x448] sm:$0xff]
    %v1381 = vld [vmem:[#allocation7 + $0x450] sm:$0xff]
    %v1382 = vld [vmem:[#allocation7 + $0x458] sm:$0xff]
    %v1383 = vld [vmem:[#allocation7 + $0x460] sm:$0xff]
    %v1384 = vld [vmem:[#allocation7 + $0x468] sm:$0xff]
    %v1385 = vld [vmem:[#allocation7 + $0x470] sm:$0xff]
    %v1386 = vld [vmem:[#allocation7 + $0x478] sm:$0xff]
    %v1387 = vld [vmem:[#allocation7 + $0x480] sm:$0xff]
    %v1388 = vld [vmem:[#allocation7 + $0x488] sm:$0xff]
    %v1389 = vld [vmem:[#allocation7 + $0x490] sm:$0xff]
    %v1390 = vld [vmem:[#allocation7 + $0x498] sm:$0xff]
    %v1391 = vld [vmem:[#allocation7 + $0x4a0] sm:$0xff]
    %v1392 = vld [vmem:[#allocation7 + $0x4a8] sm:$0xff]
    %v1393 = vld [vmem:[#allocation7 + $0x4b0] sm:$0xff]
    %v1394 = vld [vmem:[#allocation7 + $0x4b8] sm:$0xff]
    %v1395 = vld [vmem:[#allocation7 + $0x4c0] sm:$0xff]
    %v1396 = vld [vmem:[#allocation7 + $0x4c8] sm:$0xff]
    %v1397 = vld [vmem:[#allocation7 + $0x4d0] sm:$0xff]
    %v1398 = vld [vmem:[#allocation7 + $0x4d8] sm:$0xff]
    %v1399 = vld [vmem:[#allocation7 + $0x4e0] sm:$0xff]
    %v1400 = vld [vmem:[#allocation7 + $0x4e8] sm:$0xff]
    %v1401 = vld [vmem:[#allocation7 + $0x4f0] sm:$0xff]
    %v1402 = vld [vmem:[#allocation7 + $0x4f8] sm:$0xff]
    %v1403 = vld [vmem:[#allocation7 + $0x500] sm:$0xff]
    %v1404 = vld [vmem:[#allocation7 + $0x508] sm:$0xff]
    %v1405 = vld [vmem:[#allocation7 + $0x510] sm:$0xff]
    %v1406 = vld [vmem:[#allocation7 + $0x518] sm:$0xff]
    %v1407 = vld [vmem:[#allocation7 + $0x520] sm:$0xff]
    %v1408 = vld [vmem:[#allocation7 + $0x528] sm:$0xff]
    %v1409 = vld [vmem:[#allocation7 + $0x530] sm:$0xff]
    %v1410 = vld [vmem:[#allocation7 + $0x538] sm:$0xff]
    %v1411 = vld [vmem:[#allocation7 + $0x540] sm:$0xff]
    %v1412 = vld [vmem:[#allocation7 + $0x548] sm:$0xff]
    %v1413 = vld [vmem:[#allocation7 + $0x550] sm:$0xff]
    %v1414 = vld [vmem:[#allocation7 + $0x558] sm:$0xff]
    %v1415 = vld [vmem:[#allocation7 + $0x560] sm:$0xff]
    %v1416 = vld [vmem:[#allocation7 + $0x568] sm:$0xff]
    %v1417 = vld [vmem:[#allocation7 + $0x570] sm:$0xff]
    %v1418 = vld [vmem:[#allocation7 + $0x578] sm:$0xff]
    %v1419 = vld [vmem:[#allocation7 + $0x580] sm:$0xff]
    %v1420 = vld [vmem:[#allocation7 + $0x588] sm:$0xff]
    %v1421 = vld [vmem:[#allocation7 + $0x590] sm:$0xff]
    %v1422 = vld [vmem:[#allocation7 + $0x598] sm:$0xff]
    %v1423 = vld [vmem:[#allocation7 + $0x5a0] sm:$0xff]
    %v1424 = vld [vmem:[#allocation7 + $0x5a8] sm:$0xff]
    %v1425 = vld [vmem:[#allocation7 + $0x5b0] sm:$0xff]
    %v1426 = vld [vmem:[#allocation7 + $0x5b8] sm:$0xff]
    %v1427 = vld [vmem:[#allocation7 + $0x5c0] sm:$0xff]
    %v1428 = vld [vmem:[#allocation7 + $0x5c8] sm:$0xff]
    %v1429 = vld [vmem:[#allocation7 + $0x5d0] sm:$0xff]
    %v1430 = vld [vmem:[#allocation7 + $0x5d8] sm:$0xff]
    %v1431 = vld [vmem:[#allocation7 + $0x5e0] sm:$0xff]
    %v1432 = vld [vmem:[#allocation7 + $0x5e8] sm:$0xff]
    %v1433 = vld [vmem:[#allocation7 + $0x5f0] sm:$0xff]
    %v1434 = vld [vmem:[#allocation7 + $0x5f8] sm:$0xff]
    %v1435 = vld [vmem:[#allocation7 + $0x600] sm:$0xff]
    %v1436 = vld [vmem:[#allocation7 + $0x608] sm:$0xff]
    %v1437 = vld [vmem:[#allocation7 + $0x610] sm:$0xff]
    %v1438 = vld [vmem:[#allocation7 + $0x618] sm:$0xff]
    %v1439 = vld [vmem:[#allocation7 + $0x620] sm:$0xff]
    %v1440 = vld [vmem:[#allocation7 + $0x628] sm:$0xff]
    %v1441 = vld [vmem:[#allocation7 + $0x630] sm:$0xff]
    %v1442 = vld [vmem:[#allocation7 + $0x638] sm:$0xff]
    %v1443 = vld [vmem:[#allocation7 + $0x640] sm:$0xff]
    %v1444 = vld [vmem:[#allocation7 + $0x648] sm:$0xff]
    %v1445 = vld [vmem:[#allocation7 + $0x650] sm:$0xff]
    %v1446 = vld [vmem:[#allocation7 + $0x658] sm:$0xff]
    %v1447 = vld [vmem:[#allocation7 + $0x660] sm:$0xff]
    %v1448 = vld [vmem:[#allocation7 + $0x668] sm:$0xff]
    %v1449 = vld [vmem:[#allocation7 + $0x670] sm:$0xff]
    %v1450 = vld [vmem:[#allocation7 + $0x678] sm:$0xff]
    %v1451 = vld [vmem:[#allocation7 + $0x680] sm:$0xff]
    %v1452 = vld [vmem:[#allocation7 + $0x688] sm:$0xff]
    %v1453 = vld [vmem:[#allocation7 + $0x690] sm:$0xff]
    %v1454 = vld [vmem:[#allocation7 + $0x698] sm:$0xff]
    %v1455 = vld [vmem:[#allocation7 + $0x6a0] sm:$0xff]
    %v1456 = vld [vmem:[#allocation7 + $0x6a8] sm:$0xff]
    %v1457 = vld [vmem:[#allocation7 + $0x6b0] sm:$0xff]
    %v1458 = vld [vmem:[#allocation7 + $0x6b8] sm:$0xff]
    %v1459 = vld [vmem:[#allocation7 + $0x6c0] sm:$0xff]
    %v1460 = vld [vmem:[#allocation7 + $0x6c8] sm:$0xff]
    %v1461 = vld [vmem:[#allocation7 + $0x6d0] sm:$0xff]
    %v1462 = vld [vmem:[#allocation7 + $0x6d8] sm:$0xff]
    %v1463 = vld [vmem:[#allocation7 + $0x6e0] sm:$0xff]
    %v1464 = vld [vmem:[#allocation7 + $0x6e8] sm:$0xff]
    %v1465 = vld [vmem:[#allocation7 + $0x6f0] sm:$0xff]
    %v1466 = vld [vmem:[#allocation7 + $0x6f8] sm:$0xff]
    %v1467 = vld [vmem:[#allocation7 + $0x700] sm:$0xff]
    %v1468 = vld [vmem:[#allocation7 + $0x708] sm:$0xff]
    %v1469 = vld [vmem:[#allocation7 + $0x710] sm:$0xff]
    %v1470 = vld [vmem:[#allocation7 + $0x718] sm:$0xff]
    %v1471 = vld [vmem:[#allocation7 + $0x720] sm:$0xff]
    %v1472 = vld [vmem:[#allocation7 + $0x728] sm:$0xff]
    %v1473 = vld [vmem:[#allocation7 + $0x730] sm:$0xff]
    %v1474 = vld [vmem:[#allocation7 + $0x738] sm:$0xff]
    %v1475 = vld [vmem:[#allocation7 + $0x740] sm:$0xff]
    %v1476 = vld [vmem:[#allocation7 + $0x748] sm:$0xff]
    %v1477 = vld [vmem:[#allocation7 + $0x750] sm:$0xff]
    %v1478 = vld [vmem:[#allocation7 + $0x758] sm:$0xff]
    %v1479 = vld [vmem:[#allocation7 + $0x760] sm:$0xff]
    %v1480 = vld [vmem:[#allocation7 + $0x768] sm:$0xff]
    %v1481 = vld [vmem:[#allocation7 + $0x770] sm:$0xff]
    %v1482 = vld [vmem:[#allocation7 + $0x778] sm:$0xff]
    %s1483 = scalar_lea.vmem [#allocation7], 1938
    %v1484 = vld [vmem:[%s1483] ss:$8 sm:$0x3]
    %v1486 = vperm.slane %v1484, 0
    %v1487 = vperm.slane %v1484, 1
    %1490 = vmatpush.msra.mxu0 %v1321
    %1491 = vmatpush.msra.mxu0 %v1319
    %1492 = vmatpush.msra.mxu0 %v1317
    %1493 = vmatpush.msra.mxu0 %v1315
    %1494 = vmatpush.msra.mxu0 %v1313
    %1495 = vmatpush.msra.mxu0 %v1311
    %1496 = vmatpush.msra.mxu0 %v1309
    %1497 = vmatpush.msra.mxu0 %v1307
    %1498 = vmatpush.msra.mxu0 %v1305
    %1499 = vmatpush.msra.mxu0 %v1303
    %1500 = vmatpush.msra.mxu0 %v1301
    %1501 = vmatpush.msra.mxu0 %v1299
    %1502 = vmatpush.msra.mxu0 %v1297
    %1503 = vmatpush.msra.mxu0 %v1295
    %1504 = vmatpush.msra.mxu0 %v1293
    %1505 = vmatpush.msra.mxu0 %v1291
    %1506 = vmatmul.f32.gmra.mxu0 %v1279
    %v1507 = vpop.f32.mrf.mxu0
    %v1508 = vadd.f32 %v1486, %v1507
    %1509 = vdwg.mxu0
    %1510 = vmatpush.msra.mxu0 %v1353
    %1511 = vmatpush.msra.mxu0 %v1351
    %1512 = vmatpush.msra.mxu0 %v1349
    %1513 = vmatpush.msra.mxu0 %v1347
    %1514 = vmatpush.msra.mxu0 %v1345
    %1515 = vmatpush.msra.mxu0 %v1343
    %1516 = vmatpush.msra.mxu0 %v1341
    %1517 = vmatpush.msra.mxu0 %v1339
    %1518 = vmatpush.msra.mxu0 %v1337
    %1519 = vmatpush.msra.mxu0 %v1335
    %1520 = vmatpush.msra.mxu0 %v1333
    %1521 = vmatpush.msra.mxu0 %v1331
    %1522 = vmatpush.msra.mxu0 %v1329
    %1523 = vmatpush.msra.mxu0 %v1327
    %1524 = vmatpush.msra.mxu0 %v1325
    %1525 = vmatpush.msra.mxu0 %v1323
    %1526 = vmatmul.f32.gmra.mxu0 %v1282
    %v1527 = vpop.f32.mrf.mxu0
    %v1528 = vadd.f32 %v1508, %v1527
    %1529 = vdwg.mxu0
    %1530 = vmatpush.msra.mxu0 %v1385
    %1531 = vmatpush.msra.mxu0 %v1383
    %1532 = vmatpush.msra.mxu0 %v1381
    %1533 = vmatpush.msra.mxu0 %v1379
    %1534 = vmatpush.msra.mxu0 %v1377
    %1535 = vmatpush.msra.mxu0 %v1375
    %1536 = vmatpush.msra.mxu0 %v1373
    %1537 = vmatpush.msra.mxu0 %v1371
    %1538 = vmatpush.msra.mxu0 %v1369
    %1539 = vmatpush.msra.mxu0 %v1367
    %1540 = vmatpush.msra.mxu0 %v1365
    %1541 = vmatpush.msra.mxu0 %v1363
    %1542 = vmatpush.msra.mxu0 %v1361
    %1543 = vmatpush.msra.mxu0 %v1359
    %1544 = vmatpush.msra.mxu0 %v1357
    %1545 = vmatpush.msra.mxu0 %v1355
    %1546 = vmatmul.f32.gmra.mxu0 %v1284
    %v1547 = vpop.f32.mrf.mxu0
    %v1548 = vadd.f32 %v1528, %v1547
    %1549 = vdwg.mxu0
    %1550 = vmatpush.msra.mxu0 %v1417
    %1551 = vmatpush.msra.mxu0 %v1415
    %1552 = vmatpush.msra.mxu0 %v1413
    %1553 = vmatpush.msra.mxu0 %v1411
    %1554 = vmatpush.msra.mxu0 %v1409
    %1555 = vmatpush.msra.mxu0 %v1407
    %1556 = vmatpush.msra.mxu0 %v1405
    %1557 = vmatpush.msra.mxu0 %v1403
    %1558 = vmatpush.msra.mxu0 %v1401
    %1559 = vmatpush.msra.mxu0 %v1399
    %1560 = vmatpush.msra.mxu0 %v1397
    %1561 = vmatpush.msra.mxu0 %v1395
    %1562 = vmatpush.msra.mxu0 %v1393
    %1563 = vmatpush.msra.mxu0 %v1391
    %1564 = vmatpush.msra.mxu0 %v1389
    %1565 = vmatpush.msra.mxu0 %v1387
    %1566 = vmatmul.f32.gmra.mxu0 %v1286
    %v1567 = vpop.f32.mrf.mxu0
    %v1568 = vadd.f32 %v1548, %v1567
    %1569 = vdwg.mxu0
    %1570 = vmatpush.msra.mxu0 %v1449
    %1571 = vmatpush.msra.mxu0 %v1447
    %1572 = vmatpush.msra.mxu0 %v1445
    %1573 = vmatpush.msra.mxu0 %v1443
    %1574 = vmatpush.msra.mxu0 %v1441
    %1575 = vmatpush.msra.mxu0 %v1439
    %1576 = vmatpush.msra.mxu0 %v1437
    %1577 = vmatpush.msra.mxu0 %v1435
    %1578 = vmatpush.msra.mxu0 %v1433
    %1579 = vmatpush.msra.mxu0 %v1431
    %1580 = vmatpush.msra.mxu0 %v1429
    %1581 = vmatpush.msra.mxu0 %v1427
    %1582 = vmatpush.msra.mxu0 %v1425
    %1583 = vmatpush.msra.mxu0 %v1423
    %1584 = vmatpush.msra.mxu0 %v1421
    %1585 = vmatpush.msra.mxu0 %v1419
    %1586 = vmatmul.f32.gmra.mxu0 %v1280
    %v1587 = vpop.f32.mrf.mxu0
    %v1588 = vadd.f32 %v1568, %v1587
    %1589 = vdwg.mxu0
    %1590 = vmatpush.msra.mxu0 %v1481
    %1591 = vmatpush.msra.mxu0 %v1479
    %1592 = vmatpush.msra.mxu0 %v1477
    %1593 = vmatpush.msra.mxu0 %v1475
    %1594 = vmatpush.msra.mxu0 %v1473
    %1595 = vmatpush.msra.mxu0 %v1471
    %1596 = vmatpush.msra.mxu0 %v1469
    %1597 = vmatpush.msra.mxu0 %v1467
    %1598 = vmatpush.msra.mxu0 %v1465
    %1599 = vmatpush.msra.mxu0 %v1463
    %1600 = vmatpush.msra.mxu0 %v1461
    %1601 = vmatpush.msra.mxu0 %v1459
    %1602 = vmatpush.msra.mxu0 %v1457
    %1603 = vmatpush.msra.mxu0 %v1455
    %1604 = vmatpush.msra.mxu0 %v1453
    %1605 = vmatpush.msra.mxu0 %v1451
    %1606 = vmatmul.f32.gmra.mxu0 %v1289
    %v1607 = vpop.f32.mrf.mxu0
    %v1608 = vadd.f32 %v1588, %v1607
    %1609 = vdwg.mxu0
    %1610 = vmatpush.msra.mxu0 %v1322
    %1611 = vmatpush.msra.mxu0 %v1320
    %1612 = vmatpush.msra.mxu0 %v1318
    %1613 = vmatpush.msra.mxu0 %v1316
    %1614 = vmatpush.msra.mxu0 %v1314
    %1615 = vmatpush.msra.mxu0 %v1312
    %1616 = vmatpush.msra.mxu0 %v1310
    %1617 = vmatpush.msra.mxu0 %v1308
    %1618 = vmatpush.msra.mxu0 %v1306
    %1619 = vmatpush.msra.mxu0 %v1304
    %1620 = vmatpush.msra.mxu0 %v1302
    %1621 = vmatpush.msra.mxu0 %v1300
    %1622 = vmatpush.msra.mxu0 %v1298
    %1623 = vmatpush.msra.mxu0 %v1296
    %1624 = vmatpush.msra.mxu0 %v1294
    %1625 = vmatpush.msra.mxu0 %v1292
    %1626 = vmatmul.f32.gmra.mxu0 %v1279
    %v1627 = vpop.f32.mrf.mxu0
    %v1628 = vadd.f32 %v1487, %v1627
    %1629 = vdwg.mxu0
    %1630 = vmatpush.msra.mxu0 %v1354
    %1631 = vmatpush.msra.mxu0 %v1352
    %1632 = vmatpush.msra.mxu0 %v1350
    %1633 = vmatpush.msra.mxu0 %v1348
    %1634 = vmatpush.msra.mxu0 %v1346
    %1635 = vmatpush.msra.mxu0 %v1344
    %1636 = vmatpush.msra.mxu0 %v1342
    %1637 = vmatpush.msra.mxu0 %v1340
    %1638 = vmatpush.msra.mxu0 %v1338
    %1639 = vmatpush.msra.mxu0 %v1336
    %1640 = vmatpush.msra.mxu0 %v1334
    %1641 = vmatpush.msra.mxu0 %v1332
    %1642 = vmatpush.msra.mxu0 %v1330
    %1643 = vmatpush.msra.mxu0 %v1328
    %1644 = vmatpush.msra.mxu0 %v1326
    %1645 = vmatpush.msra.mxu0 %v1324
    %1646 = vmatmul.f32.gmra.mxu0 %v1282
    %v1647 = vpop.f32.mrf.mxu0
    %v1648 = vadd.f32 %v1628, %v1647
    %1649 = vdwg.mxu0
    %1650 = vmatpush.msra.mxu0 %v1386
    %1651 = vmatpush.msra.mxu0 %v1384
    %1652 = vmatpush.msra.mxu0 %v1382
    %1653 = vmatpush.msra.mxu0 %v1380
    %1654 = vmatpush.msra.mxu0 %v1378
    %1655 = vmatpush.msra.mxu0 %v1376
    %1656 = vmatpush.msra.mxu0 %v1374
    %1657 = vmatpush.msra.mxu0 %v1372
    %1658 = vmatpush.msra.mxu0 %v1370
    %1659 = vmatpush.msra.mxu0 %v1368
    %1660 = vmatpush.msra.mxu0 %v1366
    %1661 = vmatpush.msra.mxu0 %v1364
    %1662 = vmatpush.msra.mxu0 %v1362
    %1663 = vmatpush.msra.mxu0 %v1360
    %1664 = vmatpush.msra.mxu0 %v1358
    %1665 = vmatpush.msra.mxu0 %v1356
    %1666 = vmatmul.f32.gmra.mxu0 %v1284
    %v1667 = vpop.f32.mrf.mxu0
    %v1668 = vadd.f32 %v1648, %v1667
    %1669 = vdwg.mxu0
    %1670 = vmatpush.msra.mxu0 %v1418
    %1671 = vmatpush.msra.mxu0 %v1416
    %1672 = vmatpush.msra.mxu0 %v1414
    %1673 = vmatpush.msra.mxu0 %v1412
    %1674 = vmatpush.msra.mxu0 %v1410
    %1675 = vmatpush.msra.mxu0 %v1408
    %1676 = vmatpush.msra.mxu0 %v1406
    %1677 = vmatpush.msra.mxu0 %v1404
    %1678 = vmatpush.msra.mxu0 %v1402
    %1679 = vmatpush.msra.mxu0 %v1400
    %1680 = vmatpush.msra.mxu0 %v1398
    %1681 = vmatpush.msra.mxu0 %v1396
    %1682 = vmatpush.msra.mxu0 %v1394
    %1683 = vmatpush.msra.mxu0 %v1392
    %1684 = vmatpush.msra.mxu0 %v1390
    %1685 = vmatpush.msra.mxu0 %v1388
    %1686 = vmatmul.f32.gmra.mxu0 %v1286
    %v1687 = vpop.f32.mrf.mxu0
    %v1688 = vadd.f32 %v1668, %v1687
    %1689 = vdwg.mxu0
    %1690 = vmatpush.msra.mxu0 %v1450
    %1691 = vmatpush.msra.mxu0 %v1448
    %1692 = vmatpush.msra.mxu0 %v1446
    %1693 = vmatpush.msra.mxu0 %v1444
    %1694 = vmatpush.msra.mxu0 %v1442
    %1695 = vmatpush.msra.mxu0 %v1440
    %1696 = vmatpush.msra.mxu0 %v1438
    %1697 = vmatpush.msra.mxu0 %v1436
    %1698 = vmatpush.msra.mxu0 %v1434
    %1699 = vmatpush.msra.mxu0 %v1432
    %1700 = vmatpush.msra.mxu0 %v1430
    %1701 = vmatpush.msra.mxu0 %v1428
    %1702 = vmatpush.msra.mxu0 %v1426
    %1703 = vmatpush.msra.mxu0 %v1424
    %1704 = vmatpush.msra.mxu0 %v1422
    %1705 = vmatpush.msra.mxu0 %v1420
    %1706 = vmatmul.f32.gmra.mxu0 %v1280
    %v1707 = vpop.f32.mrf.mxu0
    %v1708 = vadd.f32 %v1688, %v1707
    %1709 = vdwg.mxu0
    %1710 = vmatpush.msra.mxu0 %v1482
    %1711 = vmatpush.msra.mxu0 %v1480
    %1712 = vmatpush.msra.mxu0 %v1478
    %1713 = vmatpush.msra.mxu0 %v1476
    %1714 = vmatpush.msra.mxu0 %v1474
    %1715 = vmatpush.msra.mxu0 %v1472
    %1716 = vmatpush.msra.mxu0 %v1470
    %1717 = vmatpush.msra.mxu0 %v1468
    %1718 = vmatpush.msra.mxu0 %v1466
    %1719 = vmatpush.msra.mxu0 %v1464
    %1720 = vmatpush.msra.mxu0 %v1462
    %1721 = vmatpush.msra.mxu0 %v1460
    %1722 = vmatpush.msra.mxu0 %v1458
    %1723 = vmatpush.msra.mxu0 %v1456
    %1724 = vmatpush.msra.mxu0 %v1454
    %1725 = vmatpush.msra.mxu0 %v1452
    %1726 = vmatmul.f32.gmra.mxu0 %v1289
    %v1727 = vpop.f32.mrf.mxu0
    %v1728 = vadd.f32 %v1708, %v1727
    %1729 = vdwg.mxu0
    %v1730 = vmax.f32 %v1608, 0.0
    %v1731 = vmax.f32 %v1728, 0.0
    %v1732 = vld [vmem:[#allocation7 + $0x780] sm:$0xff]
    %v1733 = vld [vmem:[#allocation7 + $0x788] sm:$0xff]
    %v1734 = vld [vmem:[#allocation7 + $0x793] ss:$0 sm:$0xff]
    %1735 = vmatpush.xpose.msra.mxu0 0.0
    %1736 = vmatpush.xpose.msra.mxu0 0.0
    %1737 = vmatpush.xpose.msra.mxu0 0.0
    %1738 = vmatpush.xpose.msra.mxu0 0.0
    %1739 = vmatpush.xpose.msra.mxu0 0.0
    %1740 = vmatpush.xpose.msra.mxu0 0.0
    %1741 = vmatpush.xpose.msra.mxu0 0.0
    %1742 = vmatpush.xpose.msra.mxu0 0.0
    %1743 = vmatpush.xpose.msra.mxu0 0.0
    %1744 = vmatpush.xpose.msra.mxu0 0.0
    %1745 = vmatpush.xpose.msra.mxu0 0.0
    %1746 = vmatpush.xpose.msra.mxu0 0.0
    %1747 = vmatpush.xpose.msra.mxu0 0.0
    %1748 = vmatpush.xpose.msra.mxu0 0.0
    %1749 = vmatpush.xpose.msra.mxu0 0.0
    %1750 = vmatpush.xpose.msra.mxu0 %v1732
    %1751 = vmatmul.f32.gmra.mxu0 %v1730
    %v1752 = vpop.f32.mrf.mxu0
    %v1753 = vadd.f32 %v1734, %v1752
    %1754 = vdwg.mxu0
    %1755 = vmatpush.xpose.msra.mxu0 0.0
    %1756 = vmatpush.xpose.msra.mxu0 0.0
    %1757 = vmatpush.xpose.msra.mxu0 0.0
    %1758 = vmatpush.xpose.msra.mxu0 0.0
    %1759 = vmatpush.xpose.msra.mxu0 0.0
    %1760 = vmatpush.xpose.msra.mxu0 0.0
    %1761 = vmatpush.xpose.msra.mxu0 0.0
    %1762 = vmatpush.xpose.msra.mxu0 0.0
    %1763 = vmatpush.xpose.msra.mxu0 0.0
    %1764 = vmatpush.xpose.msra.mxu0 0.0
    %1765 = vmatpush.xpose.msra.mxu0 0.0
    %1766 = vmatpush.xpose.msra.mxu0 0.0
    %1767 = vmatpush.xpose.msra.mxu0 0.0
    %1768 = vmatpush.xpose.msra.mxu0 0.0
    %1769 = vmatpush.xpose.msra.mxu0 0.0
    %1770 = vmatpush.xpose.msra.mxu0 %v1733
    %1771 = vmatmul.f32.gmra.mxu0 %v1731
    %v1772 = vpop.f32.mrf.mxu0
    %v1773 = vadd.f32 %v1753, %v1772
    %1774 = vdwg.mxu0
    %vm1775 = vcmask 1024
    %1776 = vst.msk [vmem:[%s3] sm:$0x3] %vm1775, %v1773
    %1778 = vrot.lane.b32.xlu0 %v1773, 127
    %v1779 = vpop.permute.xlu0 %1778
    %vm1781 = vcmask 41984
    %1782 = vst.msk [vmem:[#allocation8] sm:$0x3] %vm1781, %v1779
    // Predicated region
    $region26: #{forward.1} parent=1 // pred_check
      _
    $region27: #{forward.1} parent=1 // pred_check_branch
      %1784 = sbr.rel (0) target = $region29
    $region28: #{forward.1} parent=1 // pred_region
      _
    $region29: #{forward.1} parent=1 // pred_fallthru
      _
    // Predicated region
    $region30: #{forward.1} parent=1 // pred_check
      _
    $region31: #{forward.1} parent=1 // pred_check_branch
      %1786 = sbr.rel (0) target = $region33
    $region32: #{forward.1} parent=1 // pred_region
      %1788 = vsyncadd [#allocation4], 0
      %s1790 = sshll.u32 [#allocation8], 4
      %s1791 = int_to_ptr.vmem [resolvable:$true] %s1790
      %s1792 = sshll.u32 %s4, 4
      %s1793 = int_to_ptr.hbm [resolvable:$true] %s1792
      %1795 = dma.vmem_to_hbm [thread:$0]  %s1791, 32, %s1793, [#allocation4]
    $region33: #{forward.1} parent=1 // pred_fallthru
      _
    // Predicated region
    $region34: #{forward.1} parent=1 // pred_check
      _
    $region35: #{forward.1} parent=1 // pred_check_branch
      %1797 = sbr.rel (0) target = $region37
    $region36: #{forward.1} parent=1 // pred_region
      _
    $region37: #{forward.1} parent=1 // pred_fallthru
      _
    // Predicated region
    $region38: #{forward.1} parent=1 // pred_check
      _
    $region39: #{forward.1} parent=1 // pred_check_branch
      %1799 = sbr.rel (0) target = $region41
    $region40: #{forward.1} parent=1 // pred_region
      %1801 = dma.done [#allocation4], 32
    $region41: #{forward.1} parent=1 // pred_fallthru
      _
    %1802 = vsyncpa [#allocation3], 1
    %1803 = vsyncpa [#allocation6], 1
    %1804 = vsyncpa [#allocation4], 1

// kernel: forward.1
$region0: #{forward.1}
  #allocation0 [shape = 'u32[]', space=smem, size = 0x4, offset = 0x4, fixed_abs, tag = 'smem constant byte address 0x4 - core index']
  #allocation1 [shape = 'u32[72,128]{1,0:T(1,128)}', space=vmem, size = 0x9000, scoped, tag = 'internal scratch']
  %s0 = inlined_call_operand.hbm [shape: f32[128,16], index: 0, kind: input, shape index: {}]
  %s1 = inlined_call_operand.hbm [shape: f32[1200,128], index: 1, kind: input, shape index: {}]
  %s2 = inlined_call_operand.hbm [shape: f32[976,256], index: 2, kind: input, shape index: {}]
  %s3 = inlined_call_operand.vmem [shape: f32[2,1], index: 3, kind: output, shape index: {0}]
  %s4 = inlined_call_operand.hbm [shape: f32[2,6], index: 4, kind: output, shape index: {1}]
  %5 = xla_tuple %s3, %s4
  %s6 = sld [smem:[#allocation0]]
  $region42: #{forward.1} parent=0
    _
  %s8 = ssub.s32 1, %s6
  %s9 = scalar_select 0, %s8, %s6
  $region1: #{forward.1} parent=0
    #allocation2 [shape = 'u8[65536]{0}', space=vmem, size = 0x10000, scoped, tag = 'input window, operand 0, single buffered']
    #allocation3 [shape = 's32[1]{0}', space=sflag, size = 0x4, scoped, tag = 'scoped memory for forward.1']
    #allocation4 [shape = 's32[1]{0}', space=sflag, size = 0x4, scoped, tag = 'scoped memory for forward.1']
    #allocation5 [shape = 'u8[614400]{0}', space=vmem, size = 0x96000, scoped, tag = 'input window, operand 1, single buffered']
    #allocation6 [shape = 's32[1]{0}', space=sflag, size = 0x4, scoped, tag = 'scoped memory for forward.1']
    #allocation7 [shape = 'u8[999424]{0}', space=vmem, size = 0xf4000, scoped, tag = 'input window, operand 2, single buffered']
    #allocation8 [shape = 'u8[1024]{0}', space=vmem, size = 0x400, scoped, tag = 'output window, operand 1, single buffered']
    %10 = vsyncpa [#allocation3], 0
    %11 = vsyncpa [#allocation6], 0
    %12 = vsyncpa [#allocation4], 0
    // Predicated region
    $region2: #{forward.1} parent=1 // pred_check
      _
    $region3: #{forward.1} parent=1 // pred_check_branch
      %14 = sbr.rel (0) target = $region5
    $region4: #{forward.1} parent=1 // pred_region
      %16 = vsyncadd [#allocation3], 0
      %s17 = sshll.u32 %s0, 4
      %s18 = int_to_ptr.hbm [resolvable:$true] %s17
      %s19 = sshll.u32 [#allocation2], 4
      %s20 = int_to_ptr.vmem [resolvable:$true] %s19
      %25 = dma.hbm_to_vmem [thread:$0]  %s18, 2048, %s20, [#allocation3], 128, 128, 8
    $region5: #{forward.1} parent=1 // pred_fallthru
      _
    // Predicated region
    $region6: #{forward.1} parent=1 // pred_check
      _
    $region7: #{forward.1} parent=1 // pred_check_branch
      %27 = sbr.rel (0) target = $region9
    $region8: #{forward.1} parent=1 // pred_region
      %29 = vsyncadd [#allocation6], 0
      %s30 = sshll.u32 %s1, 4
      %s31 = int_to_ptr.hbm [resolvable:$true] %s30
      %s32 = sshll.u32 [#allocation5], 4
      %s33 = int_to_ptr.vmem [resolvable:$true] %s32
      %38 = dma.hbm_to_vmem [thread:$0]  %s31, 19200, %s33, [#allocation6], 128, 128, 8
    $region9: #{forward.1} parent=1 // pred_fallthru
      _
    // Predicated region
    $region10: #{forward.1} parent=1 // pred_check
      _
    $region11: #{forward.1} parent=1 // pred_check_branch
      %40 = sbr.rel (0) target = $region13
    $region12: #{forward.1} parent=1 // pred_region
      %42 = vsyncadd [#allocation6], 0
      %s43 = sshll.u32 %s2, 4
      %s44 = int_to_ptr.hbm [resolvable:$true] %s43
      %s45 = sshll.u32 [#allocation7], 4
      %s46 = int_to_ptr.vmem [resolvable:$true] %s45
      %51 = dma.hbm_to_vmem [thread:$0]  %s44, 31232, %s46, [#allocation6], 256, 256, 16
    $region13: #{forward.1} parent=1 // pred_fallthru
      _
    // Predicated region
    $region14: #{forward.1} parent=1 // pred_check
      _
    $region15: #{forward.1} parent=1 // pred_check_branch
      %53 = sbr.rel (0) target = $region17
    $region16: #{forward.1} parent=1 // pred_region
      %55 = dma.done [#allocation3], 2048
    $region17: #{forward.1} parent=1 // pred_fallthru
      _
    // Predicated region
    $region18: #{forward.1} parent=1 // pred_check
      _
    $region19: #{forward.1} parent=1 // pred_check_branch
      %57 = sbr.rel (0) target = $region21
    $region20: #{forward.1} parent=1 // pred_region
      %59 = dma.done [#allocation6], 19200
    $region21: #{forward.1} parent=1 // pred_fallthru
      _
    // Predicated region
    $region22: #{forward.1} parent=1 // pred_check
      _
    $region23: #{forward.1} parent=1 // pred_check_branch
      %61 = sbr.rel (0) target = $region25
    $region24: #{forward.1} parent=1 // pred_region
      %63 = dma.done [#allocation6], 31232
    $region25: #{forward.1} parent=1 // pred_fallthru
      _
    %v64 = vld [vmem:[#allocation2] sm:$0xff]
    %v65 = vld [vmem:[#allocation2 + $0x8] sm:$0xff]
    %v66 = vld [vmem:[#allocation2 + $0x10] sm:$0xff]
    %v67 = vld [vmem:[#allocation2 + $0x18] sm:$0xff]
    %v68 = vld [vmem:[#allocation2 + $0x20] sm:$0xff]
    %v69 = vld [vmem:[#allocation2 + $0x28] sm:$0xff]
    %v70 = vld [vmem:[#allocation2 + $0x30] sm:$0xff]
    %v71 = vld [vmem:[#allocation2 + $0x38] sm:$0xff]
    %v72 = vld [vmem:[#allocation2 + $0x40] sm:$0xff]
    %v73 = vld [vmem:[#allocation2 + $0x48] sm:$0xff]
    %v74 = vld [vmem:[#allocation2 + $0x50] sm:$0xff]
    %v75 = vld [vmem:[#allocation2 + $0x58] sm:$0xff]
    %v76 = vld [vmem:[#allocation2 + $0x60] sm:$0xff]
    %v77 = vld [vmem:[#allocation2 + $0x68] sm:$0xff]
    %v78 = vld [vmem:[#allocation2 + $0x70] sm:$0xff]
    %v79 = vld [vmem:[#allocation2 + $0x78] sm:$0xff]
    %v80 = vld [vmem:[#allocation5 + $0x300] sm:$0xff]
    %v81 = vld [vmem:[#allocation5 + $0x308] sm:$0xff]
    %v82 = vld [vmem:[#allocation5 + $0x310] sm:$0xff]
    %v83 = vld [vmem:[#allocation5 + $0x318] sm:$0xf]
    %84 = vmatpush.msra.mxu0 %v79
    %85 = vmatpush.msra.mxu0 %v78
    %86 = vmatpush.msra.mxu0 %v77
    %87 = vmatpush.msra.mxu0 %v76
    %88 = vmatpush.msra.mxu0 %v75
    %89 = vmatpush.msra.mxu0 %v74
    %90 = vmatpush.msra.mxu0 %v73
    %91 = vmatpush.msra.mxu0 %v72
    %92 = vmatpush.msra.mxu0 %v71
    %93 = vmatpush.msra.mxu0 %v70
    %94 = vmatpush.msra.mxu0 %v69
    %95 = vmatpush.msra.mxu0 %v68
    %96 = vmatpush.msra.mxu0 %v67
    %97 = vmatpush.msra.mxu0 %v66
    %98 = vmatpush.msra.mxu0 %v65
    %99 = vmatpush.msra.mxu0 %v64
    %100 = vmatmul.f32.gmra.mxu0 %v80
    %v101 = vpop.f32.mrf.mxu0
    %v102 = vadd.f32 0.0, %v101
    %103 = vmatmul.f32.gmra.mxu0 %v81
    %v104 = vpop.f32.mrf.mxu0
    %v105 = vadd.f32 0.0, %v104
    %106 = vmatmul.f32.gmra.mxu0 %v82
    %v107 = vpop.f32.mrf.mxu0
    %v108 = vadd.f32 0.0, %v107
    %109 = vmatmul.f32.gmra.mxu0 %v83
    %v110 = vpop.f32.mrf.mxu0
    %v111 = vadd.f32 0.0, %v110
    %112 = vdwg.mxu0
    %v113 = vld [vmem:[#allocation5 + $0x320] sm:$0xff]
    %v114 = vld [vmem:[#allocation5 + $0x328] sm:$0xff]
    %v115 = vld [vmem:[#allocation5 + $0x330] sm:$0xff]
    %v116 = vld [vmem:[#allocation5 + $0x338] sm:$0xf]
    %117 = vmatpush.msra.mxu0 %v79
    %118 = vmatpush.msra.mxu0 %v78
    %119 = vmatpush.msra.mxu0 %v77
    %120 = vmatpush.msra.mxu0 %v76
    %121 = vmatpush.msra.mxu0 %v75
    %122 = vmatpush.msra.mxu0 %v74
    %123 = vmatpush.msra.mxu0 %v73
    %124 = vmatpush.msra.mxu0 %v72
    %125 = vmatpush.msra.mxu0 %v71
    %126 = vmatpush.msra.mxu0 %v70
    %127 = vmatpush.msra.mxu0 %v69
    %128 = vmatpush.msra.mxu0 %v68
    %129 = vmatpush.msra.mxu0 %v67
    %130 = vmatpush.msra.mxu0 %v66
    %131 = vmatpush.msra.mxu0 %v65
    %132 = vmatpush.msra.mxu0 %v64
    %133 = vmatmul.f32.gmra.mxu0 %v113
    %v134 = vpop.f32.mrf.mxu0
    %v135 = vadd.f32 0.0, %v134
    %136 = vmatmul.f32.gmra.mxu0 %v114
    %v137 = vpop.f32.mrf.mxu0
    %v138 = vadd.f32 0.0, %v137
    %139 = vmatmul.f32.gmra.mxu0 %v115
    %v140 = vpop.f32.mrf.mxu0
    %v141 = vadd.f32 0.0, %v140
    %142 = vmatmul.f32.gmra.mxu0 %v116
    %v143 = vpop.f32.mrf.mxu0
    %v144 = vadd.f32 0.0, %v143
    %145 = vdwg.mxu0
    %v146 = vld [vmem:[#allocation5 + $0x340] sm:$0xff]
    %v147 = vld [vmem:[#allocation5 + $0x348] sm:$0xff]
    %v148 = vld [vmem:[#allocation5 + $0x350] sm:$0xff]
    %v149 = vld [vmem:[#allocation5 + $0x358] sm:$0xf]
    %150 = vmatpush.msra.mxu0 %v79
    %151 = vmatpush.msra.mxu0 %v78
    %152 = vmatpush.msra.mxu0 %v77
    %153 = vmatpush.msra.mxu0 %v76
    %154 = vmatpush.msra.mxu0 %v75
    %155 = vmatpush.msra.mxu0 %v74
    %156 = vmatpush.msra.mxu0 %v73
    %157 = vmatpush.msra.mxu0 %v72
    %158 = vmatpush.msra.mxu0 %v71
    %159 = vmatpush.msra.mxu0 %v70
    %160 = vmatpush.msra.mxu0 %v69
    %161 = vmatpush.msra.mxu0 %v68
    %162 = vmatpush.msra.mxu0 %v67
    %163 = vmatpush.msra.mxu0 %v66
    %164 = vmatpush.msra.mxu0 %v65
    %165 = vmatpush.msra.mxu0 %v64
    %166 = vmatmul.f32.gmra.mxu0 %v146
    %v167 = vpop.f32.mrf.mxu0
    %v168 = vadd.f32 0.0, %v167
    %169 = vmatmul.f32.gmra.mxu0 %v147
    %v170 = vpop.f32.mrf.mxu0
    %v171 = vadd.f32 0.0, %v170
    %172 = vmatmul.f32.gmra.mxu0 %v148
    %v173 = vpop.f32.mrf.mxu0
    %v174 = vadd.f32 0.0, %v173
    %175 = vmatmul.f32.gmra.mxu0 %v149
    %v176 = vpop.f32.mrf.mxu0
    %v177 = vadd.f32 0.0, %v176
    %178 = vdwg.mxu0
    %v179 = vld [vmem:[#allocation5 + $0x360] sm:$0xff]
    %v180 = vld [vmem:[#allocation5 + $0x368] sm:$0xff]
    %v181 = vld [vmem:[#allocation5 + $0x370] sm:$0xff]
    %v182 = vld [vmem:[#allocation5 + $0x378] sm:$0xf]
    %183 = vmatpush.msra.mxu0 %v79
    %184 = vmatpush.msra.mxu0 %v78
    %185 = vmatpush.msra.mxu0 %v77
    %186 = vmatpush.msra.mxu0 %v76
    %187 = vmatpush.msra.mxu0 %v75
    %188 = vmatpush.msra.mxu0 %v74
    %189 = vmatpush.msra.mxu0 %v73
    %190 = vmatpush.msra.mxu0 %v72
    %191 = vmatpush.msra.mxu0 %v71
    %192 = vmatpush.msra.mxu0 %v70
    %193 = vmatpush.msra.mxu0 %v69
    %194 = vmatpush.msra.mxu0 %v68
    %195 = vmatpush.msra.mxu0 %v67
    %196 = vmatpush.msra.mxu0 %v66
    %197 = vmatpush.msra.mxu0 %v65
    %198 = vmatpush.msra.mxu0 %v64
    %199 = vmatmul.f32.gmra.mxu0 %v179
    %v200 = vpop.f32.mrf.mxu0
    %v201 = vadd.f32 0.0, %v200
    %202 = vmatmul.f32.gmra.mxu0 %v180
    %v203 = vpop.f32.mrf.mxu0
    %v204 = vadd.f32 0.0, %v203
    %205 = vmatmul.f32.gmra.mxu0 %v181
    %v206 = vpop.f32.mrf.mxu0
    %v207 = vadd.f32 0.0, %v206
    %208 = vmatmul.f32.gmra.mxu0 %v182
    %v209 = vpop.f32.mrf.mxu0
    %v210 = vadd.f32 0.0, %v209
    %211 = vdwg.mxu0
    %v212 = vld [vmem:[#allocation5 + $0x380] sm:$0xff]
    %v213 = vld [vmem:[#allocation5 + $0x388] sm:$0xff]
    %v214 = vld [vmem:[#allocation5 + $0x390] sm:$0xff]
    %v215 = vld [vmem:[#allocation5 + $0x398] sm:$0xf]
    %216 = vmatpush.msra.mxu0 %v79
    %217 = vmatpush.msra.mxu0 %v78
    %218 = vmatpush.msra.mxu0 %v77
    %219 = vmatpush.msra.mxu0 %v76
    %220 = vmatpush.msra.mxu0 %v75
    %221 = vmatpush.msra.mxu0 %v74
    %222 = vmatpush.msra.mxu0 %v73
    %223 = vmatpush.msra.mxu0 %v72
    %224 = vmatpush.msra.mxu0 %v71
    %225 = vmatpush.msra.mxu0 %v70
    %226 = vmatpush.msra.mxu0 %v69
    %227 = vmatpush.msra.mxu0 %v68
    %228 = vmatpush.msra.mxu0 %v67
    %229 = vmatpush.msra.mxu0 %v66
    %230 = vmatpush.msra.mxu0 %v65
    %231 = vmatpush.msra.mxu0 %v64
    %232 = vmatmul.f32.gmra.mxu0 %v212
    %v233 = vpop.f32.mrf.mxu0
    %v234 = vadd.f32 0.0, %v233
    %235 = vmatmul.f32.gmra.mxu0 %v213
    %v236 = vpop.f32.mrf.mxu0
    %v237 = vadd.f32 0.0, %v236
    %238 = vmatmul.f32.gmra.mxu0 %v214
    %v239 = vpop.f32.mrf.mxu0
    %v240 = vadd.f32 0.0, %v239
    %241 = vmatmul.f32.gmra.mxu0 %v215
    %v242 = vpop.f32.mrf.mxu0
    %v243 = vadd.f32 0.0, %v242
    %244 = vdwg.mxu0
    %v245 = vld [vmem:[#allocation5 + $0x3a0] sm:$0xff]
    %v246 = vld [vmem:[#allocation5 + $0x3a8] sm:$0xff]
    %v247 = vld [vmem:[#allocation5 + $0x3b0] sm:$0xff]
    %v248 = vld [vmem:[#allocation5 + $0x3b8] sm:$0xf]
    %249 = vmatpush.msra.mxu0 %v79
    %250 = vmatpush.msra.mxu0 %v78
    %251 = vmatpush.msra.mxu0 %v77
    %252 = vmatpush.msra.mxu0 %v76
    %253 = vmatpush.msra.mxu0 %v75
    %254 = vmatpush.msra.mxu0 %v74
    %255 = vmatpush.msra.mxu0 %v73
    %256 = vmatpush.msra.mxu0 %v72
    %257 = vmatpush.msra.mxu0 %v71
    %258 = vmatpush.msra.mxu0 %v70
    %259 = vmatpush.msra.mxu0 %v69
    %260 = vmatpush.msra.mxu0 %v68
    %261 = vmatpush.msra.mxu0 %v67
    %262 = vmatpush.msra.mxu0 %v66
    %263 = vmatpush.msra.mxu0 %v65
    %264 = vmatpush.msra.mxu0 %v64
    %265 = vmatmul.f32.gmra.mxu0 %v245
    %v266 = vpop.f32.mrf.mxu0
    %v267 = vadd.f32 0.0, %v266
    %268 = vmatmul.f32.gmra.mxu0 %v246
    %v269 = vpop.f32.mrf.mxu0
    %v270 = vadd.f32 0.0, %v269
    %271 = vmatmul.f32.gmra.mxu0 %v247
    %v272 = vpop.f32.mrf.mxu0
    %v273 = vadd.f32 0.0, %v272
    %274 = vmatmul.f32.gmra.mxu0 %v248
    %v275 = vpop.f32.mrf.mxu0
    %v276 = vadd.f32 0.0, %v275
    %277 = vdwg.mxu0
    %v278 = vld [vmem:[#allocation5 + $0x3c0] sm:$0xff]
    %v279 = vld [vmem:[#allocation5 + $0x3c8] sm:$0xff]
    %v280 = vld [vmem:[#allocation5 + $0x3d0] sm:$0xff]
    %v281 = vld [vmem:[#allocation5 + $0x3d8] sm:$0xf]
    %282 = vmatpush.msra.mxu0 %v79
    %283 = vmatpush.msra.mxu0 %v78
    %284 = vmatpush.msra.mxu0 %v77
    %285 = vmatpush.msra.mxu0 %v76
    %286 = vmatpush.msra.mxu0 %v75
    %287 = vmatpush.msra.mxu0 %v74
    %288 = vmatpush.msra.mxu0 %v73
    %289 = vmatpush.msra.mxu0 %v72
    %290 = vmatpush.msra.mxu0 %v71
    %291 = vmatpush.msra.mxu0 %v70
    %292 = vmatpush.msra.mxu0 %v69
    %293 = vmatpush.msra.mxu0 %v68
    %294 = vmatpush.msra.mxu0 %v67
    %295 = vmatpush.msra.mxu0 %v66
    %296 = vmatpush.msra.mxu0 %v65
    %297 = vmatpush.msra.mxu0 %v64
    %298 = vmatmul.f32.gmra.mxu0 %v278
    %v299 = vpop.f32.mrf.mxu0
    %v300 = vadd.f32 0.0, %v299
    %301 = vmatmul.f32.gmra.mxu0 %v279
    %v302 = vpop.f32.mrf.mxu0
    %v303 = vadd.f32 0.0, %v302
    %304 = vmatmul.f32.gmra.mxu0 %v280
    %v305 = vpop.f32.mrf.mxu0
    %v306 = vadd.f32 0.0, %v305
    %307 = vmatmul.f32.gmra.mxu0 %v281
    %v308 = vpop.f32.mrf.mxu0
    %v309 = vadd.f32 0.0, %v308
    %310 = vdwg.mxu0
    %v311 = vld [vmem:[#allocation5 + $0x3e0] sm:$0xff]
    %v312 = vld [vmem:[#allocation5 + $0x3e8] sm:$0xff]
    %v313 = vld [vmem:[#allocation5 + $0x3f0] sm:$0xff]
    %v314 = vld [vmem:[#allocation5 + $0x3f8] sm:$0xf]
    %315 = vmatpush.msra.mxu0 %v79
    %316 = vmatpush.msra.mxu0 %v78
    %317 = vmatpush.msra.mxu0 %v77
    %318 = vmatpush.msra.mxu0 %v76
    %319 = vmatpush.msra.mxu0 %v75
    %320 = vmatpush.msra.mxu0 %v74
    %321 = vmatpush.msra.mxu0 %v73
    %322 = vmatpush.msra.mxu0 %v72
    %323 = vmatpush.msra.mxu0 %v71
    %324 = vmatpush.msra.mxu0 %v70
    %325 = vmatpush.msra.mxu0 %v69
    %326 = vmatpush.msra.mxu0 %v68
    %327 = vmatpush.msra.mxu0 %v67
    %328 = vmatpush.msra.mxu0 %v66
    %329 = vmatpush.msra.mxu0 %v65
    %330 = vmatpush.msra.mxu0 %v64
    %331 = vmatmul.f32.gmra.mxu0 %v311
    %v332 = vpop.f32.mrf.mxu0
    %v333 = vadd.f32 0.0, %v332
    %334 = vmatmul.f32.gmra.mxu0 %v312
    %v335 = vpop.f32.mrf.mxu0
    %v336 = vadd.f32 0.0, %v335
    %337 = vmatmul.f32.gmra.mxu0 %v313
    %v338 = vpop.f32.mrf.mxu0
    %v339 = vadd.f32 0.0, %v338
    %340 = vmatmul.f32.gmra.mxu0 %v314
    %v341 = vpop.f32.mrf.mxu0
    %v342 = vadd.f32 0.0, %v341
    %343 = vdwg.mxu0
    %v344 = vld [vmem:[#allocation5 + $0x400] sm:$0xff]
    %v345 = vld [vmem:[#allocation5 + $0x408] sm:$0xff]
    %v346 = vld [vmem:[#allocation5 + $0x410] sm:$0xff]
    %v347 = vld [vmem:[#allocation5 + $0x418] sm:$0xf]
    %348 = vmatpush.msra.mxu0 %v79
    %349 = vmatpush.msra.mxu0 %v78
    %350 = vmatpush.msra.mxu0 %v77
    %351 = vmatpush.msra.mxu0 %v76
    %352 = vmatpush.msra.mxu0 %v75
    %353 = vmatpush.msra.mxu0 %v74
    %354 = vmatpush.msra.mxu0 %v73
    %355 = vmatpush.msra.mxu0 %v72
    %356 = vmatpush.msra.mxu0 %v71
    %357 = vmatpush.msra.mxu0 %v70
    %358 = vmatpush.msra.mxu0 %v69
    %359 = vmatpush.msra.mxu0 %v68
    %360 = vmatpush.msra.mxu0 %v67
    %361 = vmatpush.msra.mxu0 %v66
    %362 = vmatpush.msra.mxu0 %v65
    %363 = vmatpush.msra.mxu0 %v64
    %364 = vmatmul.f32.gmra.mxu0 %v344
    %v365 = vpop.f32.mrf.mxu0
    %v366 = vadd.f32 0.0, %v365
    %367 = vmatmul.f32.gmra.mxu0 %v345
    %v368 = vpop.f32.mrf.mxu0
    %v369 = vadd.f32 0.0, %v368
    %370 = vmatmul.f32.gmra.mxu0 %v346
    %v371 = vpop.f32.mrf.mxu0
    %v372 = vadd.f32 0.0, %v371
    %373 = vmatmul.f32.gmra.mxu0 %v347
    %v374 = vpop.f32.mrf.mxu0
    %v375 = vadd.f32 0.0, %v374
    %376 = vdwg.mxu0
    %v377 = vld [vmem:[#allocation5 + $0x420] sm:$0xff]
    %v378 = vld [vmem:[#allocation5 + $0x428] sm:$0xff]
    %v379 = vld [vmem:[#allocation5 + $0x430] sm:$0xff]
    %v380 = vld [vmem:[#allocation5 + $0x438] sm:$0xf]
    %381 = vmatpush.msra.mxu0 %v79
    %382 = vmatpush.msra.mxu0 %v78
    %383 = vmatpush.msra.mxu0 %v77
    %384 = vmatpush.msra.mxu0 %v76
    %385 = vmatpush.msra.mxu0 %v75
    %386 = vmatpush.msra.mxu0 %v74
    %387 = vmatpush.msra.mxu0 %v73
    %388 = vmatpush.msra.mxu0 %v72
    %389 = vmatpush.msra.mxu0 %v71
    %390 = vmatpush.msra.mxu0 %v70
    %391 = vmatpush.msra.mxu0 %v69
    %392 = vmatpush.msra.mxu0 %v68
    %393 = vmatpush.msra.mxu0 %v67
    %394 = vmatpush.msra.mxu0 %v66
    %395 = vmatpush.msra.mxu0 %v65
    %396 = vmatpush.msra.mxu0 %v64
    %397 = vmatmul.f32.gmra.mxu0 %v377
    %v398 = vpop.f32.mrf.mxu0
    %v399 = vadd.f32 0.0, %v398
    %400 = vmatmul.f32.gmra.mxu0 %v378
    %v401 = vpop.f32.mrf.mxu0
    %v402 = vadd.f32 0.0, %v401
    %403 = vmatmul.f32.gmra.mxu0 %v379
    %v404 = vpop.f32.mrf.mxu0
    %v405 = vadd.f32 0.0, %v404
    %406 = vmatmul.f32.gmra.mxu0 %v380
    %v407 = vpop.f32.mrf.mxu0
    %v408 = vadd.f32 0.0, %v407
    %409 = vdwg.mxu0
    %v410 = vld [vmem:[#allocation5 + $0x440] sm:$0xff]
    %v411 = vld [vmem:[#allocation5 + $0x448] sm:$0xff]
    %v412 = vld [vmem:[#allocation5 + $0x450] sm:$0xff]
    %v413 = vld [vmem:[#allocation5 + $0x458] sm:$0xf]
    %414 = vmatpush.msra.mxu0 %v79
    %415 = vmatpush.msra.mxu0 %v78
    %416 = vmatpush.msra.mxu0 %v77
    %417 = vmatpush.msra.mxu0 %v76
    %418 = vmatpush.msra.mxu0 %v75
    %419 = vmatpush.msra.mxu0 %v74
    %420 = vmatpush.msra.mxu0 %v73
    %421 = vmatpush.msra.mxu0 %v72
    %422 = vmatpush.msra.mxu0 %v71
    %423 = vmatpush.msra.mxu0 %v70
    %424 = vmatpush.msra.mxu0 %v69
    %425 = vmatpush.msra.mxu0 %v68
    %426 = vmatpush.msra.mxu0 %v67
    %427 = vmatpush.msra.mxu0 %v66
    %428 = vmatpush.msra.mxu0 %v65
    %429 = vmatpush.msra.mxu0 %v64
    %430 = vmatmul.f32.gmra.mxu0 %v410
    %v431 = vpop.f32.mrf.mxu0
    %v432 = vadd.f32 0.0, %v431
    %433 = vmatmul.f32.gmra.mxu0 %v411
    %v434 = vpop.f32.mrf.mxu0
    %v435 = vadd.f32 0.0, %v434
    %436 = vmatmul.f32.gmra.mxu0 %v412
    %v437 = vpop.f32.mrf.mxu0
    %v438 = vadd.f32 0.0, %v437
    %439 = vmatmul.f32.gmra.mxu0 %v413
    %v440 = vpop.f32.mrf.mxu0
    %v441 = vadd.f32 0.0, %v440
    %442 = vdwg.mxu0
    %v443 = vld [vmem:[#allocation5 + $0x460] sm:$0xff]
    %v444 = vld [vmem:[#allocation5 + $0x468] sm:$0xff]
    %v445 = vld [vmem:[#allocation5 + $0x470] sm:$0xff]
    %v446 = vld [vmem:[#allocation5 + $0x478] sm:$0xf]
    %447 = vmatpush.msra.mxu0 %v79
    %448 = vmatpush.msra.mxu0 %v78
    %449 = vmatpush.msra.mxu0 %v77
    %450 = vmatpush.msra.mxu0 %v76
    %451 = vmatpush.msra.mxu0 %v75
    %452 = vmatpush.msra.mxu0 %v74
    %453 = vmatpush.msra.mxu0 %v73
    %454 = vmatpush.msra.mxu0 %v72
    %455 = vmatpush.msra.mxu0 %v71
    %456 = vmatpush.msra.mxu0 %v70
    %457 = vmatpush.msra.mxu0 %v69
    %458 = vmatpush.msra.mxu0 %v68
    %459 = vmatpush.msra.mxu0 %v67
    %460 = vmatpush.msra.mxu0 %v66
    %461 = vmatpush.msra.mxu0 %v65
    %462 = vmatpush.msra.mxu0 %v64
    %463 = vmatmul.f32.gmra.mxu0 %v443
    %v464 = vpop.f32.mrf.mxu0
    %v465 = vadd.f32 0.0, %v464
    %466 = vmatmul.f32.gmra.mxu0 %v444
    %v467 = vpop.f32.mrf.mxu0
    %v468 = vadd.f32 0.0, %v467
    %469 = vmatmul.f32.gmra.mxu0 %v445
    %v470 = vpop.f32.mrf.mxu0
    %v471 = vadd.f32 0.0, %v470
    %472 = vmatmul.f32.gmra.mxu0 %v446
    %v473 = vpop.f32.mrf.mxu0
    %v474 = vadd.f32 0.0, %v473
    %475 = vdwg.mxu0
    %v476 = vld [vmem:[#allocation7] sm:$0xff]
    %v477 = vld [vmem:[#allocation7 + $0x8] sm:$0xff]
    %v478 = vld [vmem:[#allocation7 + $0x10] sm:$0xff]
    %v479 = vld [vmem:[#allocation7 + $0x18] sm:$0xff]
    %v480 = vld [vmem:[#allocation7 + $0x20] sm:$0xff]
    %v481 = vld [vmem:[#allocation7 + $0x28] sm:$0xff]
    %v482 = vld [vmem:[#allocation7 + $0x30] sm:$0xff]
    %v483 = vld [vmem:[#allocation7 + $0x38] sm:$0xff]
    %vm484 = vcmask 130048
    %v486 = vsel %vm484, %v135, 0
    %v489 = vsel %vm484, %v138, 0
    %v492 = vsel %vm484, %v141, 0
    %v495 = vsel %vm484, %v144, 0
    %497 = vmatpush.msra.mxu0 0.0
    %498 = vmatpush.msra.mxu0 0.0
    %499 = vmatpush.msra.mxu0 0.0
    %500 = vmatpush.msra.mxu0 0.0
    %501 = vmatpush.msra.mxu0 0.0
    %502 = vmatpush.msra.mxu0 0.0
    %503 = vmatpush.msra.mxu0 0.0
    %504 = vmatpush.msra.mxu0 0.0
    %505 = vmatpush.msra.mxu0 0.0
    %506 = vmatpush.msra.mxu0 0.0
    %507 = vmatpush.msra.mxu0 0.0
    %508 = vmatpush.msra.mxu0 0.0
    %509 = vmatpush.msra.mxu0 0.0
    %510 = vmatpush.msra.mxu0 0.0
    %511 = vmatpush.msra.mxu0 %v482
    %512 = vmatpush.msra.mxu0 %v480
    %513 = vmatmul.f32.gmra.mxu0 %v486
    %v514 = vpop.f32.mrf.mxu0
    %v515 = vadd.f32 0.0, %v514
    %516 = vmatmul.f32.gmra.mxu0 %v489
    %v517 = vpop.f32.mrf.mxu0
    %v518 = vadd.f32 0.0, %v517
    %519 = vmatmul.f32.gmra.mxu0 %v492
    %v520 = vpop.f32.mrf.mxu0
    %v521 = vadd.f32 0.0, %v520
    %522 = vmatmul.f32.gmra.mxu0 %v495
    %v523 = vpop.f32.mrf.mxu0
    %v524 = vadd.f32 0.0, %v523
    %525 = vdwg.mxu0
    %526 = vmatpush.msra.mxu0 0.0
    %527 = vmatpush.msra.mxu0 0.0
    %528 = vmatpush.msra.mxu0 0.0
    %529 = vmatpush.msra.mxu0 0.0
    %530 = vmatpush.msra.mxu0 0.0
    %531 = vmatpush.msra.mxu0 0.0
    %532 = vmatpush.msra.mxu0 0.0
    %533 = vmatpush.msra.mxu0 0.0
    %534 = vmatpush.msra.mxu0 0.0
    %535 = vmatpush.msra.mxu0 0.0
    %536 = vmatpush.msra.mxu0 0.0
    %537 = vmatpush.msra.mxu0 0.0
    %538 = vmatpush.msra.mxu0 0.0
    %539 = vmatpush.msra.mxu0 0.0
    %540 = vmatpush.msra.mxu0 %v483
    %541 = vmatpush.msra.mxu0 %v481
    %542 = vmatmul.f32.gmra.mxu0 %v486
    %v543 = vpop.f32.mrf.mxu0
    %v544 = vadd.f32 0.0, %v543
    %545 = vmatmul.f32.gmra.mxu0 %v489
    %v546 = vpop.f32.mrf.mxu0
    %v547 = vadd.f32 0.0, %v546
    %548 = vmatmul.f32.gmra.mxu0 %v492
    %v549 = vpop.f32.mrf.mxu0
    %v550 = vadd.f32 0.0, %v549
    %551 = vmatmul.f32.gmra.mxu0 %v495
    %v552 = vpop.f32.mrf.mxu0
    %v553 = vadd.f32 0.0, %v552
    %554 = vdwg.mxu0
    %v555 = vld [vmem:[#allocation7 + $0x40] sm:$0xff]
    %v556 = vld [vmem:[#allocation7 + $0x48] sm:$0xff]
    %v557 = vld [vmem:[#allocation7 + $0x50] sm:$0xff]
    %v558 = vld [vmem:[#allocation7 + $0x58] sm:$0xff]
    %v559 = vld [vmem:[#allocation7 + $0x60] sm:$0xff]
    %v560 = vld [vmem:[#allocation7 + $0x68] sm:$0xff]
    %v561 = vld [vmem:[#allocation7 + $0x70] sm:$0xff]
    %v562 = vld [vmem:[#allocation7 + $0x78] sm:$0xff]
    %v564 = vsel %vm484, %v201, 0
    %v567 = vsel %vm484, %v204, 0
    %v570 = vsel %vm484, %v207, 0
    %v573 = vsel %vm484, %v210, 0
    %575 = vmatpush.msra.mxu0 0.0
    %576 = vmatpush.msra.mxu0 0.0
    %577 = vmatpush.msra.mxu0 0.0
    %578 = vmatpush.msra.mxu0 0.0
    %579 = vmatpush.msra.mxu0 0.0
    %580 = vmatpush.msra.mxu0 0.0
    %581 = vmatpush.msra.mxu0 0.0
    %582 = vmatpush.msra.mxu0 0.0
    %583 = vmatpush.msra.mxu0 0.0
    %584 = vmatpush.msra.mxu0 0.0
    %585 = vmatpush.msra.mxu0 0.0
    %586 = vmatpush.msra.mxu0 0.0
    %587 = vmatpush.msra.mxu0 0.0
    %588 = vmatpush.msra.mxu0 0.0
    %589 = vmatpush.msra.mxu0 %v561
    %590 = vmatpush.msra.mxu0 %v559
    %591 = vmatmul.f32.gmra.mxu0 %v564
    %v592 = vpop.f32.mrf.mxu0
    %v593 = vadd.f32 0.0, %v592
    %594 = vmatmul.f32.gmra.mxu0 %v567
    %v595 = vpop.f32.mrf.mxu0
    %v596 = vadd.f32 0.0, %v595
    %597 = vmatmul.f32.gmra.mxu0 %v570
    %v598 = vpop.f32.mrf.mxu0
    %v599 = vadd.f32 0.0, %v598
    %600 = vmatmul.f32.gmra.mxu0 %v573
    %v601 = vpop.f32.mrf.mxu0
    %v602 = vadd.f32 0.0, %v601
    %603 = vdwg.mxu0
    %604 = vmatpush.msra.mxu0 0.0
    %605 = vmatpush.msra.mxu0 0.0
    %606 = vmatpush.msra.mxu0 0.0
    %607 = vmatpush.msra.mxu0 0.0
    %608 = vmatpush.msra.mxu0 0.0
    %609 = vmatpush.msra.mxu0 0.0
    %610 = vmatpush.msra.mxu0 0.0
    %611 = vmatpush.msra.mxu0 0.0
    %612 = vmatpush.msra.mxu0 0.0
    %613 = vmatpush.msra.mxu0 0.0
    %614 = vmatpush.msra.mxu0 0.0
    %615 = vmatpush.msra.mxu0 0.0
    %616 = vmatpush.msra.mxu0 0.0
    %617 = vmatpush.msra.mxu0 0.0
    %618 = vmatpush.msra.mxu0 %v562
    %619 = vmatpush.msra.mxu0 %v560
    %620 = vmatmul.f32.gmra.mxu0 %v564
    %v621 = vpop.f32.mrf.mxu0
    %v622 = vadd.f32 0.0, %v621
    %623 = vmatmul.f32.gmra.mxu0 %v567
    %v624 = vpop.f32.mrf.mxu0
    %v625 = vadd.f32 0.0, %v624
    %626 = vmatmul.f32.gmra.mxu0 %v570
    %v627 = vpop.f32.mrf.mxu0
    %v628 = vadd.f32 0.0, %v627
    %629 = vmatmul.f32.gmra.mxu0 %v573
    %v630 = vpop.f32.mrf.mxu0
    %v631 = vadd.f32 0.0, %v630
    %632 = vdwg.mxu0
    %v633 = vld [vmem:[#allocation7 + $0x80] sm:$0xff]
    %v634 = vld [vmem:[#allocation7 + $0x88] sm:$0xff]
    %v635 = vld [vmem:[#allocation7 + $0x90] sm:$0xff]
    %v636 = vld [vmem:[#allocation7 + $0x98] sm:$0xff]
    %v637 = vld [vmem:[#allocation7 + $0xa0] sm:$0xff]
    %v638 = vld [vmem:[#allocation7 + $0xa8] sm:$0xff]
    %v639 = vld [vmem:[#allocation7 + $0xb0] sm:$0xff]
    %v640 = vld [vmem:[#allocation7 + $0xb8] sm:$0xff]
    %v642 = vsel %vm484, %v267, 0
    %v645 = vsel %vm484, %v270, 0
    %v648 = vsel %vm484, %v273, 0
    %v651 = vsel %vm484, %v276, 0
    %653 = vmatpush.msra.mxu0 0.0
    %654 = vmatpush.msra.mxu0 0.0
    %655 = vmatpush.msra.mxu0 0.0
    %656 = vmatpush.msra.mxu0 0.0
    %657 = vmatpush.msra.mxu0 0.0
    %658 = vmatpush.msra.mxu0 0.0
    %659 = vmatpush.msra.mxu0 0.0
    %660 = vmatpush.msra.mxu0 0.0
    %661 = vmatpush.msra.mxu0 0.0
    %662 = vmatpush.msra.mxu0 0.0
    %663 = vmatpush.msra.mxu0 0.0
    %664 = vmatpush.msra.mxu0 0.0
    %665 = vmatpush.msra.mxu0 0.0
    %666 = vmatpush.msra.mxu0 0.0
    %667 = vmatpush.msra.mxu0 %v639
    %668 = vmatpush.msra.mxu0 %v637
    %669 = vmatmul.f32.gmra.mxu0 %v642
    %v670 = vpop.f32.mrf.mxu0
    %v671 = vadd.f32 0.0, %v670
    %672 = vmatmul.f32.gmra.mxu0 %v645
    %v673 = vpop.f32.mrf.mxu0
    %v674 = vadd.f32 0.0, %v673
    %675 = vmatmul.f32.gmra.mxu0 %v648
    %v676 = vpop.f32.mrf.mxu0
    %v677 = vadd.f32 0.0, %v676
    %678 = vmatmul.f32.gmra.mxu0 %v651
    %v679 = vpop.f32.mrf.mxu0
    %v680 = vadd.f32 0.0, %v679
    %681 = vdwg.mxu0
    %682 = vmatpush.msra.mxu0 0.0
    %683 = vmatpush.msra.mxu0 0.0
    %684 = vmatpush.msra.mxu0 0.0
    %685 = vmatpush.msra.mxu0 0.0
    %686 = vmatpush.msra.mxu0 0.0
    %687 = vmatpush.msra.mxu0 0.0
    %688 = vmatpush.msra.mxu0 0.0
    %689 = vmatpush.msra.mxu0 0.0
    %690 = vmatpush.msra.mxu0 0.0
    %691 = vmatpush.msra.mxu0 0.0
    %692 = vmatpush.msra.mxu0 0.0
    %693 = vmatpush.msra.mxu0 0.0
    %694 = vmatpush.msra.mxu0 0.0
    %695 = vmatpush.msra.mxu0 0.0
    %696 = vmatpush.msra.mxu0 %v640
    %697 = vmatpush.msra.mxu0 %v638
    %698 = vmatmul.f32.gmra.mxu0 %v642
    %v699 = vpop.f32.mrf.mxu0
    %v700 = vadd.f32 0.0, %v699
    %701 = vmatmul.f32.gmra.mxu0 %v645
    %v702 = vpop.f32.mrf.mxu0
    %v703 = vadd.f32 0.0, %v702
    %704 = vmatmul.f32.gmra.mxu0 %v648
    %v705 = vpop.f32.mrf.mxu0
    %v706 = vadd.f32 0.0, %v705
    %707 = vmatmul.f32.gmra.mxu0 %v651
    %v708 = vpop.f32.mrf.mxu0
    %v709 = vadd.f32 0.0, %v708
    %710 = vdwg.mxu0
    %v711 = vld [vmem:[#allocation7 + $0xc0] sm:$0xff]
    %v712 = vld [vmem:[#allocation7 + $0xc8] sm:$0xff]
    %v713 = vld [vmem:[#allocation7 + $0xd0] sm:$0xff]
    %v714 = vld [vmem:[#allocation7 + $0xd8] sm:$0xff]
    %v715 = vld [vmem:[#allocation7 + $0xe0] sm:$0xff]
    %v716 = vld [vmem:[#allocation7 + $0xe8] sm:$0xff]
    %v717 = vld [vmem:[#allocation7 + $0xf0] sm:$0xff]
    %v718 = vld [vmem:[#allocation7 + $0xf8] sm:$0xff]
    %v720 = vsel %vm484, %v333, 0
    %v723 = vsel %vm484, %v336, 0
    %v726 = vsel %vm484, %v339, 0
    %v729 = vsel %vm484, %v342, 0
    %731 = vmatpush.msra.mxu0 0.0
    %732 = vmatpush.msra.mxu0 0.0
    %733 = vmatpush.msra.mxu0 0.0
    %734 = vmatpush.msra.mxu0 0.0
    %735 = vmatpush.msra.mxu0 0.0
    %736 = vmatpush.msra.mxu0 0.0
    %737 = vmatpush.msra.mxu0 0.0
    %738 = vmatpush.msra.mxu0 0.0
    %739 = vmatpush.msra.mxu0 0.0
    %740 = vmatpush.msra.mxu0 0.0
    %741 = vmatpush.msra.mxu0 0.0
    %742 = vmatpush.msra.mxu0 0.0
    %743 = vmatpush.msra.mxu0 0.0
    %744 = vmatpush.msra.mxu0 0.0
    %745 = vmatpush.msra.mxu0 %v717
    %746 = vmatpush.msra.mxu0 %v715
    %747 = vmatmul.f32.gmra.mxu0 %v720
    %v748 = vpop.f32.mrf.mxu0
    %v749 = vadd.f32 0.0, %v748
    %750 = vmatmul.f32.gmra.mxu0 %v723
    %v751 = vpop.f32.mrf.mxu0
    %v752 = vadd.f32 0.0, %v751
    %753 = vmatmul.f32.gmra.mxu0 %v726
    %v754 = vpop.f32.mrf.mxu0
    %v755 = vadd.f32 0.0, %v754
    %756 = vmatmul.f32.gmra.mxu0 %v729
    %v757 = vpop.f32.mrf.mxu0
    %v758 = vadd.f32 0.0, %v757
    %759 = vdwg.mxu0
    %760 = vmatpush.msra.mxu0 0.0
    %761 = vmatpush.msra.mxu0 0.0
    %762 = vmatpush.msra.mxu0 0.0
    %763 = vmatpush.msra.mxu0 0.0
    %764 = vmatpush.msra.mxu0 0.0
    %765 = vmatpush.msra.mxu0 0.0
    %766 = vmatpush.msra.mxu0 0.0
    %767 = vmatpush.msra.mxu0 0.0
    %768 = vmatpush.msra.mxu0 0.0
    %769 = vmatpush.msra.mxu0 0.0
    %770 = vmatpush.msra.mxu0 0.0
    %771 = vmatpush.msra.mxu0 0.0
    %772 = vmatpush.msra.mxu0 0.0
    %773 = vmatpush.msra.mxu0 0.0
    %774 = vmatpush.msra.mxu0 %v718
    %775 = vmatpush.msra.mxu0 %v716
    %776 = vmatmul.f32.gmra.mxu0 %v720
    %v777 = vpop.f32.mrf.mxu0
    %v778 = vadd.f32 0.0, %v777
    %779 = vmatmul.f32.gmra.mxu0 %v723
    %v780 = vpop.f32.mrf.mxu0
    %v781 = vadd.f32 0.0, %v780
    %782 = vmatmul.f32.gmra.mxu0 %v726
    %v783 = vpop.f32.mrf.mxu0
    %v784 = vadd.f32 0.0, %v783
    %785 = vmatmul.f32.gmra.mxu0 %v729
    %v786 = vpop.f32.mrf.mxu0
    %v787 = vadd.f32 0.0, %v786
    %788 = vdwg.mxu0
    %v789 = vld [vmem:[#allocation7 + $0x100] sm:$0xff]
    %v790 = vld [vmem:[#allocation7 + $0x108] sm:$0xff]
    %v791 = vld [vmem:[#allocation7 + $0x110] sm:$0xff]
    %v792 = vld [vmem:[#allocation7 + $0x118] sm:$0xff]
    %v793 = vld [vmem:[#allocation7 + $0x120] sm:$0xff]
    %v794 = vld [vmem:[#allocation7 + $0x128] sm:$0xff]
    %v795 = vld [vmem:[#allocation7 + $0x130] sm:$0xff]
    %v796 = vld [vmem:[#allocation7 + $0x138] sm:$0xff]
    %v798 = vsel %vm484, %v399, 0
    %v801 = vsel %vm484, %v402, 0
    %v804 = vsel %vm484, %v405, 0
    %v807 = vsel %vm484, %v408, 0
    %809 = vmatpush.msra.mxu0 0.0
    %810 = vmatpush.msra.mxu0 0.0
    %811 = vmatpush.msra.mxu0 0.0
    %812 = vmatpush.msra.mxu0 0.0
    %813 = vmatpush.msra.mxu0 0.0
    %814 = vmatpush.msra.mxu0 0.0
    %815 = vmatpush.msra.mxu0 0.0
    %816 = vmatpush.msra.mxu0 0.0
    %817 = vmatpush.msra.mxu0 0.0
    %818 = vmatpush.msra.mxu0 0.0
    %819 = vmatpush.msra.mxu0 0.0
    %820 = vmatpush.msra.mxu0 0.0
    %821 = vmatpush.msra.mxu0 0.0
    %822 = vmatpush.msra.mxu0 0.0
    %823 = vmatpush.msra.mxu0 %v795
    %824 = vmatpush.msra.mxu0 %v793
    %825 = vmatmul.f32.gmra.mxu0 %v798
    %v826 = vpop.f32.mrf.mxu0
    %v827 = vadd.f32 0.0, %v826
    %828 = vmatmul.f32.gmra.mxu0 %v801
    %v829 = vpop.f32.mrf.mxu0
    %v830 = vadd.f32 0.0, %v829
    %831 = vmatmul.f32.gmra.mxu0 %v804
    %v832 = vpop.f32.mrf.mxu0
    %v833 = vadd.f32 0.0, %v832
    %834 = vmatmul.f32.gmra.mxu0 %v807
    %v835 = vpop.f32.mrf.mxu0
    %v836 = vadd.f32 0.0, %v835
    %837 = vdwg.mxu0
    %838 = vmatpush.msra.mxu0 0.0
    %839 = vmatpush.msra.mxu0 0.0
    %840 = vmatpush.msra.mxu0 0.0
    %841 = vmatpush.msra.mxu0 0.0
    %842 = vmatpush.msra.mxu0 0.0
    %843 = vmatpush.msra.mxu0 0.0
    %844 = vmatpush.msra.mxu0 0.0
    %845 = vmatpush.msra.mxu0 0.0
    %846 = vmatpush.msra.mxu0 0.0
    %847 = vmatpush.msra.mxu0 0.0
    %848 = vmatpush.msra.mxu0 0.0
    %849 = vmatpush.msra.mxu0 0.0
    %850 = vmatpush.msra.mxu0 0.0
    %851 = vmatpush.msra.mxu0 0.0
    %852 = vmatpush.msra.mxu0 %v796
    %853 = vmatpush.msra.mxu0 %v794
    %854 = vmatmul.f32.gmra.mxu0 %v798
    %v855 = vpop.f32.mrf.mxu0
    %v856 = vadd.f32 0.0, %v855
    %857 = vmatmul.f32.gmra.mxu0 %v801
    %v858 = vpop.f32.mrf.mxu0
    %v859 = vadd.f32 0.0, %v858
    %860 = vmatmul.f32.gmra.mxu0 %v804
    %v861 = vpop.f32.mrf.mxu0
    %v862 = vadd.f32 0.0, %v861
    %863 = vmatmul.f32.gmra.mxu0 %v807
    %v864 = vpop.f32.mrf.mxu0
    %v865 = vadd.f32 0.0, %v864
    %866 = vdwg.mxu0
    %v867 = vld [vmem:[#allocation7 + $0x140] sm:$0xff]
    %v868 = vld [vmem:[#allocation7 + $0x148] sm:$0xff]
    %v869 = vld [vmem:[#allocation7 + $0x150] sm:$0xff]
    %v870 = vld [vmem:[#allocation7 + $0x158] sm:$0xff]
    %v871 = vld [vmem:[#allocation7 + $0x160] sm:$0xff]
    %v872 = vld [vmem:[#allocation7 + $0x168] sm:$0xff]
    %v873 = vld [vmem:[#allocation7 + $0x170] sm:$0xff]
    %v874 = vld [vmem:[#allocation7 + $0x178] sm:$0xff]
    %v876 = vsel %vm484, %v465, 0
    %v879 = vsel %vm484, %v468, 0
    %v882 = vsel %vm484, %v471, 0
    %v885 = vsel %vm484, %v474, 0
    %887 = vmatpush.msra.mxu0 0.0
    %888 = vmatpush.msra.mxu0 0.0
    %889 = vmatpush.msra.mxu0 0.0
    %890 = vmatpush.msra.mxu0 0.0
    %891 = vmatpush.msra.mxu0 0.0
    %892 = vmatpush.msra.mxu0 0.0
    %893 = vmatpush.msra.mxu0 0.0
    %894 = vmatpush.msra.mxu0 0.0
    %895 = vmatpush.msra.mxu0 0.0
    %896 = vmatpush.msra.mxu0 0.0
    %897 = vmatpush.msra.mxu0 0.0
    %898 = vmatpush.msra.mxu0 0.0
    %899 = vmatpush.msra.mxu0 0.0
    %900 = vmatpush.msra.mxu0 0.0
    %901 = vmatpush.msra.mxu0 %v873
    %902 = vmatpush.msra.mxu0 %v871
    %903 = vmatmul.f32.gmra.mxu0 %v876
    %v904 = vpop.f32.mrf.mxu0
    %v905 = vadd.f32 0.0, %v904
    %906 = vmatmul.f32.gmra.mxu0 %v879
    %v907 = vpop.f32.mrf.mxu0
    %v908 = vadd.f32 0.0, %v907
    %909 = vmatmul.f32.gmra.mxu0 %v882
    %v910 = vpop.f32.mrf.mxu0
    %v911 = vadd.f32 0.0, %v910
    %912 = vmatmul.f32.gmra.mxu0 %v885
    %v913 = vpop.f32.mrf.mxu0
    %v914 = vadd.f32 0.0, %v913
    %915 = vdwg.mxu0
    %916 = vmatpush.msra.mxu0 0.0
    %917 = vmatpush.msra.mxu0 0.0
    %918 = vmatpush.msra.mxu0 0.0
    %919 = vmatpush.msra.mxu0 0.0
    %920 = vmatpush.msra.mxu0 0.0
    %921 = vmatpush.msra.mxu0 0.0
    %922 = vmatpush.msra.mxu0 0.0
    %923 = vmatpush.msra.mxu0 0.0
    %924 = vmatpush.msra.mxu0 0.0
    %925 = vmatpush.msra.mxu0 0.0
    %926 = vmatpush.msra.mxu0 0.0
    %927 = vmatpush.msra.mxu0 0.0
    %928 = vmatpush.msra.mxu0 0.0
    %929 = vmatpush.msra.mxu0 0.0
    %930 = vmatpush.msra.mxu0 %v874
    %931 = vmatpush.msra.mxu0 %v872
    %932 = vmatmul.f32.gmra.mxu0 %v876
    %v933 = vpop.f32.mrf.mxu0
    %v934 = vadd.f32 0.0, %v933
    %935 = vmatmul.f32.gmra.mxu0 %v879
    %v936 = vpop.f32.mrf.mxu0
    %v937 = vadd.f32 0.0, %v936
    %938 = vmatmul.f32.gmra.mxu0 %v882
    %v939 = vpop.f32.mrf.mxu0
    %v940 = vadd.f32 0.0, %v939
    %941 = vmatmul.f32.gmra.mxu0 %v885
    %v942 = vpop.f32.mrf.mxu0
    %v943 = vadd.f32 0.0, %v942
    %944 = vdwg.mxu0
    %v946 = vsel %vm484, %v102, 0
    %v949 = vsel %vm484, %v105, 0
    %v952 = vsel %vm484, %v108, 0
    %v955 = vsel %vm484, %v111, 0
    %957 = vmatpush.msra.mxu0 0.0
    %958 = vmatpush.msra.mxu0 0.0
    %959 = vmatpush.msra.mxu0 0.0
    %960 = vmatpush.msra.mxu0 0.0
    %961 = vmatpush.msra.mxu0 0.0
    %962 = vmatpush.msra.mxu0 0.0
    %963 = vmatpush.msra.mxu0 0.0
    %964 = vmatpush.msra.mxu0 0.0
    %965 = vmatpush.msra.mxu0 0.0
    %966 = vmatpush.msra.mxu0 0.0
    %967 = vmatpush.msra.mxu0 0.0
    %968 = vmatpush.msra.mxu0 0.0
    %969 = vmatpush.msra.mxu0 0.0
    %970 = vmatpush.msra.mxu0 0.0
    %971 = vmatpush.msra.mxu0 %v478
    %972 = vmatpush.msra.mxu0 %v476
    %973 = vmatmul.f32.gmra.mxu0 %v946
    %v974 = vpop.f32.mrf.mxu0
    %v975 = vadd.f32 %v515, %v974
    %976 = vmatmul.f32.gmra.mxu0 %v949
    %v977 = vpop.f32.mrf.mxu0
    %v978 = vadd.f32 %v518, %v977
    %979 = vmatmul.f32.gmra.mxu0 %v952
    %v980 = vpop.f32.mrf.mxu0
    %v981 = vadd.f32 %v521, %v980
    %982 = vmatmul.f32.gmra.mxu0 %v955
    %v983 = vpop.f32.mrf.mxu0
    %v984 = vadd.f32 %v524, %v983
    %985 = vdwg.mxu0
    %986 = vmatpush.msra.mxu0 0.0
    %987 = vmatpush.msra.mxu0 0.0
    %988 = vmatpush.msra.mxu0 0.0
    %989 = vmatpush.msra.mxu0 0.0
    %990 = vmatpush.msra.mxu0 0.0
    %991 = vmatpush.msra.mxu0 0.0
    %992 = vmatpush.msra.mxu0 0.0
    %993 = vmatpush.msra.mxu0 0.0
    %994 = vmatpush.msra.mxu0 0.0
    %995 = vmatpush.msra.mxu0 0.0
    %996 = vmatpush.msra.mxu0 0.0
    %997 = vmatpush.msra.mxu0 0.0
    %998 = vmatpush.msra.mxu0 0.0
    %999 = vmatpush.msra.mxu0 0.0
    %1000 = vmatpush.msra.mxu0 %v479
    %1001 = vmatpush.msra.mxu0 %v477
    %1002 = vmatmul.f32.gmra.mxu0 %v946
    %v1003 = vpop.f32.mrf.mxu0
    %v1004 = vadd.f32 %v544, %v1003
    %1005 = vmatmul.f32.gmra.mxu0 %v949
    %v1006 = vpop.f32.mrf.mxu0
    %v1007 = vadd.f32 %v547, %v1006
    %1008 = vmatmul.f32.gmra.mxu0 %v952
    %v1009 = vpop.f32.mrf.mxu0
    %v1010 = vadd.f32 %v550, %v1009
    %1011 = vmatmul.f32.gmra.mxu0 %v955
    %v1012 = vpop.f32.mrf.mxu0
    %v1013 = vadd.f32 %v553, %v1012
    %1014 = vdwg.mxu0
    %v1016 = vsel %vm484, %v168, 0
    %v1019 = vsel %vm484, %v171, 0
    %v1022 = vsel %vm484, %v174, 0
    %v1025 = vsel %vm484, %v177, 0
    %1027 = vmatpush.msra.mxu0 0.0
    %1028 = vmatpush.msra.mxu0 0.0
    %1029 = vmatpush.msra.mxu0 0.0
    %1030 = vmatpush.msra.mxu0 0.0
    %1031 = vmatpush.msra.mxu0 0.0
    %1032 = vmatpush.msra.mxu0 0.0
    %1033 = vmatpush.msra.mxu0 0.0
    %1034 = vmatpush.msra.mxu0 0.0
    %1035 = vmatpush.msra.mxu0 0.0
    %1036 = vmatpush.msra.mxu0 0.0
    %1037 = vmatpush.msra.mxu0 0.0
    %1038 = vmatpush.msra.mxu0 0.0
    %1039 = vmatpush.msra.mxu0 0.0
    %1040 = vmatpush.msra.mxu0 0.0
    %1041 = vmatpush.msra.mxu0 %v557
    %1042 = vmatpush.msra.mxu0 %v555
    %1043 = vmatmul.f32.gmra.mxu0 %v1016
    %v1044 = vpop.f32.mrf.mxu0
    %v1045 = vadd.f32 %v593, %v1044
    %1046 = vmatmul.f32.gmra.mxu0 %v1019
    %v1047 = vpop.f32.mrf.mxu0
    %v1048 = vadd.f32 %v596, %v1047
    %1049 = vmatmul.f32.gmra.mxu0 %v1022
    %v1050 = vpop.f32.mrf.mxu0
    %v1051 = vadd.f32 %v599, %v1050
    %1052 = vmatmul.f32.gmra.mxu0 %v1025
    %v1053 = vpop.f32.mrf.mxu0
    %v1054 = vadd.f32 %v602, %v1053
    %1055 = vdwg.mxu0
    %1056 = vmatpush.msra.mxu0 0.0
    %1057 = vmatpush.msra.mxu0 0.0
    %1058 = vmatpush.msra.mxu0 0.0
    %1059 = vmatpush.msra.mxu0 0.0
    %1060 = vmatpush.msra.mxu0 0.0
    %1061 = vmatpush.msra.mxu0 0.0
    %1062 = vmatpush.msra.mxu0 0.0
    %1063 = vmatpush.msra.mxu0 0.0
    %1064 = vmatpush.msra.mxu0 0.0
    %1065 = vmatpush.msra.mxu0 0.0
    %1066 = vmatpush.msra.mxu0 0.0
    %1067 = vmatpush.msra.mxu0 0.0
    %1068 = vmatpush.msra.mxu0 0.0
    %1069 = vmatpush.msra.mxu0 0.0
    %1070 = vmatpush.msra.mxu0 %v558
    %1071 = vmatpush.msra.mxu0 %v556
    %1072 = vmatmul.f32.gmra.mxu0 %v1016
    %v1073 = vpop.f32.mrf.mxu0
    %v1074 = vadd.f32 %v622, %v1073
    %1075 = vmatmul.f32.gmra.mxu0 %v1019
    %v1076 = vpop.f32.mrf.mxu0
    %v1077 = vadd.f32 %v625, %v1076
    %1078 = vmatmul.f32.gmra.mxu0 %v1022
    %v1079 = vpop.f32.mrf.mxu0
    %v1080 = vadd.f32 %v628, %v1079
    %1081 = vmatmul.f32.gmra.mxu0 %v1025
    %v1082 = vpop.f32.mrf.mxu0
    %v1083 = vadd.f32 %v631, %v1082
    %1084 = vdwg.mxu0
    %v1086 = vsel %vm484, %v234, 0
    %v1089 = vsel %vm484, %v237, 0
    %v1092 = vsel %vm484, %v240, 0
    %v1095 = vsel %vm484, %v243, 0
    %1097 = vmatpush.msra.mxu0 0.0
    %1098 = vmatpush.msra.mxu0 0.0
    %1099 = vmatpush.msra.mxu0 0.0
    %1100 = vmatpush.msra.mxu0 0.0
    %1101 = vmatpush.msra.mxu0 0.0
    %1102 = vmatpush.msra.mxu0 0.0
    %1103 = vmatpush.msra.mxu0 0.0
    %1104 = vmatpush.msra.mxu0 0.0
    %1105 = vmatpush.msra.mxu0 0.0
    %1106 = vmatpush.msra.mxu0 0.0
    %1107 = vmatpush.msra.mxu0 0.0
    %1108 = vmatpush.msra.mxu0 0.0
    %1109 = vmatpush.msra.mxu0 0.0
    %1110 = vmatpush.msra.mxu0 0.0
    %1111 = vmatpush.msra.mxu0 %v635
    %1112 = vmatpush.msra.mxu0 %v633
    %1113 = vmatmul.f32.gmra.mxu0 %v1086
    %v1114 = vpop.f32.mrf.mxu0
    %v1115 = vadd.f32 %v671, %v1114
    %1116 = vmatmul.f32.gmra.mxu0 %v1089
    %v1117 = vpop.f32.mrf.mxu0
    %v1118 = vadd.f32 %v674, %v1117
    %1119 = vmatmul.f32.gmra.mxu0 %v1092
    %v1120 = vpop.f32.mrf.mxu0
    %v1121 = vadd.f32 %v677, %v1120
    %1122 = vmatmul.f32.gmra.mxu0 %v1095
    %v1123 = vpop.f32.mrf.mxu0
    %v1124 = vadd.f32 %v680, %v1123
    %1125 = vdwg.mxu0
    %1126 = vmatpush.msra.mxu0 0.0
    %1127 = vmatpush.msra.mxu0 0.0
    %1128 = vmatpush.msra.mxu0 0.0
    %1129 = vmatpush.msra.mxu0 0.0
    %1130 = vmatpush.msra.mxu0 0.0
    %1131 = vmatpush.msra.mxu0 0.0
    %1132 = vmatpush.msra.mxu0 0.0
    %1133 = vmatpush.msra.mxu0 0.0
    %1134 = vmatpush.msra.mxu0 0.0
    %1135 = vmatpush.msra.mxu0 0.0
    %1136 = vmatpush.msra.mxu0 0.0
    %1137 = vmatpush.msra.mxu0 0.0
    %1138 = vmatpush.msra.mxu0 0.0
    %1139 = vmatpush.msra.mxu0 0.0
    %1140 = vmatpush.msra.mxu0 %v636
    %1141 = vmatpush.msra.mxu0 %v634
    %1142 = vmatmul.f32.gmra.mxu0 %v1086
    %v1143 = vpop.f32.mrf.mxu0
    %v1144 = vadd.f32 %v700, %v1143
    %1145 = vmatmul.f32.gmra.mxu0 %v1089
    %v1146 = vpop.f32.mrf.mxu0
    %v1147 = vadd.f32 %v703, %v1146
    %1148 = vmatmul.f32.gmra.mxu0 %v1092
    %v1149 = vpop.f32.mrf.mxu0
    %v1150 = vadd.f32 %v706, %v1149
    %1151 = vmatmul.f32.gmra.mxu0 %v1095
    %v1152 = vpop.f32.mrf.mxu0
    %v1153 = vadd.f32 %v709, %v1152
    %1154 = vdwg.mxu0
    %v1156 = vsel %vm484, %v300, 0
    %v1159 = vsel %vm484, %v303, 0
    %v1162 = vsel %vm484, %v306, 0
    %v1165 = vsel %vm484, %v309, 0
    %1167 = vmatpush.msra.mxu0 0.0
    %1168 = vmatpush.msra.mxu0 0.0
    %1169 = vmatpush.msra.mxu0 0.0
    %1170 = vmatpush.msra.mxu0 0.0
    %1171 = vmatpush.msra.mxu0 0.0
    %1172 = vmatpush.msra.mxu0 0.0
    %1173 = vmatpush.msra.mxu0 0.0
    %1174 = vmatpush.msra.mxu0 0.0
    %1175 = vmatpush.msra.mxu0 0.0
    %1176 = vmatpush.msra.mxu0 0.0
    %1177 = vmatpush.msra.mxu0 0.0
    %1178 = vmatpush.msra.mxu0 0.0
    %1179 = vmatpush.msra.mxu0 0.0
    %1180 = vmatpush.msra.mxu0 0.0
    %1181 = vmatpush.msra.mxu0 %v713
    %1182 = vmatpush.msra.mxu0 %v711
    %1183 = vmatmul.f32.gmra.mxu0 %v1156
    %v1184 = vpop.f32.mrf.mxu0
    %v1185 = vadd.f32 %v749, %v1184
    %1186 = vmatmul.f32.gmra.mxu0 %v1159
    %v1187 = vpop.f32.mrf.mxu0
    %v1188 = vadd.f32 %v752, %v1187
    %1189 = vmatmul.f32.gmra.mxu0 %v1162
    %v1190 = vpop.f32.mrf.mxu0
    %v1191 = vadd.f32 %v755, %v1190
    %1192 = vmatmul.f32.gmra.mxu0 %v1165
    %v1193 = vpop.f32.mrf.mxu0
    %v1194 = vadd.f32 %v758, %v1193
    %1195 = vdwg.mxu0
    %1196 = vmatpush.msra.mxu0 0.0
    %1197 = vmatpush.msra.mxu0 0.0
    %1198 = vmatpush.msra.mxu0 0.0
    %1199 = vmatpush.msra.mxu0 0.0
    %1200 = vmatpush.msra.mxu0 0.0
    %1201 = vmatpush.msra.mxu0 0.0
    %1202 = vmatpush.msra.mxu0 0.0
    %1203 = vmatpush.msra.mxu0 0.0
    %1204 = vmatpush.msra.mxu0 0.0
    %1205 = vmatpush.msra.mxu0 0.0
    %1206 = vmatpush.msra.mxu0 0.0
    %1207 = vmatpush.msra.mxu0 0.0
    %1208 = vmatpush.msra.mxu0 0.0
    %1209 = vmatpush.msra.mxu0 0.0
    %1210 = vmatpush.msra.mxu0 %v714
    %1211 = vmatpush.msra.mxu0 %v712
    %1212 = vmatmul.f32.gmra.mxu0 %v1156
    %v1213 = vpop.f32.mrf.mxu0
    %v1214 = vadd.f32 %v778, %v1213
    %1215 = vmatmul.f32.gmra.mxu0 %v1159
    %v1216 = vpop.f32.mrf.mxu0
    %v1217 = vadd.f32 %v781, %v1216
    %1218 = vmatmul.f32.gmra.mxu0 %v1162
    %v1219 = vpop.f32.mrf.mxu0
    %v1220 = vadd.f32 %v784, %v1219
    %1221 = vmatmul.f32.gmra.mxu0 %v1165
    %v1222 = vpop.f32.mrf.mxu0
    %v1223 = vadd.f32 %v787, %v1222
    %1224 = vdwg.mxu0
    %v1226 = vsel %vm484, %v366, 0
    %v1229 = vsel %vm484, %v369, 0
    %v1232 = vsel %vm484, %v372, 0
    %v1235 = vsel %vm484, %v375, 0
    %1237 = vmatpush.msra.mxu0 0.0
    %1238 = vmatpush.msra.mxu0 0.0
    %1239 = vmatpush.msra.mxu0 0.0
    %1240 = vmatpush.msra.mxu0 0.0
    %1241 = vmatpush.msra.mxu0 0.0
    %1242 = vmatpush.msra.mxu0 0.0
    %1243 = vmatpush.msra.mxu0 0.0
    %1244 = vmatpush.msra.mxu0 0.0
    %1245 = vmatpush.msra.mxu0 0.0
    %1246 = vmatpush.msra.mxu0 0.0
    %1247 = vmatpush.msra.mxu0 0.0
    %1248 = vmatpush.msra.mxu0 0.0
    %1249 = vmatpush.msra.mxu0 0.0
    %1250 = vmatpush.msra.mxu0 0.0
    %1251 = vmatpush.msra.mxu0 %v791
    %1252 = vmatpush.msra.mxu0 %v789
    %1253 = vmatmul.f32.gmra.mxu0 %v1226
    %v1254 = vpop.f32.mrf.mxu0
    %v1255 = vadd.f32 %v827, %v1254
    %1256 = vmatmul.f32.gmra.mxu0 %v1229
    %v1257 = vpop.f32.mrf.mxu0
    %v1258 = vadd.f32 %v830, %v1257
    %1259 = vmatmul.f32.gmra.mxu0 %v1232
    %v1260 = vpop.f32.mrf.mxu0
    %v1261 = vadd.f32 %v833, %v1260
    %1262 = vmatmul.f32.gmra.mxu0 %v1235
    %v1263 = vpop.f32.mrf.mxu0
    %v1264 = vadd.f32 %v836, %v1263
    %1265 = vdwg.mxu0
    %1266 = vmatpush.msra.mxu0 0.0
    %1267 = vmatpush.msra.mxu0 0.0
    %1268 = vmatpush.msra.mxu0 0.0
    %1269 = vmatpush.msra.mxu0 0.0
    %1270 = vmatpush.msra.mxu0 0.0
    %1271 = vmatpush.msra.mxu0 0.0
    %1272 = vmatpush.msra.mxu0 0.0
    %1273 = vmatpush.msra.mxu0 0.0
    %1274 = vmatpush.msra.mxu0 0.0
    %1275 = vmatpush.msra.mxu0 0.0
    %1276 = vmatpush.msra.mxu0 0.0
    %1277 = vmatpush.msra.mxu0 0.0
    %1278 = vmatpush.msra.mxu0 0.0
    %1279 = vmatpush.msra.mxu0 0.0
    %1280 = vmatpush.msra.mxu0 %v792
    %1281 = vmatpush.msra.mxu0 %v790
    %1282 = vmatmul.f32.gmra.mxu0 %v1226
    %v1283 = vpop.f32.mrf.mxu0
    %v1284 = vadd.f32 %v856, %v1283
    %1285 = vmatmul.f32.gmra.mxu0 %v1229
    %v1286 = vpop.f32.mrf.mxu0
    %v1287 = vadd.f32 %v859, %v1286
    %1288 = vmatmul.f32.gmra.mxu0 %v1232
    %v1289 = vpop.f32.mrf.mxu0
    %v1290 = vadd.f32 %v862, %v1289
    %1291 = vmatmul.f32.gmra.mxu0 %v1235
    %v1292 = vpop.f32.mrf.mxu0
    %v1293 = vadd.f32 %v865, %v1292
    %1294 = vdwg.mxu0
    %v1296 = vsel %vm484, %v432, 0
    %v1299 = vsel %vm484, %v435, 0
    %v1302 = vsel %vm484, %v438, 0
    %v1305 = vsel %vm484, %v441, 0
    %1307 = vmatpush.msra.mxu0 0.0
    %1308 = vmatpush.msra.mxu0 0.0
    %1309 = vmatpush.msra.mxu0 0.0
    %1310 = vmatpush.msra.mxu0 0.0
    %1311 = vmatpush.msra.mxu0 0.0
    %1312 = vmatpush.msra.mxu0 0.0
    %1313 = vmatpush.msra.mxu0 0.0
    %1314 = vmatpush.msra.mxu0 0.0
    %1315 = vmatpush.msra.mxu0 0.0
    %1316 = vmatpush.msra.mxu0 0.0
    %1317 = vmatpush.msra.mxu0 0.0
    %1318 = vmatpush.msra.mxu0 0.0
    %1319 = vmatpush.msra.mxu0 0.0
    %1320 = vmatpush.msra.mxu0 0.0
    %1321 = vmatpush.msra.mxu0 %v869
    %1322 = vmatpush.msra.mxu0 %v867
    %1323 = vmatmul.f32.gmra.mxu0 %v1296
    %v1324 = vpop.f32.mrf.mxu0
    %v1325 = vadd.f32 %v905, %v1324
    %1326 = vmatmul.f32.gmra.mxu0 %v1299
    %v1327 = vpop.f32.mrf.mxu0
    %v1328 = vadd.f32 %v908, %v1327
    %1329 = vmatmul.f32.gmra.mxu0 %v1302
    %v1330 = vpop.f32.mrf.mxu0
    %v1331 = vadd.f32 %v911, %v1330
    %1332 = vmatmul.f32.gmra.mxu0 %v1305
    %v1333 = vpop.f32.mrf.mxu0
    %v1334 = vadd.f32 %v914, %v1333
    %1335 = vdwg.mxu0
    %1336 = vmatpush.msra.mxu0 0.0
    %1337 = vmatpush.msra.mxu0 0.0
    %1338 = vmatpush.msra.mxu0 0.0
    %1339 = vmatpush.msra.mxu0 0.0
    %1340 = vmatpush.msra.mxu0 0.0
    %1341 = vmatpush.msra.mxu0 0.0
    %1342 = vmatpush.msra.mxu0 0.0
    %1343 = vmatpush.msra.mxu0 0.0
    %1344 = vmatpush.msra.mxu0 0.0
    %1345 = vmatpush.msra.mxu0 0.0
    %1346 = vmatpush.msra.mxu0 0.0
    %1347 = vmatpush.msra.mxu0 0.0
    %1348 = vmatpush.msra.mxu0 0.0
    %1349 = vmatpush.msra.mxu0 0.0
    %1350 = vmatpush.msra.mxu0 %v870
    %1351 = vmatpush.msra.mxu0 %v868
    %1352 = vmatmul.f32.gmra.mxu0 %v1296
    %v1353 = vpop.f32.mrf.mxu0
    %v1354 = vadd.f32 %v934, %v1353
    %1355 = vmatmul.f32.gmra.mxu0 %v1299
    %v1356 = vpop.f32.mrf.mxu0
    %v1357 = vadd.f32 %v937, %v1356
    %1358 = vmatmul.f32.gmra.mxu0 %v1302
    %v1359 = vpop.f32.mrf.mxu0
    %v1360 = vadd.f32 %v940, %v1359
    %1361 = vmatmul.f32.gmra.mxu0 %v1305
    %v1362 = vpop.f32.mrf.mxu0
    %v1363 = vadd.f32 %v943, %v1362
    %1364 = vdwg.mxu0
    %v1365 = vadd.f32 %v975, %v1045
    %v1366 = vadd.f32 %v1004, %v1074
    %v1367 = vadd.f32 %v978, %v1048
    %v1368 = vadd.f32 %v1007, %v1077
    %v1369 = vadd.f32 %v981, %v1051
    %v1370 = vadd.f32 %v1010, %v1080
    %v1371 = vadd.f32 %v984, %v1054
    %v1372 = vadd.f32 %v1013, %v1083
    %v1373 = vadd.f32 %v1115, %v1185
    %v1374 = vadd.f32 %v1144, %v1214
    %v1375 = vadd.f32 %v1118, %v1188
    %v1376 = vadd.f32 %v1147, %v1217
    %v1377 = vadd.f32 %v1121, %v1191
    %v1378 = vadd.f32 %v1150, %v1220
    %v1379 = vadd.f32 %v1124, %v1194
    %v1380 = vadd.f32 %v1153, %v1223
    %v1381 = vadd.f32 %v1255, %v1325
    %v1382 = vadd.f32 %v1284, %v1354
    %v1383 = vadd.f32 %v1258, %v1328
    %v1384 = vadd.f32 %v1287, %v1357
    %v1385 = vadd.f32 %v1261, %v1331
    %v1386 = vadd.f32 %v1290, %v1360
    %v1387 = vadd.f32 %v1264, %v1334
    %v1388 = vadd.f32 %v1293, %v1363
    %v1389 = vadd.f32 %v1365, %v1373
    %v1390 = vadd.f32 %v1366, %v1374
    %v1391 = vadd.f32 %v1367, %v1375
    %v1392 = vadd.f32 %v1368, %v1376
    %v1393 = vadd.f32 %v1369, %v1377
    %v1394 = vadd.f32 %v1370, %v1378
    %v1395 = vadd.f32 %v1371, %v1379
    %v1396 = vadd.f32 %v1372, %v1380
    %v1397 = vadd.f32 %v1389, %v1381
    %v1398 = vadd.f32 %v1390, %v1382
    %v1399 = vadd.f32 %v1391, %v1383
    %v1400 = vadd.f32 %v1392, %v1384
    %v1401 = vadd.f32 %v1393, %v1385
    %v1402 = vadd.f32 %v1394, %v1386
    %v1403 = vadd.f32 %v1395, %v1387
    %v1404 = vadd.f32 %v1396, %v1388
    %s1405 = scalar_lea.vmem [#allocation7], 1936
    %v1406 = vld [vmem:[%s1405] ss:$8 sm:$0x3]
    %v1408 = vperm.slane %v1406, 0
    %v1409 = vperm.slane %v1406, 1
    %v1412 = vadd.f32 %v1397, %v1408
    %v1413 = vadd.f32 %v1398, %v1409
    %v1414 = vadd.f32 %v1399, %v1408
    %v1415 = vadd.f32 %v1400, %v1409
    %v1416 = vadd.f32 %v1401, %v1408
    %v1417 = vadd.f32 %v1402, %v1409
    %v1418 = vadd.f32 %v1403, %v1408
    %v1419 = vadd.f32 %v1404, %v1409
    %v1420 = vmax.f32 %v1412, 0.0
    %v1421 = vmax.f32 %v1413, 0.0
    %v1422 = vmax.f32 %v1414, 0.0
    %v1423 = vmax.f32 %v1415, 0.0
    %v1424 = vmax.f32 %v1416, 0.0
    %v1425 = vmax.f32 %v1417, 0.0
    %v1426 = vmax.f32 %v1418, 0.0
    %v1427 = vmax.f32 %v1419, 0.0
    %v1428 = vld [vmem:[#allocation5 + $0x480] sm:$0xff]
    %v1429 = vld [vmem:[#allocation5 + $0x488] sm:$0xf]
    %vm1430 = vcmask 228352
    %v1432 = vsel %vm1430, %v1428, 0
    %v1435 = vsel %vm1430, %v1429, 0
    %vm1437 = vcmask 1043456
    %v1439 = vsel %vm1437, %v1426, 0
    %v1442 = vsel %vm1437, %v1427, 0
    %1444 = vmatpush.msra.mxu0 0.0
    %1445 = vmatpush.msra.mxu0 0.0
    %1446 = vmatpush.msra.mxu0 0.0
    %1447 = vmatpush.msra.mxu0 0.0
    %1448 = vmatpush.msra.mxu0 0.0
    %1449 = vmatpush.msra.mxu0 0.0
    %1450 = vmatpush.msra.mxu0 0.0
    %1451 = vmatpush.msra.mxu0 0.0
    %1452 = vmatpush.msra.mxu0 0.0
    %1453 = vmatpush.msra.mxu0 0.0
    %1454 = vmatpush.msra.mxu0 0.0
    %1455 = vmatpush.msra.mxu0 0.0
    %1456 = vmatpush.msra.mxu0 %v1439
    %1457 = vmatpush.msra.mxu0 %v1424
    %1458 = vmatpush.msra.mxu0 %v1422
    %1459 = vmatpush.msra.mxu0 %v1420
    %1460 = vmatmul.f32.gmra.mxu0 %v1432
    %v1461 = vpop.f32.mrf.mxu0
    %v1462 = vadd.f32 0.0, %v1461
    %1463 = vmatmul.f32.gmra.mxu0 %v1435
    %v1464 = vpop.f32.mrf.mxu0
    %v1465 = vadd.f32 0.0, %v1464
    %1466 = vdwg.mxu0
    %1467 = vmatpush.msra.mxu0 0.0
    %1468 = vmatpush.msra.mxu0 0.0
    %1469 = vmatpush.msra.mxu0 0.0
    %1470 = vmatpush.msra.mxu0 0.0
    %1471 = vmatpush.msra.mxu0 0.0
    %1472 = vmatpush.msra.mxu0 0.0
    %1473 = vmatpush.msra.mxu0 0.0
    %1474 = vmatpush.msra.mxu0 0.0
    %1475 = vmatpush.msra.mxu0 0.0
    %1476 = vmatpush.msra.mxu0 0.0
    %1477 = vmatpush.msra.mxu0 0.0
    %1478 = vmatpush.msra.mxu0 0.0
    %1479 = vmatpush.msra.mxu0 %v1442
    %1480 = vmatpush.msra.mxu0 %v1425
    %1481 = vmatpush.msra.mxu0 %v1423
    %1482 = vmatpush.msra.mxu0 %v1421
    %1483 = vmatmul.f32.gmra.mxu0 %v1432
    %v1484 = vpop.f32.mrf.mxu0
    %v1485 = vadd.f32 0.0, %v1484
    %1486 = vmatmul.f32.gmra.mxu0 %v1435
    %v1487 = vpop.f32.mrf.mxu0
    %v1488 = vadd.f32 0.0, %v1487
    %1489 = vdwg.mxu0
    %v1490 = vld [vmem:[#allocation5 + $0x490] sm:$0xff]
    %v1491 = vld [vmem:[#allocation5 + $0x498] sm:$0xf]
    %v1493 = vsel %vm1430, %v1490, 0
    %v1496 = vsel %vm1430, %v1491, 0
    %1498 = vmatpush.msra.mxu0 0.0
    %1499 = vmatpush.msra.mxu0 0.0
    %1500 = vmatpush.msra.mxu0 0.0
    %1501 = vmatpush.msra.mxu0 0.0
    %1502 = vmatpush.msra.mxu0 0.0
    %1503 = vmatpush.msra.mxu0 0.0
    %1504 = vmatpush.msra.mxu0 0.0
    %1505 = vmatpush.msra.mxu0 0.0
    %1506 = vmatpush.msra.mxu0 0.0
    %1507 = vmatpush.msra.mxu0 0.0
    %1508 = vmatpush.msra.mxu0 0.0
    %1509 = vmatpush.msra.mxu0 0.0
    %1510 = vmatpush.msra.mxu0 %v1439
    %1511 = vmatpush.msra.mxu0 %v1424
    %1512 = vmatpush.msra.mxu0 %v1422
    %1513 = vmatpush.msra.mxu0 %v1420
    %1514 = vmatmul.f32.gmra.mxu0 %v1493
    %v1515 = vpop.f32.mrf.mxu0
    %v1516 = vadd.f32 0.0, %v1515
    %1517 = vmatmul.f32.gmra.mxu0 %v1496
    %v1518 = vpop.f32.mrf.mxu0
    %v1519 = vadd.f32 0.0, %v1518
    %1520 = vdwg.mxu0
    %1521 = vmatpush.msra.mxu0 0.0
    %1522 = vmatpush.msra.mxu0 0.0
    %1523 = vmatpush.msra.mxu0 0.0
    %1524 = vmatpush.msra.mxu0 0.0
    %1525 = vmatpush.msra.mxu0 0.0
    %1526 = vmatpush.msra.mxu0 0.0
    %1527 = vmatpush.msra.mxu0 0.0
    %1528 = vmatpush.msra.mxu0 0.0
    %1529 = vmatpush.msra.mxu0 0.0
    %1530 = vmatpush.msra.mxu0 0.0
    %1531 = vmatpush.msra.mxu0 0.0
    %1532 = vmatpush.msra.mxu0 0.0
    %1533 = vmatpush.msra.mxu0 %v1442
    %1534 = vmatpush.msra.mxu0 %v1425
    %1535 = vmatpush.msra.mxu0 %v1423
    %1536 = vmatpush.msra.mxu0 %v1421
    %1537 = vmatmul.f32.gmra.mxu0 %v1493
    %v1538 = vpop.f32.mrf.mxu0
    %v1539 = vadd.f32 0.0, %v1538
    %1540 = vmatmul.f32.gmra.mxu0 %v1496
    %v1541 = vpop.f32.mrf.mxu0
    %v1542 = vadd.f32 0.0, %v1541
    %1543 = vdwg.mxu0
    %v1544 = vld [vmem:[#allocation5 + $0x4a0] sm:$0xff]
    %v1545 = vld [vmem:[#allocation5 + $0x4a8] sm:$0xf]
    %v1547 = vsel %vm1430, %v1544, 0
    %v1550 = vsel %vm1430, %v1545, 0
    %1552 = vmatpush.msra.mxu0 0.0
    %1553 = vmatpush.msra.mxu0 0.0
    %1554 = vmatpush.msra.mxu0 0.0
    %1555 = vmatpush.msra.mxu0 0.0
    %1556 = vmatpush.msra.mxu0 0.0
    %1557 = vmatpush.msra.mxu0 0.0
    %1558 = vmatpush.msra.mxu0 0.0
    %1559 = vmatpush.msra.mxu0 0.0
    %1560 = vmatpush.msra.mxu0 0.0
    %1561 = vmatpush.msra.mxu0 0.0
    %1562 = vmatpush.msra.mxu0 0.0
    %1563 = vmatpush.msra.mxu0 0.0
    %1564 = vmatpush.msra.mxu0 %v1439
    %1565 = vmatpush.msra.mxu0 %v1424
    %1566 = vmatpush.msra.mxu0 %v1422
    %1567 = vmatpush.msra.mxu0 %v1420
    %1568 = vmatmul.f32.gmra.mxu0 %v1547
    %v1569 = vpop.f32.mrf.mxu0
    %v1570 = vadd.f32 0.0, %v1569
    %1571 = vmatmul.f32.gmra.mxu0 %v1550
    %v1572 = vpop.f32.mrf.mxu0
    %v1573 = vadd.f32 0.0, %v1572
    %1574 = vdwg.mxu0
    %1575 = vmatpush.msra.mxu0 0.0
    %1576 = vmatpush.msra.mxu0 0.0
    %1577 = vmatpush.msra.mxu0 0.0
    %1578 = vmatpush.msra.mxu0 0.0
    %1579 = vmatpush.msra.mxu0 0.0
    %1580 = vmatpush.msra.mxu0 0.0
    %1581 = vmatpush.msra.mxu0 0.0
    %1582 = vmatpush.msra.mxu0 0.0
    %1583 = vmatpush.msra.mxu0 0.0
    %1584 = vmatpush.msra.mxu0 0.0
    %1585 = vmatpush.msra.mxu0 0.0
    %1586 = vmatpush.msra.mxu0 0.0
    %1587 = vmatpush.msra.mxu0 %v1442
    %1588 = vmatpush.msra.mxu0 %v1425
    %1589 = vmatpush.msra.mxu0 %v1423
    %1590 = vmatpush.msra.mxu0 %v1421
    %1591 = vmatmul.f32.gmra.mxu0 %v1547
    %v1592 = vpop.f32.mrf.mxu0
    %v1593 = vadd.f32 0.0, %v1592
    %1594 = vmatmul.f32.gmra.mxu0 %v1550
    %v1595 = vpop.f32.mrf.mxu0
    %v1596 = vadd.f32 0.0, %v1595
    %1597 = vdwg.mxu0
    %v1598 = vld [vmem:[#allocation5] sm:$0xff]
    %v1599 = vld [vmem:[#allocation5 + $0x8] sm:$0xff]
    %v1600 = vld [vmem:[#allocation5 + $0x10] sm:$0xff]
    %v1601 = vld [vmem:[#allocation5 + $0x18] sm:$0xff]
    %v1602 = vld [vmem:[#allocation5 + $0x20] sm:$0xff]
    %v1603 = vld [vmem:[#allocation5 + $0x28] sm:$0xff]
    %v1604 = vld [vmem:[#allocation5 + $0x30] sm:$0xff]
    %v1605 = vld [vmem:[#allocation5 + $0x38] sm:$0xff]
    %v1606 = vld [vmem:[#allocation5 + $0x40] sm:$0xff]
    %v1607 = vld [vmem:[#allocation5 + $0x48] sm:$0xff]
    %v1608 = vld [vmem:[#allocation5 + $0x50] sm:$0xff]
    %v1609 = vld [vmem:[#allocation5 + $0x58] sm:$0xff]
    %v1610 = vld [vmem:[#allocation5 + $0x60] sm:$0xff]
    %v1611 = vld [vmem:[#allocation5 + $0x68] sm:$0xff]
    %v1612 = vld [vmem:[#allocation5 + $0x70] sm:$0xff]
    %v1613 = vld [vmem:[#allocation5 + $0x78] sm:$0xff]
    %v1614 = vld [vmem:[#allocation5 + $0x80] sm:$0xff]
    %v1615 = vld [vmem:[#allocation5 + $0x88] sm:$0xff]
    %v1616 = vld [vmem:[#allocation5 + $0x90] sm:$0xff]
    %v1617 = vld [vmem:[#allocation5 + $0x98] sm:$0xff]
    %v1618 = vld [vmem:[#allocation5 + $0xa0] sm:$0xff]
    %v1619 = vld [vmem:[#allocation5 + $0xa8] sm:$0xff]
    %v1620 = vld [vmem:[#allocation5 + $0xb0] sm:$0xff]
    %v1621 = vld [vmem:[#allocation5 + $0xb8] sm:$0xff]
    %v1622 = vld [vmem:[#allocation5 + $0xc0] sm:$0xff]
    %v1623 = vld [vmem:[#allocation5 + $0xc8] sm:$0xff]
    %v1624 = vld [vmem:[#allocation5 + $0xd0] sm:$0xff]
    %v1625 = vld [vmem:[#allocation5 + $0xd8] sm:$0xff]
    %v1626 = vld [vmem:[#allocation5 + $0xe0] sm:$0xff]
    %v1627 = vld [vmem:[#allocation5 + $0xe8] sm:$0xff]
    %v1628 = vld [vmem:[#allocation5 + $0xf0] sm:$0xff]
    %v1629 = vld [vmem:[#allocation5 + $0xf8] sm:$0xff]
    %v1630 = vld [vmem:[#allocation5 + $0x100] sm:$0xff]
    %v1631 = vld [vmem:[#allocation5 + $0x108] sm:$0xff]
    %v1632 = vld [vmem:[#allocation5 + $0x110] sm:$0xff]
    %v1633 = vld [vmem:[#allocation5 + $0x118] sm:$0xff]
    %v1634 = vld [vmem:[#allocation5 + $0x120] sm:$0xff]
    %v1635 = vld [vmem:[#allocation5 + $0x128] sm:$0xff]
    %v1636 = vld [vmem:[#allocation5 + $0x130] sm:$0xff]
    %v1637 = vld [vmem:[#allocation5 + $0x138] sm:$0xff]
    %v1638 = vld [vmem:[#allocation5 + $0x140] sm:$0xff]
    %v1639 = vld [vmem:[#allocation5 + $0x148] sm:$0xff]
    %v1640 = vld [vmem:[#allocation5 + $0x150] sm:$0xff]
    %v1641 = vld [vmem:[#allocation5 + $0x158] sm:$0xff]
    %v1642 = vld [vmem:[#allocation5 + $0x160] sm:$0xff]
    %v1643 = vld [vmem:[#allocation5 + $0x168] sm:$0xff]
    %v1644 = vld [vmem:[#allocation5 + $0x170] sm:$0xff]
    %v1645 = vld [vmem:[#allocation5 + $0x178] sm:$0xff]
    %v1646 = vld [vmem:[#allocation5 + $0x180] sm:$0xff]
    %v1647 = vld [vmem:[#allocation5 + $0x188] sm:$0xff]
    %v1648 = vld [vmem:[#allocation5 + $0x190] sm:$0xff]
    %v1649 = vld [vmem:[#allocation5 + $0x198] sm:$0xff]
    %v1650 = vld [vmem:[#allocation5 + $0x1a0] sm:$0xff]
    %v1651 = vld [vmem:[#allocation5 + $0x1a8] sm:$0xff]
    %v1652 = vld [vmem:[#allocation5 + $0x1b0] sm:$0xff]
    %v1653 = vld [vmem:[#allocation5 + $0x1b8] sm:$0xff]
    %v1654 = vld [vmem:[#allocation5 + $0x1c0] sm:$0xff]
    %v1655 = vld [vmem:[#allocation5 + $0x1c8] sm:$0xff]
    %v1656 = vld [vmem:[#allocation5 + $0x1d0] sm:$0xff]
    %v1657 = vld [vmem:[#allocation5 + $0x1d8] sm:$0xff]
    %v1658 = vld [vmem:[#allocation5 + $0x1e0] sm:$0xff]
    %v1659 = vld [vmem:[#allocation5 + $0x1e8] sm:$0xff]
    %v1660 = vld [vmem:[#allocation5 + $0x1f0] sm:$0xff]
    %v1661 = vld [vmem:[#allocation5 + $0x1f8] sm:$0xff]
    %v1662 = vld [vmem:[#allocation5 + $0x200] sm:$0xff]
    %v1663 = vld [vmem:[#allocation5 + $0x208] sm:$0xff]
    %v1664 = vld [vmem:[#allocation5 + $0x210] sm:$0xff]
    %v1665 = vld [vmem:[#allocation5 + $0x218] sm:$0xff]
    %v1666 = vld [vmem:[#allocation5 + $0x220] sm:$0xff]
    %v1667 = vld [vmem:[#allocation5 + $0x228] sm:$0xff]
    %v1668 = vld [vmem:[#allocation5 + $0x230] sm:$0xff]
    %v1669 = vld [vmem:[#allocation5 + $0x238] sm:$0xff]
    %v1670 = vld [vmem:[#allocation5 + $0x240] sm:$0xff]
    %v1671 = vld [vmem:[#allocation5 + $0x248] sm:$0xff]
    %v1672 = vld [vmem:[#allocation5 + $0x250] sm:$0xff]
    %v1673 = vld [vmem:[#allocation5 + $0x258] sm:$0xff]
    %v1674 = vld [vmem:[#allocation5 + $0x260] sm:$0xff]
    %v1675 = vld [vmem:[#allocation5 + $0x268] sm:$0xff]
    %v1676 = vld [vmem:[#allocation5 + $0x270] sm:$0xff]
    %v1677 = vld [vmem:[#allocation5 + $0x278] sm:$0xff]
    %v1678 = vld [vmem:[#allocation5 + $0x280] sm:$0xff]
    %v1679 = vld [vmem:[#allocation5 + $0x288] sm:$0xff]
    %v1680 = vld [vmem:[#allocation5 + $0x290] sm:$0xff]
    %v1681 = vld [vmem:[#allocation5 + $0x298] sm:$0xff]
    %v1682 = vld [vmem:[#allocation5 + $0x2a0] sm:$0xff]
    %v1683 = vld [vmem:[#allocation5 + $0x2a8] sm:$0xff]
    %v1684 = vld [vmem:[#allocation5 + $0x2b0] sm:$0xff]
    %v1685 = vld [vmem:[#allocation5 + $0x2b8] sm:$0xff]
    %v1686 = vld [vmem:[#allocation5 + $0x2c0] sm:$0xff]
    %v1687 = vld [vmem:[#allocation5 + $0x2c8] sm:$0xff]
    %v1688 = vld [vmem:[#allocation5 + $0x2d0] sm:$0xff]
    %v1689 = vld [vmem:[#allocation5 + $0x2d8] sm:$0xff]
    %v1690 = vld [vmem:[#allocation5 + $0x2e0] sm:$0xff]
    %v1691 = vld [vmem:[#allocation5 + $0x2e8] sm:$0xff]
    %v1692 = vld [vmem:[#allocation5 + $0x2f0] sm:$0xff]
    %v1693 = vld [vmem:[#allocation5 + $0x2f8] sm:$0xff]
    %v1694 = vld [vmem:[#allocation7 + $0x791] ss:$0 sm:$0xff]
    %1695 = vmatpush.msra.mxu0 %v1613
    %1696 = vmatpush.msra.mxu0 %v1612
    %1697 = vmatpush.msra.mxu0 %v1611
    %1698 = vmatpush.msra.mxu0 %v1610
    %1699 = vmatpush.msra.mxu0 %v1609
    %1700 = vmatpush.msra.mxu0 %v1608
    %1701 = vmatpush.msra.mxu0 %v1607
    %1702 = vmatpush.msra.mxu0 %v1606
    %1703 = vmatpush.msra.mxu0 %v1605
    %1704 = vmatpush.msra.mxu0 %v1604
    %1705 = vmatpush.msra.mxu0 %v1603
    %1706 = vmatpush.msra.mxu0 %v1602
    %1707 = vmatpush.msra.mxu0 %v1601
    %1708 = vmatpush.msra.mxu0 %v1600
    %1709 = vmatpush.msra.mxu0 %v1599
    %1710 = vmatpush.msra.mxu0 %v1598
    %1711 = vmatmul.f32.gmra.mxu0 %v1462
    %v1712 = vpop.f32.mrf.mxu0
    %v1713 = vadd.f32 %v1694, %v1712
    %1714 = vmatmul.f32.gmra.mxu0 %v1465
    %v1715 = vpop.f32.mrf.mxu0
    %v1716 = vadd.f32 %v1694, %v1715
    %1717 = vdwg.mxu0
    %1718 = vmatpush.msra.mxu0 %v1629
    %1719 = vmatpush.msra.mxu0 %v1628
    %1720 = vmatpush.msra.mxu0 %v1627
    %1721 = vmatpush.msra.mxu0 %v1626
    %1722 = vmatpush.msra.mxu0 %v1625
    %1723 = vmatpush.msra.mxu0 %v1624
    %1724 = vmatpush.msra.mxu0 %v1623
    %1725 = vmatpush.msra.mxu0 %v1622
    %1726 = vmatpush.msra.mxu0 %v1621
    %1727 = vmatpush.msra.mxu0 %v1620
    %1728 = vmatpush.msra.mxu0 %v1619
    %1729 = vmatpush.msra.mxu0 %v1618
    %1730 = vmatpush.msra.mxu0 %v1617
    %1731 = vmatpush.msra.mxu0 %v1616
    %1732 = vmatpush.msra.mxu0 %v1615
    %1733 = vmatpush.msra.mxu0 %v1614
    %1734 = vmatmul.f32.gmra.mxu0 %v1485
    %v1735 = vpop.f32.mrf.mxu0
    %v1736 = vadd.f32 %v1713, %v1735
    %1737 = vmatmul.f32.gmra.mxu0 %v1488
    %v1738 = vpop.f32.mrf.mxu0
    %v1739 = vadd.f32 %v1716, %v1738
    %1740 = vdwg.mxu0
    %1741 = vmatpush.msra.mxu0 %v1645
    %1742 = vmatpush.msra.mxu0 %v1644
    %1743 = vmatpush.msra.mxu0 %v1643
    %1744 = vmatpush.msra.mxu0 %v1642
    %1745 = vmatpush.msra.mxu0 %v1641
    %1746 = vmatpush.msra.mxu0 %v1640
    %1747 = vmatpush.msra.mxu0 %v1639
    %1748 = vmatpush.msra.mxu0 %v1638
    %1749 = vmatpush.msra.mxu0 %v1637
    %1750 = vmatpush.msra.mxu0 %v1636
    %1751 = vmatpush.msra.mxu0 %v1635
    %1752 = vmatpush.msra.mxu0 %v1634
    %1753 = vmatpush.msra.mxu0 %v1633
    %1754 = vmatpush.msra.mxu0 %v1632
    %1755 = vmatpush.msra.mxu0 %v1631
    %1756 = vmatpush.msra.mxu0 %v1630
    %1757 = vmatmul.f32.gmra.mxu0 %v1516
    %v1758 = vpop.f32.mrf.mxu0
    %v1759 = vadd.f32 %v1736, %v1758
    %1760 = vmatmul.f32.gmra.mxu0 %v1519
    %v1761 = vpop.f32.mrf.mxu0
    %v1762 = vadd.f32 %v1739, %v1761
    %1763 = vdwg.mxu0
    %1764 = vmatpush.msra.mxu0 %v1661
    %1765 = vmatpush.msra.mxu0 %v1660
    %1766 = vmatpush.msra.mxu0 %v1659
    %1767 = vmatpush.msra.mxu0 %v1658
    %1768 = vmatpush.msra.mxu0 %v1657
    %1769 = vmatpush.msra.mxu0 %v1656
    %1770 = vmatpush.msra.mxu0 %v1655
    %1771 = vmatpush.msra.mxu0 %v1654
    %1772 = vmatpush.msra.mxu0 %v1653
    %1773 = vmatpush.msra.mxu0 %v1652
    %1774 = vmatpush.msra.mxu0 %v1651
    %1775 = vmatpush.msra.mxu0 %v1650
    %1776 = vmatpush.msra.mxu0 %v1649
    %1777 = vmatpush.msra.mxu0 %v1648
    %1778 = vmatpush.msra.mxu0 %v1647
    %1779 = vmatpush.msra.mxu0 %v1646
    %1780 = vmatmul.f32.gmra.mxu0 %v1539
    %v1781 = vpop.f32.mrf.mxu0
    %v1782 = vadd.f32 %v1759, %v1781
    %1783 = vmatmul.f32.gmra.mxu0 %v1542
    %v1784 = vpop.f32.mrf.mxu0
    %v1785 = vadd.f32 %v1762, %v1784
    %1786 = vdwg.mxu0
    %1787 = vmatpush.msra.mxu0 %v1677
    %1788 = vmatpush.msra.mxu0 %v1676
    %1789 = vmatpush.msra.mxu0 %v1675
    %1790 = vmatpush.msra.mxu0 %v1674
    %1791 = vmatpush.msra.mxu0 %v1673
    %1792 = vmatpush.msra.mxu0 %v1672
    %1793 = vmatpush.msra.mxu0 %v1671
    %1794 = vmatpush.msra.mxu0 %v1670
    %1795 = vmatpush.msra.mxu0 %v1669
    %1796 = vmatpush.msra.mxu0 %v1668
    %1797 = vmatpush.msra.mxu0 %v1667
    %1798 = vmatpush.msra.mxu0 %v1666
    %1799 = vmatpush.msra.mxu0 %v1665
    %1800 = vmatpush.msra.mxu0 %v1664
    %1801 = vmatpush.msra.mxu0 %v1663
    %1802 = vmatpush.msra.mxu0 %v1662
    %1803 = vmatmul.f32.gmra.mxu0 %v1570
    %v1804 = vpop.f32.mrf.mxu0
    %v1805 = vadd.f32 %v1782, %v1804
    %1806 = vmatmul.f32.gmra.mxu0 %v1573
    %v1807 = vpop.f32.mrf.mxu0
    %v1808 = vadd.f32 %v1785, %v1807
    %1809 = vdwg.mxu0
    %1810 = vmatpush.msra.mxu0 %v1693
    %1811 = vmatpush.msra.mxu0 %v1692
    %1812 = vmatpush.msra.mxu0 %v1691
    %1813 = vmatpush.msra.mxu0 %v1690
    %1814 = vmatpush.msra.mxu0 %v1689
    %1815 = vmatpush.msra.mxu0 %v1688
    %1816 = vmatpush.msra.mxu0 %v1687
    %1817 = vmatpush.msra.mxu0 %v1686
    %1818 = vmatpush.msra.mxu0 %v1685
    %1819 = vmatpush.msra.mxu0 %v1684
    %1820 = vmatpush.msra.mxu0 %v1683
    %1821 = vmatpush.msra.mxu0 %v1682
    %1822 = vmatpush.msra.mxu0 %v1681
    %1823 = vmatpush.msra.mxu0 %v1680
    %1824 = vmatpush.msra.mxu0 %v1679
    %1825 = vmatpush.msra.mxu0 %v1678
    %1826 = vmatmul.f32.gmra.mxu0 %v1593
    %v1827 = vpop.f32.mrf.mxu0
    %v1828 = vadd.f32 %v1805, %v1827
    %1829 = vmatmul.f32.gmra.mxu0 %v1596
    %v1830 = vpop.f32.mrf.mxu0
    %v1831 = vadd.f32 %v1808, %v1830
    %1832 = vdwg.mxu0
    %v1833 = vmax.f32 %v1828, 0.0
    %v1834 = vmax.f32 %v1831, 0.0
    %v1836 = vrot.slane %v1833, 2
    %v1838 = vrot.slane %v1833, 4
    %v1840 = vrot.slane %v1833, 6
    %v1843 = vrot.slane %v1834, 2
    %v1845 = vld [vmem:[#allocation7 + $0x180] sm:$0xff]
    %v1846 = vld [vmem:[#allocation7 + $0x188] sm:$0xff]
    %v1847 = vld [vmem:[#allocation7 + $0x190] sm:$0xff]
    %v1848 = vld [vmem:[#allocation7 + $0x198] sm:$0xff]
    %v1849 = vld [vmem:[#allocation7 + $0x1a0] sm:$0xff]
    %v1850 = vld [vmem:[#allocation7 + $0x1a8] sm:$0xff]
    %v1851 = vld [vmem:[#allocation7 + $0x1b0] sm:$0xff]
    %v1852 = vld [vmem:[#allocation7 + $0x1b8] sm:$0xff]
    %v1853 = vld [vmem:[#allocation7 + $0x1c0] sm:$0xff]
    %v1854 = vld [vmem:[#allocation7 + $0x1c8] sm:$0xff]
    %v1855 = vld [vmem:[#allocation7 + $0x1d0] sm:$0xff]
    %v1856 = vld [vmem:[#allocation7 + $0x1d8] sm:$0xff]
    %v1857 = vld [vmem:[#allocation7 + $0x1e0] sm:$0xff]
    %v1858 = vld [vmem:[#allocation7 + $0x1e8] sm:$0xff]
    %v1859 = vld [vmem:[#allocation7 + $0x1f0] sm:$0xff]
    %v1860 = vld [vmem:[#allocation7 + $0x1f8] sm:$0xff]
    %v1861 = vld [vmem:[#allocation7 + $0x200] sm:$0xff]
    %v1862 = vld [vmem:[#allocation7 + $0x208] sm:$0xff]
    %v1863 = vld [vmem:[#allocation7 + $0x210] sm:$0xff]
    %v1864 = vld [vmem:[#allocation7 + $0x218] sm:$0xff]
    %v1865 = vld [vmem:[#allocation7 + $0x220] sm:$0xff]
    %v1866 = vld [vmem:[#allocation7 + $0x228] sm:$0xff]
    %v1867 = vld [vmem:[#allocation7 + $0x230] sm:$0xff]
    %v1868 = vld [vmem:[#allocation7 + $0x238] sm:$0xff]
    %v1869 = vld [vmem:[#allocation7 + $0x240] sm:$0xff]
    %v1870 = vld [vmem:[#allocation7 + $0x248] sm:$0xff]
    %v1871 = vld [vmem:[#allocation7 + $0x250] sm:$0xff]
    %v1872 = vld [vmem:[#allocation7 + $0x258] sm:$0xff]
    %v1873 = vld [vmem:[#allocation7 + $0x260] sm:$0xff]
    %v1874 = vld [vmem:[#allocation7 + $0x268] sm:$0xff]
    %v1875 = vld [vmem:[#allocation7 + $0x270] sm:$0xff]
    %v1876 = vld [vmem:[#allocation7 + $0x278] sm:$0xff]
    %v1877 = vld [vmem:[#allocation7 + $0x280] sm:$0xff]
    %v1878 = vld [vmem:[#allocation7 + $0x288] sm:$0xff]
    %v1879 = vld [vmem:[#allocation7 + $0x290] sm:$0xff]
    %v1880 = vld [vmem:[#allocation7 + $0x298] sm:$0xff]
    %v1881 = vld [vmem:[#allocation7 + $0x2a0] sm:$0xff]
    %v1882 = vld [vmem:[#allocation7 + $0x2a8] sm:$0xff]
    %v1883 = vld [vmem:[#allocation7 + $0x2b0] sm:$0xff]
    %v1884 = vld [vmem:[#allocation7 + $0x2b8] sm:$0xff]
    %v1885 = vld [vmem:[#allocation7 + $0x2c0] sm:$0xff]
    %v1886 = vld [vmem:[#allocation7 + $0x2c8] sm:$0xff]
    %v1887 = vld [vmem:[#allocation7 + $0x2d0] sm:$0xff]
    %v1888 = vld [vmem:[#allocation7 + $0x2d8] sm:$0xff]
    %v1889 = vld [vmem:[#allocation7 + $0x2e0] sm:$0xff]
    %v1890 = vld [vmem:[#allocation7 + $0x2e8] sm:$0xff]
    %v1891 = vld [vmem:[#allocation7 + $0x2f0] sm:$0xff]
    %v1892 = vld [vmem:[#allocation7 + $0x2f8] sm:$0xff]
    %v1893 = vld [vmem:[#allocation7 + $0x300] sm:$0xff]
    %v1894 = vld [vmem:[#allocation7 + $0x308] sm:$0xff]
    %v1895 = vld [vmem:[#allocation7 + $0x310] sm:$0xff]
    %v1896 = vld [vmem:[#allocation7 + $0x318] sm:$0xff]
    %v1897 = vld [vmem:[#allocation7 + $0x320] sm:$0xff]
    %v1898 = vld [vmem:[#allocation7 + $0x328] sm:$0xff]
    %v1899 = vld [vmem:[#allocation7 + $0x330] sm:$0xff]
    %v1900 = vld [vmem:[#allocation7 + $0x338] sm:$0xff]
    %v1901 = vld [vmem:[#allocation7 + $0x340] sm:$0xff]
    %v1902 = vld [vmem:[#allocation7 + $0x348] sm:$0xff]
    %v1903 = vld [vmem:[#allocation7 + $0x350] sm:$0xff]
    %v1904 = vld [vmem:[#allocation7 + $0x358] sm:$0xff]
    %v1905 = vld [vmem:[#allocation7 + $0x360] sm:$0xff]
    %v1906 = vld [vmem:[#allocation7 + $0x368] sm:$0xff]
    %v1907 = vld [vmem:[#allocation7 + $0x370] sm:$0xff]
    %v1908 = vld [vmem:[#allocation7 + $0x378] sm:$0xff]
    %v1909 = vld [vmem:[#allocation7 + $0x380] sm:$0xff]
    %v1910 = vld [vmem:[#allocation7 + $0x388] sm:$0xff]
    %v1911 = vld [vmem:[#allocation7 + $0x390] sm:$0xff]
    %v1912 = vld [vmem:[#allocation7 + $0x398] sm:$0xff]
    %v1913 = vld [vmem:[#allocation7 + $0x3a0] sm:$0xff]
    %v1914 = vld [vmem:[#allocation7 + $0x3a8] sm:$0xff]
    %v1915 = vld [vmem:[#allocation7 + $0x3b0] sm:$0xff]
    %v1916 = vld [vmem:[#allocation7 + $0x3b8] sm:$0xff]
    %v1917 = vld [vmem:[#allocation7 + $0x3c0] sm:$0xff]
    %v1918 = vld [vmem:[#allocation7 + $0x3c8] sm:$0xff]
    %v1919 = vld [vmem:[#allocation7 + $0x3d0] sm:$0xff]
    %v1920 = vld [vmem:[#allocation7 + $0x3d8] sm:$0xff]
    %v1921 = vld [vmem:[#allocation7 + $0x3e0] sm:$0xff]
    %v1922 = vld [vmem:[#allocation7 + $0x3e8] sm:$0xff]
    %v1923 = vld [vmem:[#allocation7 + $0x3f0] sm:$0xff]
    %v1924 = vld [vmem:[#allocation7 + $0x3f8] sm:$0xff]
    %v1925 = vld [vmem:[#allocation7 + $0x400] sm:$0xff]
    %v1926 = vld [vmem:[#allocation7 + $0x408] sm:$0xff]
    %v1927 = vld [vmem:[#allocation7 + $0x410] sm:$0xff]
    %v1928 = vld [vmem:[#allocation7 + $0x418] sm:$0xff]
    %v1929 = vld [vmem:[#allocation7 + $0x420] sm:$0xff]
    %v1930 = vld [vmem:[#allocation7 + $0x428] sm:$0xff]
    %v1931 = vld [vmem:[#allocation7 + $0x430] sm:$0xff]
    %v1932 = vld [vmem:[#allocation7 + $0x438] sm:$0xff]
    %v1933 = vld [vmem:[#allocation7 + $0x440] sm:$0xff]
    %v1934 = vld [vmem:[#allocation7 + $0x448] sm:$0xff]
    %v1935 = vld [vmem:[#allocation7 + $0x450] sm:$0xff]
    %v1936 = vld [vmem:[#allocation7 + $0x458] sm:$0xff]
    %v1937 = vld [vmem:[#allocation7 + $0x460] sm:$0xff]
    %v1938 = vld [vmem:[#allocation7 + $0x468] sm:$0xff]
    %v1939 = vld [vmem:[#allocation7 + $0x470] sm:$0xff]
    %v1940 = vld [vmem:[#allocation7 + $0x478] sm:$0xff]
    %v1941 = vld [vmem:[#allocation7 + $0x480] sm:$0xff]
    %v1942 = vld [vmem:[#allocation7 + $0x488] sm:$0xff]
    %v1943 = vld [vmem:[#allocation7 + $0x490] sm:$0xff]
    %v1944 = vld [vmem:[#allocation7 + $0x498] sm:$0xff]
    %v1945 = vld [vmem:[#allocation7 + $0x4a0] sm:$0xff]
    %v1946 = vld [vmem:[#allocation7 + $0x4a8] sm:$0xff]
    %v1947 = vld [vmem:[#allocation7 + $0x4b0] sm:$0xff]
    %v1948 = vld [vmem:[#allocation7 + $0x4b8] sm:$0xff]
    %v1949 = vld [vmem:[#allocation7 + $0x4c0] sm:$0xff]
    %v1950 = vld [vmem:[#allocation7 + $0x4c8] sm:$0xff]
    %v1951 = vld [vmem:[#allocation7 + $0x4d0] sm:$0xff]
    %v1952 = vld [vmem:[#allocation7 + $0x4d8] sm:$0xff]
    %v1953 = vld [vmem:[#allocation7 + $0x4e0] sm:$0xff]
    %v1954 = vld [vmem:[#allocation7 + $0x4e8] sm:$0xff]
    %v1955 = vld [vmem:[#allocation7 + $0x4f0] sm:$0xff]
    %v1956 = vld [vmem:[#allocation7 + $0x4f8] sm:$0xff]
    %v1957 = vld [vmem:[#allocation7 + $0x500] sm:$0xff]
    %v1958 = vld [vmem:[#allocation7 + $0x508] sm:$0xff]
    %v1959 = vld [vmem:[#allocation7 + $0x510] sm:$0xff]
    %v1960 = vld [vmem:[#allocation7 + $0x518] sm:$0xff]
    %v1961 = vld [vmem:[#allocation7 + $0x520] sm:$0xff]
    %v1962 = vld [vmem:[#allocation7 + $0x528] sm:$0xff]
    %v1963 = vld [vmem:[#allocation7 + $0x530] sm:$0xff]
    %v1964 = vld [vmem:[#allocation7 + $0x538] sm:$0xff]
    %v1965 = vld [vmem:[#allocation7 + $0x540] sm:$0xff]
    %v1966 = vld [vmem:[#allocation7 + $0x548] sm:$0xff]
    %v1967 = vld [vmem:[#allocation7 + $0x550] sm:$0xff]
    %v1968 = vld [vmem:[#allocation7 + $0x558] sm:$0xff]
    %v1969 = vld [vmem:[#allocation7 + $0x560] sm:$0xff]
    %v1970 = vld [vmem:[#allocation7 + $0x568] sm:$0xff]
    %v1971 = vld [vmem:[#allocation7 + $0x570] sm:$0xff]
    %v1972 = vld [vmem:[#allocation7 + $0x578] sm:$0xff]
    %v1973 = vld [vmem:[#allocation7 + $0x580] sm:$0xff]
    %v1974 = vld [vmem:[#allocation7 + $0x588] sm:$0xff]
    %v1975 = vld [vmem:[#allocation7 + $0x590] sm:$0xff]
    %v1976 = vld [vmem:[#allocation7 + $0x598] sm:$0xff]
    %v1977 = vld [vmem:[#allocation7 + $0x5a0] sm:$0xff]
    %v1978 = vld [vmem:[#allocation7 + $0x5a8] sm:$0xff]
    %v1979 = vld [vmem:[#allocation7 + $0x5b0] sm:$0xff]
    %v1980 = vld [vmem:[#allocation7 + $0x5b8] sm:$0xff]
    %v1981 = vld [vmem:[#allocation7 + $0x5c0] sm:$0xff]
    %v1982 = vld [vmem:[#allocation7 + $0x5c8] sm:$0xff]
    %v1983 = vld [vmem:[#allocation7 + $0x5d0] sm:$0xff]
    %v1984 = vld [vmem:[#allocation7 + $0x5d8] sm:$0xff]
    %v1985 = vld [vmem:[#allocation7 + $0x5e0] sm:$0xff]
    %v1986 = vld [vmem:[#allocation7 + $0x5e8] sm:$0xff]
    %v1987 = vld [vmem:[#allocation7 + $0x5f0] sm:$0xff]
    %v1988 = vld [vmem:[#allocation7 + $0x5f8] sm:$0xff]
    %v1989 = vld [vmem:[#allocation7 + $0x600] sm:$0xff]
    %v1990 = vld [vmem:[#allocation7 + $0x608] sm:$0xff]
    %v1991 = vld [vmem:[#allocation7 + $0x610] sm:$0xff]
    %v1992 = vld [vmem:[#allocation7 + $0x618] sm:$0xff]
    %v1993 = vld [vmem:[#allocation7 + $0x620] sm:$0xff]
    %v1994 = vld [vmem:[#allocation7 + $0x628] sm:$0xff]
    %v1995 = vld [vmem:[#allocation7 + $0x630] sm:$0xff]
    %v1996 = vld [vmem:[#allocation7 + $0x638] sm:$0xff]
    %v1997 = vld [vmem:[#allocation7 + $0x640] sm:$0xff]
    %v1998 = vld [vmem:[#allocation7 + $0x648] sm:$0xff]
    %v1999 = vld [vmem:[#allocation7 + $0x650] sm:$0xff]
    %v2000 = vld [vmem:[#allocation7 + $0x658] sm:$0xff]
    %v2001 = vld [vmem:[#allocation7 + $0x660] sm:$0xff]
    %v2002 = vld [vmem:[#allocation7 + $0x668] sm:$0xff]
    %v2003 = vld [vmem:[#allocation7 + $0x670] sm:$0xff]
    %v2004 = vld [vmem:[#allocation7 + $0x678] sm:$0xff]
    %v2005 = vld [vmem:[#allocation7 + $0x680] sm:$0xff]
    %v2006 = vld [vmem:[#allocation7 + $0x688] sm:$0xff]
    %v2007 = vld [vmem:[#allocation7 + $0x690] sm:$0xff]
    %v2008 = vld [vmem:[#allocation7 + $0x698] sm:$0xff]
    %v2009 = vld [vmem:[#allocation7 + $0x6a0] sm:$0xff]
    %v2010 = vld [vmem:[#allocation7 + $0x6a8] sm:$0xff]
    %v2011 = vld [vmem:[#allocation7 + $0x6b0] sm:$0xff]
    %v2012 = vld [vmem:[#allocation7 + $0x6b8] sm:$0xff]
    %v2013 = vld [vmem:[#allocation7 + $0x6c0] sm:$0xff]
    %v2014 = vld [vmem:[#allocation7 + $0x6c8] sm:$0xff]
    %v2015 = vld [vmem:[#allocation7 + $0x6d0] sm:$0xff]
    %v2016 = vld [vmem:[#allocation7 + $0x6d8] sm:$0xff]
    %v2017 = vld [vmem:[#allocation7 + $0x6e0] sm:$0xff]
    %v2018 = vld [vmem:[#allocation7 + $0x6e8] sm:$0xff]
    %v2019 = vld [vmem:[#allocation7 + $0x6f0] sm:$0xff]
    %v2020 = vld [vmem:[#allocation7 + $0x6f8] sm:$0xff]
    %v2021 = vld [vmem:[#allocation7 + $0x700] sm:$0xff]
    %v2022 = vld [vmem:[#allocation7 + $0x708] sm:$0xff]
    %v2023 = vld [vmem:[#allocation7 + $0x710] sm:$0xff]
    %v2024 = vld [vmem:[#allocation7 + $0x718] sm:$0xff]
    %v2025 = vld [vmem:[#allocation7 + $0x720] sm:$0xff]
    %v2026 = vld [vmem:[#allocation7 + $0x728] sm:$0xff]
    %v2027 = vld [vmem:[#allocation7 + $0x730] sm:$0xff]
    %v2028 = vld [vmem:[#allocation7 + $0x738] sm:$0xff]
    %v2029 = vld [vmem:[#allocation7 + $0x740] sm:$0xff]
    %v2030 = vld [vmem:[#allocation7 + $0x748] sm:$0xff]
    %v2031 = vld [vmem:[#allocation7 + $0x750] sm:$0xff]
    %v2032 = vld [vmem:[#allocation7 + $0x758] sm:$0xff]
    %v2033 = vld [vmem:[#allocation7 + $0x760] sm:$0xff]
    %v2034 = vld [vmem:[#allocation7 + $0x768] sm:$0xff]
    %v2035 = vld [vmem:[#allocation7 + $0x770] sm:$0xff]
    %v2036 = vld [vmem:[#allocation7 + $0x778] sm:$0xff]
    %s2037 = scalar_lea.vmem [#allocation7], 1938
    %v2038 = vld [vmem:[%s2037] ss:$8 sm:$0x3]
    %v2040 = vperm.slane %v2038, 0
    %v2041 = vperm.slane %v2038, 1
    %2044 = vmatpush.msra.mxu0 %v1875
    %2045 = vmatpush.msra.mxu0 %v1873
    %2046 = vmatpush.msra.mxu0 %v1871
    %2047 = vmatpush.msra.mxu0 %v1869
    %2048 = vmatpush.msra.mxu0 %v1867
    %2049 = vmatpush.msra.mxu0 %v1865
    %2050 = vmatpush.msra.mxu0 %v1863
    %2051 = vmatpush.msra.mxu0 %v1861
    %2052 = vmatpush.msra.mxu0 %v1859
    %2053 = vmatpush.msra.mxu0 %v1857
    %2054 = vmatpush.msra.mxu0 %v1855
    %2055 = vmatpush.msra.mxu0 %v1853
    %2056 = vmatpush.msra.mxu0 %v1851
    %2057 = vmatpush.msra.mxu0 %v1849
    %2058 = vmatpush.msra.mxu0 %v1847
    %2059 = vmatpush.msra.mxu0 %v1845
    %2060 = vmatmul.f32.gmra.mxu0 %v1833
    %v2061 = vpop.f32.mrf.mxu0
    %v2062 = vadd.f32 %v2040, %v2061
    %2063 = vdwg.mxu0
    %2064 = vmatpush.msra.mxu0 %v1907
    %2065 = vmatpush.msra.mxu0 %v1905
    %2066 = vmatpush.msra.mxu0 %v1903
    %2067 = vmatpush.msra.mxu0 %v1901
    %2068 = vmatpush.msra.mxu0 %v1899
    %2069 = vmatpush.msra.mxu0 %v1897
    %2070 = vmatpush.msra.mxu0 %v1895
    %2071 = vmatpush.msra.mxu0 %v1893
    %2072 = vmatpush.msra.mxu0 %v1891
    %2073 = vmatpush.msra.mxu0 %v1889
    %2074 = vmatpush.msra.mxu0 %v1887
    %2075 = vmatpush.msra.mxu0 %v1885
    %2076 = vmatpush.msra.mxu0 %v1883
    %2077 = vmatpush.msra.mxu0 %v1881
    %2078 = vmatpush.msra.mxu0 %v1879
    %2079 = vmatpush.msra.mxu0 %v1877
    %2080 = vmatmul.f32.gmra.mxu0 %v1836
    %v2081 = vpop.f32.mrf.mxu0
    %v2082 = vadd.f32 %v2062, %v2081
    %2083 = vdwg.mxu0
    %2084 = vmatpush.msra.mxu0 %v1939
    %2085 = vmatpush.msra.mxu0 %v1937
    %2086 = vmatpush.msra.mxu0 %v1935
    %2087 = vmatpush.msra.mxu0 %v1933
    %2088 = vmatpush.msra.mxu0 %v1931
    %2089 = vmatpush.msra.mxu0 %v1929
    %2090 = vmatpush.msra.mxu0 %v1927
    %2091 = vmatpush.msra.mxu0 %v1925
    %2092 = vmatpush.msra.mxu0 %v1923
    %2093 = vmatpush.msra.mxu0 %v1921
    %2094 = vmatpush.msra.mxu0 %v1919
    %2095 = vmatpush.msra.mxu0 %v1917
    %2096 = vmatpush.msra.mxu0 %v1915
    %2097 = vmatpush.msra.mxu0 %v1913
    %2098 = vmatpush.msra.mxu0 %v1911
    %2099 = vmatpush.msra.mxu0 %v1909
    %2100 = vmatmul.f32.gmra.mxu0 %v1838
    %v2101 = vpop.f32.mrf.mxu0
    %v2102 = vadd.f32 %v2082, %v2101
    %2103 = vdwg.mxu0
    %2104 = vmatpush.msra.mxu0 %v1971
    %2105 = vmatpush.msra.mxu0 %v1969
    %2106 = vmatpush.msra.mxu0 %v1967
    %2107 = vmatpush.msra.mxu0 %v1965
    %2108 = vmatpush.msra.mxu0 %v1963
    %2109 = vmatpush.msra.mxu0 %v1961
    %2110 = vmatpush.msra.mxu0 %v1959
    %2111 = vmatpush.msra.mxu0 %v1957
    %2112 = vmatpush.msra.mxu0 %v1955
    %2113 = vmatpush.msra.mxu0 %v1953
    %2114 = vmatpush.msra.mxu0 %v1951
    %2115 = vmatpush.msra.mxu0 %v1949
    %2116 = vmatpush.msra.mxu0 %v1947
    %2117 = vmatpush.msra.mxu0 %v1945
    %2118 = vmatpush.msra.mxu0 %v1943
    %2119 = vmatpush.msra.mxu0 %v1941
    %2120 = vmatmul.f32.gmra.mxu0 %v1840
    %v2121 = vpop.f32.mrf.mxu0
    %v2122 = vadd.f32 %v2102, %v2121
    %2123 = vdwg.mxu0
    %2124 = vmatpush.msra.mxu0 %v2003
    %2125 = vmatpush.msra.mxu0 %v2001
    %2126 = vmatpush.msra.mxu0 %v1999
    %2127 = vmatpush.msra.mxu0 %v1997
    %2128 = vmatpush.msra.mxu0 %v1995
    %2129 = vmatpush.msra.mxu0 %v1993
    %2130 = vmatpush.msra.mxu0 %v1991
    %2131 = vmatpush.msra.mxu0 %v1989
    %2132 = vmatpush.msra.mxu0 %v1987
    %2133 = vmatpush.msra.mxu0 %v1985
    %2134 = vmatpush.msra.mxu0 %v1983
    %2135 = vmatpush.msra.mxu0 %v1981
    %2136 = vmatpush.msra.mxu0 %v1979
    %2137 = vmatpush.msra.mxu0 %v1977
    %2138 = vmatpush.msra.mxu0 %v1975
    %2139 = vmatpush.msra.mxu0 %v1973
    %2140 = vmatmul.f32.gmra.mxu0 %v1834
    %v2141 = vpop.f32.mrf.mxu0
    %v2142 = vadd.f32 %v2122, %v2141
    %2143 = vdwg.mxu0
    %2144 = vmatpush.msra.mxu0 %v2035
    %2145 = vmatpush.msra.mxu0 %v2033
    %2146 = vmatpush.msra.mxu0 %v2031
    %2147 = vmatpush.msra.mxu0 %v2029
    %2148 = vmatpush.msra.mxu0 %v2027
    %2149 = vmatpush.msra.mxu0 %v2025
    %2150 = vmatpush.msra.mxu0 %v2023
    %2151 = vmatpush.msra.mxu0 %v2021
    %2152 = vmatpush.msra.mxu0 %v2019
    %2153 = vmatpush.msra.mxu0 %v2017
    %2154 = vmatpush.msra.mxu0 %v2015
    %2155 = vmatpush.msra.mxu0 %v2013
    %2156 = vmatpush.msra.mxu0 %v2011
    %2157 = vmatpush.msra.mxu0 %v2009
    %2158 = vmatpush.msra.mxu0 %v2007
    %2159 = vmatpush.msra.mxu0 %v2005
    %2160 = vmatmul.f32.gmra.mxu0 %v1843
    %v2161 = vpop.f32.mrf.mxu0
    %v2162 = vadd.f32 %v2142, %v2161
    %2163 = vdwg.mxu0
    %2164 = vmatpush.msra.mxu0 %v1876
    %2165 = vmatpush.msra.mxu0 %v1874
    %2166 = vmatpush.msra.mxu0 %v1872
    %2167 = vmatpush.msra.mxu0 %v1870
    %2168 = vmatpush.msra.mxu0 %v1868
    %2169 = vmatpush.msra.mxu0 %v1866
    %2170 = vmatpush.msra.mxu0 %v1864
    %2171 = vmatpush.msra.mxu0 %v1862
    %2172 = vmatpush.msra.mxu0 %v1860
    %2173 = vmatpush.msra.mxu0 %v1858
    %2174 = vmatpush.msra.mxu0 %v1856
    %2175 = vmatpush.msra.mxu0 %v1854
    %2176 = vmatpush.msra.mxu0 %v1852
    %2177 = vmatpush.msra.mxu0 %v1850
    %2178 = vmatpush.msra.mxu0 %v1848
    %2179 = vmatpush.msra.mxu0 %v1846
    %2180 = vmatmul.f32.gmra.mxu0 %v1833
    %v2181 = vpop.f32.mrf.mxu0
    %v2182 = vadd.f32 %v2041, %v2181
    %2183 = vdwg.mxu0
    %2184 = vmatpush.msra.mxu0 %v1908
    %2185 = vmatpush.msra.mxu0 %v1906
    %2186 = vmatpush.msra.mxu0 %v1904
    %2187 = vmatpush.msra.mxu0 %v1902
    %2188 = vmatpush.msra.mxu0 %v1900
    %2189 = vmatpush.msra.mxu0 %v1898
    %2190 = vmatpush.msra.mxu0 %v1896
    %2191 = vmatpush.msra.mxu0 %v1894
    %2192 = vmatpush.msra.mxu0 %v1892
    %2193 = vmatpush.msra.mxu0 %v1890
    %2194 = vmatpush.msra.mxu0 %v1888
    %2195 = vmatpush.msra.mxu0 %v1886
    %2196 = vmatpush.msra.mxu0 %v1884
    %2197 = vmatpush.msra.mxu0 %v1882
    %2198 = vmatpush.msra.mxu0 %v1880
    %2199 = vmatpush.msra.mxu0 %v1878
    %2200 = vmatmul.f32.gmra.mxu0 %v1836
    %v2201 = vpop.f32.mrf.mxu0
    %v2202 = vadd.f32 %v2182, %v2201
    %2203 = vdwg.mxu0
    %2204 = vmatpush.msra.mxu0 %v1940
    %2205 = vmatpush.msra.mxu0 %v1938
    %2206 = vmatpush.msra.mxu0 %v1936
    %2207 = vmatpush.msra.mxu0 %v1934
    %2208 = vmatpush.msra.mxu0 %v1932
    %2209 = vmatpush.msra.mxu0 %v1930
    %2210 = vmatpush.msra.mxu0 %v1928
    %2211 = vmatpush.msra.mxu0 %v1926
    %2212 = vmatpush.msra.mxu0 %v1924
    %2213 = vmatpush.msra.mxu0 %v1922
    %2214 = vmatpush.msra.mxu0 %v1920
    %2215 = vmatpush.msra.mxu0 %v1918
    %2216 = vmatpush.msra.mxu0 %v1916
    %2217 = vmatpush.msra.mxu0 %v1914
    %2218 = vmatpush.msra.mxu0 %v1912
    %2219 = vmatpush.msra.mxu0 %v1910
    %2220 = vmatmul.f32.gmra.mxu0 %v1838
    %v2221 = vpop.f32.mrf.mxu0
    %v2222 = vadd.f32 %v2202, %v2221
    %2223 = vdwg.mxu0
    %2224 = vmatpush.msra.mxu0 %v1972
    %2225 = vmatpush.msra.mxu0 %v1970
    %2226 = vmatpush.msra.mxu0 %v1968
    %2227 = vmatpush.msra.mxu0 %v1966
    %2228 = vmatpush.msra.mxu0 %v1964
    %2229 = vmatpush.msra.mxu0 %v1962
    %2230 = vmatpush.msra.mxu0 %v1960
    %2231 = vmatpush.msra.mxu0 %v1958
    %2232 = vmatpush.msra.mxu0 %v1956
    %2233 = vmatpush.msra.mxu0 %v1954
    %2234 = vmatpush.msra.mxu0 %v1952
    %2235 = vmatpush.msra.mxu0 %v1950
    %2236 = vmatpush.msra.mxu0 %v1948
    %2237 = vmatpush.msra.mxu0 %v1946
    %2238 = vmatpush.msra.mxu0 %v1944
    %2239 = vmatpush.msra.mxu0 %v1942
    %2240 = vmatmul.f32.gmra.mxu0 %v1840
    %v2241 = vpop.f32.mrf.mxu0
    %v2242 = vadd.f32 %v2222, %v2241
    %2243 = vdwg.mxu0
    %2244 = vmatpush.msra.mxu0 %v2004
    %2245 = vmatpush.msra.mxu0 %v2002
    %2246 = vmatpush.msra.mxu0 %v2000
    %2247 = vmatpush.msra.mxu0 %v1998
    %2248 = vmatpush.msra.mxu0 %v1996
    %2249 = vmatpush.msra.mxu0 %v1994
    %2250 = vmatpush.msra.mxu0 %v1992
    %2251 = vmatpush.msra.mxu0 %v1990
    %2252 = vmatpush.msra.mxu0 %v1988
    %2253 = vmatpush.msra.mxu0 %v1986
    %2254 = vmatpush.msra.mxu0 %v1984
    %2255 = vmatpush.msra.mxu0 %v1982
    %2256 = vmatpush.msra.mxu0 %v1980
    %2257 = vmatpush.msra.mxu0 %v1978
    %2258 = vmatpush.msra.mxu0 %v1976
    %2259 = vmatpush.msra.mxu0 %v1974
    %2260 = vmatmul.f32.gmra.mxu0 %v1834
    %v2261 = vpop.f32.mrf.mxu0
    %v2262 = vadd.f32 %v2242, %v2261
    %2263 = vdwg.mxu0
    %2264 = vmatpush.msra.mxu0 %v2036
    %2265 = vmatpush.msra.mxu0 %v2034
    %2266 = vmatpush.msra.mxu0 %v2032
    %2267 = vmatpush.msra.mxu0 %v2030
    %2268 = vmatpush.msra.mxu0 %v2028
    %2269 = vmatpush.msra.mxu0 %v2026
    %2270 = vmatpush.msra.mxu0 %v2024
    %2271 = vmatpush.msra.mxu0 %v2022
    %2272 = vmatpush.msra.mxu0 %v2020
    %2273 = vmatpush.msra.mxu0 %v2018
    %2274 = vmatpush.msra.mxu0 %v2016
    %2275 = vmatpush.msra.mxu0 %v2014
    %2276 = vmatpush.msra.mxu0 %v2012
    %2277 = vmatpush.msra.mxu0 %v2010
    %2278 = vmatpush.msra.mxu0 %v2008
    %2279 = vmatpush.msra.mxu0 %v2006
    %2280 = vmatmul.f32.gmra.mxu0 %v1843
    %v2281 = vpop.f32.mrf.mxu0
    %v2282 = vadd.f32 %v2262, %v2281
    %2283 = vdwg.mxu0
    %v2284 = vmax.f32 %v2162, 0.0
    %v2285 = vmax.f32 %v2282, 0.0
    %v2286 = vld [vmem:[#allocation7 + $0x780] sm:$0xff]
    %v2287 = vld [vmem:[#allocation7 + $0x788] sm:$0xff]
    %v2288 = vld [vmem:[#allocation7 + $0x793] ss:$0 sm:$0xff]
    %2289 = vmatpush.xpose.msra.mxu0 0.0
    %2290 = vmatpush.xpose.msra.mxu0 0.0
    %2291 = vmatpush.xpose.msra.mxu0 0.0
    %2292 = vmatpush.xpose.msra.mxu0 0.0
    %2293 = vmatpush.xpose.msra.mxu0 0.0
    %2294 = vmatpush.xpose.msra.mxu0 0.0
    %2295 = vmatpush.xpose.msra.mxu0 0.0
    %2296 = vmatpush.xpose.msra.mxu0 0.0
    %2297 = vmatpush.xpose.msra.mxu0 0.0
    %2298 = vmatpush.xpose.msra.mxu0 0.0
    %2299 = vmatpush.xpose.msra.mxu0 0.0
    %2300 = vmatpush.xpose.msra.mxu0 0.0
    %2301 = vmatpush.xpose.msra.mxu0 0.0
    %2302 = vmatpush.xpose.msra.mxu0 0.0
    %2303 = vmatpush.xpose.msra.mxu0 0.0
    %2304 = vmatpush.xpose.msra.mxu0 %v2286
    %2305 = vmatmul.f32.gmra.mxu0 %v2284
    %v2306 = vpop.f32.mrf.mxu0
    %v2307 = vadd.f32 %v2288, %v2306
    %2308 = vdwg.mxu0
    %2309 = vmatpush.xpose.msra.mxu0 0.0
    %2310 = vmatpush.xpose.msra.mxu0 0.0
    %2311 = vmatpush.xpose.msra.mxu0 0.0
    %2312 = vmatpush.xpose.msra.mxu0 0.0
    %2313 = vmatpush.xpose.msra.mxu0 0.0
    %2314 = vmatpush.xpose.msra.mxu0 0.0
    %2315 = vmatpush.xpose.msra.mxu0 0.0
    %2316 = vmatpush.xpose.msra.mxu0 0.0
    %2317 = vmatpush.xpose.msra.mxu0 0.0
    %2318 = vmatpush.xpose.msra.mxu0 0.0
    %2319 = vmatpush.xpose.msra.mxu0 0.0
    %2320 = vmatpush.xpose.msra.mxu0 0.0
    %2321 = vmatpush.xpose.msra.mxu0 0.0
    %2322 = vmatpush.xpose.msra.mxu0 0.0
    %2323 = vmatpush.xpose.msra.mxu0 0.0
    %2324 = vmatpush.xpose.msra.mxu0 %v2287
    %2325 = vmatmul.f32.gmra.mxu0 %v2285
    %v2326 = vpop.f32.mrf.mxu0
    %v2327 = vadd.f32 %v2307, %v2326
    %2328 = vdwg.mxu0
    %vm2329 = vcmask 1024
    %2330 = vst.msk [vmem:[%s3] sm:$0x3] %vm2329, %v2327
    %2332 = vrot.lane.b32.xlu0 %v2327, 127
    %v2333 = vpop.permute.xlu0 %2332
    %vm2335 = vcmask 41984
    %2336 = vst.msk [vmem:[#allocation8] sm:$0x3] %vm2335, %v2333
    // Predicated region
    $region26: #{forward.1} parent=1 // pred_check
      _
    $region27: #{forward.1} parent=1 // pred_check_branch
      %2338 = sbr.rel (0) target = $region29
    $region28: #{forward.1} parent=1 // pred_region
      _
    $region29: #{forward.1} parent=1 // pred_fallthru
      _
    // Predicated region
    $region30: #{forward.1} parent=1 // pred_check
      _
    $region31: #{forward.1} parent=1 // pred_check_branch
      %2340 = sbr.rel (0) target = $region33
    $region32: #{forward.1} parent=1 // pred_region
      %2342 = vsyncadd [#allocation4], 0
      %s2344 = sshll.u32 [#allocation8], 4
      %s2345 = int_to_ptr.vmem [resolvable:$true] %s2344
      %s2346 = sshll.u32 %s4, 4
      %s2347 = int_to_ptr.hbm [resolvable:$true] %s2346
      %2349 = dma.vmem_to_hbm [thread:$0]  %s2345, 32, %s2347, [#allocation4]
    $region33: #{forward.1} parent=1 // pred_fallthru
      _
    // Predicated region
    $region34: #{forward.1} parent=1 // pred_check
      _
    $region35: #{forward.1} parent=1 // pred_check_branch
      %2351 = sbr.rel (0) target = $region37
    $region36: #{forward.1} parent=1 // pred_region
      _
    $region37: #{forward.1} parent=1 // pred_fallthru
      _
    // Predicated region
    $region38: #{forward.1} parent=1 // pred_check
      _
    $region39: #{forward.1} parent=1 // pred_check_branch
      %2353 = sbr.rel (0) target = $region41
    $region40: #{forward.1} parent=1 // pred_region
      %2355 = dma.done [#allocation4], 32
    $region41: #{forward.1} parent=1 // pred_fallthru
      _
    %2356 = vsyncpa [#allocation3], 1
    %2357 = vsyncpa [#allocation6], 1
    %2358 = vsyncpa [#allocation4], 1

</llo_original>
